<compile_context>
chip_gen: v7x
topology: tpu7x:2x2x1
jax: 0.10.0
libtpu: 0.0.40
codegen_flags: <defaults>
</compile_context>

<pallas_src>
import functools

import jax
import jax.numpy as jnp
import numpy as np
from jax.experimental import pallas as pl
from jax.experimental.pallas import tpu as pltpu

# ----------------------------- small synthetic config -----------------------------
VOCAB_SIZE = 5
HIDDEN_DIM = 64          # d_model
DIM_FF = 128             # dim_feedforward
NHEAD = 8                # -> head_dim = 8
NUM_LAYERS = 2
MAX_SEQ_LEN = 64
LN_EPS = 1e-5

BATCH = 2
SEQ_LEN = 16

QKV_LANES = 384          # Q @ lanes [0:64), K @ [128:192), V @ [256:320) (zero padded)


# ------------------------------- fused encoder kernel ------------------------------
def _dna_encoder_kernel(onehot_ref, tok_ref, pos_ref, rep_ref, vmaskf_ref, vmaskb_ref,
                        negmask_ref, wqkv_ref, bqkv_ref, wo_ref, w1_ref, w2_ref, vecs_ref,
                        out_ref, *, num_layers):
    D = tok_ref.shape[1]                                   # 64

    # ---------------- embedding: one-hot gather on the MXU (bf16) + positional ----------------
    x = jnp.dot(onehot_ref[...], tok_ref[...], preferred_element_type=jnp.float32)
    x = x + pos_ref[...]                                   # (BL, D) f32 (pos pre-tiled over batch)

    # ------------- precomputed routing / mask constants (VMEM inputs) -------------
    rep = rep_ref[...]            # (BHL, BL) bf16 0/1: replicate row (b, j) into its H head blocks
    vmask_f = vmaskf_ref[...]     # (BHL, D)  f32 0/1: row of head h keeps cols [h*hd, (h+1)*hd)
    vmask_b = vmaskb_ref[...]     # (BHL, D)  bf16 copy (RHS of the denominator matmul)
    neg_mask = negmask_ref[...]   # (BL, BHL) f32: 0 in-batch, -1e30 cross-batch

    # ----------------------------------- layer loop (unrolled) -----------------------------------
    for lyr in range(num_layers):
        xb = x.astype(jnp.bfloat16)

        # fused QKV projection; outputs are 128-lane aligned so slices need no lane relayout
        qkv = jnp.dot(xb, wqkv_ref[lyr], preferred_element_type=jnp.float32) + bqkv_ref[lyr]
        q = qkv[:, 0:D].astype(jnp.bfloat16)               # 1/sqrt(hd) folded into Wq/bq
        k = qkv[:, 128:128 + D].astype(jnp.bfloat16)
        v = qkv[:, 256:256 + D].astype(jnp.bfloat16)

        # block-diagonal K'/V' for ALL batches & heads at once: (BHL, D); no XLU transpose
        k_bd = (jnp.dot(rep, k, preferred_element_type=jnp.float32) * vmask_f).astype(jnp.bfloat16)
        v_bd = (jnp.dot(rep, v, preferred_element_type=jnp.float32) * vmask_f).astype(jnp.bfloat16)

        # all-batch, all-head scores: contract last dims (trans-B) -> (BL, BHL)
        s = jax.lax.dot_general(q, k_bd, (((1,), (1,)), ((), ())),
                                preferred_element_type=jnp.float32)
        s = s + neg_mask                                   # kill cross-batch attention
        # The per-row max is a single constant per query row; it cancels inside each head
        # segment's numerator/denominator, so a segment-global shift is numerically valid.
        s = s - jnp.max(s, axis=-1, keepdims=True)
        p = jnp.exp(s).astype(jnp.bfloat16)                # cross-batch entries are exactly 0

        # unnormalized per-head context + per-head softmax denominators, both routed
        # directly onto that head's feature columns (vmask doubles as the segment router)
        o_un = jnp.dot(p, v_bd, preferred_element_type=jnp.float32)       # (BL, D)
        denom = jnp.dot(p, vmask_b, preferred_element_type=jnp.float32)   # (BL, D), >= 1
        attn = o_un * pl.reciprocal(denom, approx=True)

        # packed small per-layer params: (7, 128) = [b1 | bo | ln1w | ln1b | b2 | ln2w | ln2b]
        vec = vecs_ref[lyr]
        b1 = vec[0:1, :]
        bo, ln1w, ln1b = vec[1:2, 0:D], vec[2:3, 0:D], vec[3:4, 0:D]
        b2, ln2w, ln2b = vec[4:5, 0:D], vec[5:6, 0:D], vec[6:7, 0:D]

        attn = jnp.dot(attn.astype(jnp.bfloat16), wo_ref[lyr],
                       preferred_element_type=jnp.float32) + bo

        # residual + LayerNorm1 (post-norm, biased variance, eps inside sqrt) -- f32 VPU math
        y = x + attn
        mu = jnp.mean(y, axis=-1, keepdims=True)
        var = jnp.mean((y - mu) ** 2, axis=-1, keepdims=True)
        y = (y - mu) * jax.lax.rsqrt(var + LN_EPS) * ln1w + ln1b

        # feed-forward (ReLU) + residual + LayerNorm2
        h1 = jnp.dot(y.astype(jnp.bfloat16), w1_ref[lyr],
                     preferred_element_type=jnp.float32) + b1
        h1 = jnp.maximum(h1, 0.0)
        h2 = jnp.dot(h1.astype(jnp.bfloat16), w2_ref[lyr],
                     preferred_element_type=jnp.float32) + b2
        z = y + h2
        mu2 = jnp.mean(z, axis=-1, keepdims=True)
        var2 = jnp.mean((z - mu2) ** 2, axis=-1, keepdims=True)
        x = (z - mu2) * jax.lax.rsqrt(var2 + LN_EPS) * ln2w + ln2b

    out_ref[...] = x.astype(out_ref.dtype)


def dna_encoder_forward(input_ids, params):
    B, L = input_ids.shape
    D, F, NL, H = HIDDEN_DIM, DIM_FF, NUM_LAYERS, NHEAD
    hd = D // H
    HL = H * L
    BHL = B * HL
    BL = B * L
    scale = 1.0 / float(hd) ** 0.5

    # ---------------- activation-side inputs (lane-dense) ----------------
    ids = input_ids.reshape(BL).astype(jnp.int32)
    onehot = (ids[:, None] == jnp.arange(8, dtype=jnp.int32)[None, :]).astype(jnp.bfloat16)
    tok_p = (jnp.zeros((8, D), jnp.float32).at[:VOCAB_SIZE, :]
             .set(params["tok_emb"]).astype(jnp.bfloat16))
    pos_tiled = jnp.tile(params["pos_emb"][:L], (B, 1))                      # (BL, D) f32

    # ---------------- static routing / mask constants (hoisted out of the kernel) ----------------
    r = np.arange(BHL)
    row_b, row_h, row_j = r // HL, (r % HL) // L, r % L
    rep_np = np.zeros((BHL, BL), np.float32)
    rep_np[r, row_b * L + row_j] = 1.0                                        # (b, j) -> (b, h, j)
    vmask_np = ((np.arange(D)[None, :] // hd) == row_h[:, None]).astype(np.float32)
    q_batch = np.arange(BL) // L
    negmask_np = np.where(q_batch[:, None] == row_b[None, :], 0.0, -1e30).astype(np.float32)

    rep_c = jnp.asarray(rep_np, dtype=jnp.bfloat16)        # (BHL, BL)
    vmask_f32 = jnp.asarray(vmask_np, dtype=jnp.float32)   # (BHL, D)
    vmask_bf16 = jnp.asarray(vmask_np, dtype=jnp.bfloat16)
    neg_mask = jnp.asarray(negmask_np, dtype=jnp.float32)  # (BL, BHL)

    # ---------------- per-layer weights, stacked along a leading layer axis ----------------
    def stack(fn):
        return jnp.stack([fn(lp) for lp in params["layers"]], axis=0)

    def pack_qkv_w(p):
        wq = p["in_proj_w"][0 * D:1 * D, :].T * scale      # fold 1/sqrt(hd) into Q
        wk = p["in_proj_w"][1 * D:2 * D, :].T
        wv = p["in_proj_w"][2 * D:3 * D, :].T
        w = jnp.zeros((D, QKV_LANES), jnp.float32)
        return w.at[:, 0:D].set(wq).at[:, 128:128 + D].set(wk).at[:, 256:256 + D].set(wv)

    def pack_qkv_b(p):
        bq = p["in_proj_b"][0 * D:1 * D] * scale
        bk = p["in_proj_b"][1 * D:2 * D]
        bv = p["in_proj_b"][2 * D:3 * D]
        b = jnp.zeros((1, QKV_LANES), jnp.float32)
        return b.at[0, 0:D].set(bq).at[0, 128:128 + D].set(bk).at[0, 256:256 + D].set(bv)

    def pack_vecs(p):
        v = jnp.zeros((7, 128), jnp.float32)
        v = v.at[0, :F].set(p["lin1_b"])
        v = v.at[1, :D].set(p["out_proj_b"])
        v = v.at[2, :D].set(p["ln1_w"])
        v = v.at[3, :D].set(p["ln1_b"])
        v = v.at[4, :D].set(p["lin2_b"])
        v = v.at[5, :D].set(p["ln2_w"])
        v = v.at[6, :D].set(p["ln2_b"])
        return v

    w_qkv = stack(pack_qkv_w).astype(jnp.bfloat16)                 # (NL, D, 384)
    b_qkv = stack(pack_qkv_b)                                      # (NL, 1, 384) f32
    wo = stack(lambda p: p["out_proj_w"].T).astype(jnp.bfloat16)   # (NL, D, D)
    w1 = stack(lambda p: p["lin1_w"].T).astype(jnp.bfloat16)       # (NL, D, F)
    w2 = stack(lambda p: p["lin2_w"].T).astype(jnp.bfloat16)       # (NL, F, D)
    vecs = stack(pack_vecs)                                        # (NL, 7, 128) f32

    kernel = functools.partial(_dna_encoder_kernel, num_layers=NL)
    vmem = pl.BlockSpec(memory_space=pltpu.MemorySpace.VMEM)

    out = pl.pallas_call(
        kernel,
        out_shape=jax.ShapeDtypeStruct((BL, D), jnp.float32),
        in_specs=[vmem] * 13,
        out_specs=vmem,
    )(onehot, tok_p, pos_tiled, rep_c, vmask_f32, vmask_bf16, neg_mask,
      w_qkv, b_qkv, wo, w1, w2, vecs)

    return out.reshape(B, L, D)


# ------------------------------ deterministic params -------------------------------
def init_params(key):
    keys = jax.random.split(key, 2 + NUM_LAYERS)
    D, F = HIDDEN_DIM, DIM_FF
    params = {
        "tok_emb": 0.02 * jax.random.normal(keys[0], (VOCAB_SIZE, D), jnp.float32),
        "pos_emb": 0.02 * jax.random.normal(keys[1], (MAX_SEQ_LEN, D), jnp.float32),
        "layers": [],
    }
    for i in range(NUM_LAYERS):
        lk = jax.random.split(keys[2 + i], 8)
        params["layers"].append(dict(
            in_proj_w=0.05 * jax.random.normal(lk[0], (3 * D, D), jnp.float32),
            in_proj_b=0.02 * jax.random.normal(lk[1], (3 * D,), jnp.float32),
            out_proj_w=0.05 * jax.random.normal(lk[2], (D, D), jnp.float32),
            out_proj_b=0.02 * jax.random.normal(lk[3], (D,), jnp.float32),
            lin1_w=0.05 * jax.random.normal(lk[4], (F, D), jnp.float32),
            lin1_b=0.02 * jax.random.normal(lk[5], (F,), jnp.float32),
            lin2_w=0.05 * jax.random.normal(lk[6], (D, F), jnp.float32),
            lin2_b=0.02 * jax.random.normal(lk[7], (D,), jnp.float32),
            ln1_w=jnp.ones((D,), jnp.float32), ln1_b=jnp.zeros((D,), jnp.float32),
            ln2_w=jnp.ones((D,), jnp.float32), ln2_b=jnp.zeros((D,), jnp.float32),
        ))
    return params


# --------------------------------- pure-JAX reference ------------------------------
def _ref_layer(x, p, nhead):
    B, L, D = x.shape
    hd = D // nhead
    qkv = x @ p["in_proj_w"].T + p["in_proj_b"]
    q, k, v = jnp.split(qkv, 3, axis=-1)
    q = q.reshape(B, L, nhead, hd).transpose(0, 2, 1, 3) * (hd ** -0.5)
    k = k.reshape(B, L, nhead, hd).transpose(0, 2, 1, 3)
    v = v.reshape(B, L, nhead, hd).transpose(0, 2, 1, 3)
    s = jnp.einsum("bhqd,bhkd->bhqk", q, k)
    a = jax.nn.softmax(s, axis=-1)
    o = jnp.einsum("bhqk,bhkd->bhqd", a, v).transpose(0, 2, 1, 3).reshape(B, L, D)
    o = o @ p["out_proj_w"].T + p["out_proj_b"]

    def ln(t, w, b):
        mu = t.mean(-1, keepdims=True)
        var = ((t - mu) ** 2).mean(-1, keepdims=True)
        return (t - mu) * jax.lax.rsqrt(var + LN_EPS) * w + b

    y = ln(x + o, p["ln1_w"], p["ln1_b"])
    h = jax.nn.relu(y @ p["lin1_w"].T + p["lin1_b"]) @ p["lin2_w"].T + p["lin2_b"]
    return ln(y + h, p["ln2_w"], p["ln2_b"])


def reference_forward(input_ids, params):
    L = input_ids.shape[1]
    x = params["tok_emb"][input_ids] + params["pos_emb"][:L][None]
    for lp in params["layers"]:
        x = _ref_layer(x, lp, NHEAD)
    return x


# --------------------------------------- main --------------------------------------
if __name__ == "__main__":
    key = jax.random.PRNGKey(0)
    pkey, ikey = jax.random.split(key)
    params = init_params(pkey)
    input_ids = jax.random.randint(ikey, (BATCH, SEQ_LEN), 0, VOCAB_SIZE)

    out = dna_encoder_forward(input_ids, params)
    out = jax.block_until_ready(out)
    assert out.shape == (BATCH, SEQ_LEN, HIDDEN_DIM)

    ref = jax.block_until_ready(reference_forward(input_ids, params))
    np.testing.assert_allclose(np.asarray(out), np.asarray(ref), rtol=2e-2, atol=2e-2)

    print("KERNEL_OK")
</pallas_src>

<mosaic_0001>
module attributes {stable_mosaic.version = 11 : i64} {
  func.func @_dna_encoder_kernel(%arg0: memref<32x8xbf16, #tpu.memory_space<vmem>>, %arg1: memref<8x64xbf16, #tpu.memory_space<vmem>>, %arg2: memref<32x64xf32, #tpu.memory_space<vmem>>, %arg3: memref<256x32xbf16, #tpu.memory_space<vmem>>, %arg4: memref<256x64xf32, #tpu.memory_space<vmem>>, %arg5: memref<256x64xbf16, #tpu.memory_space<vmem>>, %arg6: memref<32x256xf32, #tpu.memory_space<vmem>>, %arg7: memref<2x64x384xbf16, #tpu.memory_space<vmem>>, %arg8: memref<2x1x384xf32, #tpu.memory_space<vmem>>, %arg9: memref<2x64x64xbf16, #tpu.memory_space<vmem>>, %arg10: memref<2x64x128xbf16, #tpu.memory_space<vmem>>, %arg11: memref<2x128x64xbf16, #tpu.memory_space<vmem>>, %arg12: memref<2x7x128xf32, #tpu.memory_space<vmem>>, %arg13: memref<32x64xf32, #tpu.memory_space<vmem>>) attributes {dimension_semantics = [], scalar_prefetch = 0 : i64, scratch_operands = 0 : i64, tpu.core_type = #tpu.core_type<tc>} {
    %c0 = arith.constant 0 : index
    %c0_0 = arith.constant 0 : index
    %0 = vector.load %arg0[%c0, %c0_0] : memref<32x8xbf16, #tpu.memory_space<vmem>>, vector<32x8xbf16>
    %c0_1 = arith.constant 0 : index
    %c0_2 = arith.constant 0 : index
    %1 = vector.load %arg1[%c0_1, %c0_2] : memref<8x64xbf16, #tpu.memory_space<vmem>>, vector<8x64xbf16>
    %cst = arith.constant dense<0.000000e+00> : vector<32x64xf32>
    %2 = tpu.matmul %0, %1, %cst {dimension_numbers = #tpu.dot_dimension_numbers<[1], [0], [0], [1], [0, 0, 1, 1], [], []>} : vector<32x8xbf16>, vector<8x64xbf16>, vector<32x64xf32> -> vector<32x64xf32>
    %c0_3 = arith.constant 0 : index
    %c0_4 = arith.constant 0 : index
    %3 = vector.load %arg2[%c0_3, %c0_4] : memref<32x64xf32, #tpu.memory_space<vmem>>, vector<32x64xf32>
    %4 = arith.addf %2, %3 : vector<32x64xf32>
    %c0_5 = arith.constant 0 : index
    %c0_6 = arith.constant 0 : index
    %5 = vector.load %arg3[%c0_5, %c0_6] : memref<256x32xbf16, #tpu.memory_space<vmem>>, vector<256x32xbf16>
    %c0_7 = arith.constant 0 : index
    %c0_8 = arith.constant 0 : index
    %6 = vector.load %arg4[%c0_7, %c0_8] : memref<256x64xf32, #tpu.memory_space<vmem>>, vector<256x64xf32>
    %c0_9 = arith.constant 0 : index
    %c0_10 = arith.constant 0 : index
    %7 = vector.load %arg5[%c0_9, %c0_10] : memref<256x64xbf16, #tpu.memory_space<vmem>>, vector<256x64xbf16>
    %c0_11 = arith.constant 0 : index
    %c0_12 = arith.constant 0 : index
    %8 = vector.load %arg6[%c0_11, %c0_12] : memref<32x256xf32, #tpu.memory_space<vmem>>, vector<32x256xf32>
    %9 = arith.truncf %4 : vector<32x64xf32> to vector<32x64xbf16>
    %c0_13 = arith.constant 0 : index
    %c0_14 = arith.constant 0 : index
    %c0_15 = arith.constant 0 : index
    %10 = vector.load %arg7[%c0_13, %c0_14, %c0_15] : memref<2x64x384xbf16, #tpu.memory_space<vmem>>, vector<1x64x384xbf16>
    %11 = vector.shape_cast %10 : vector<1x64x384xbf16> to vector<64x384xbf16>
    %cst_16 = arith.constant dense<0.000000e+00> : vector<32x384xf32>
    %12 = tpu.matmul %9, %11, %cst_16 {dimension_numbers = #tpu.dot_dimension_numbers<[1], [0], [0], [1], [0, 0, 1, 1], [], []>} : vector<32x64xbf16>, vector<64x384xbf16>, vector<32x384xf32> -> vector<32x384xf32>
    %c0_17 = arith.constant 0 : index
    %c0_18 = arith.constant 0 : index
    %c0_19 = arith.constant 0 : index
    %13 = vector.load %arg8[%c0_17, %c0_18, %c0_19] : memref<2x1x384xf32, #tpu.memory_space<vmem>>, vector<1x1x384xf32>
    %14 = vector.shape_cast %13 : vector<1x1x384xf32> to vector<1x384xf32>
    %15 = vector.broadcast %14 : vector<1x384xf32> to vector<32x384xf32>
    %16 = arith.addf %12, %15 : vector<32x384xf32>
    %17 = vector.extract_strided_slice %16 {offsets = [0, 0], sizes = [32, 64], strides = [1, 1]} : vector<32x384xf32> to vector<32x64xf32>
    %18 = arith.truncf %17 : vector<32x64xf32> to vector<32x64xbf16>
    %19 = vector.extract_strided_slice %16 {offsets = [0, 128], sizes = [32, 64], strides = [1, 1]} : vector<32x384xf32> to vector<32x64xf32>
    %20 = arith.truncf %19 : vector<32x64xf32> to vector<32x64xbf16>
    %21 = vector.extract_strided_slice %16 {offsets = [0, 256], sizes = [32, 64], strides = [1, 1]} : vector<32x384xf32> to vector<32x64xf32>
    %22 = arith.truncf %21 : vector<32x64xf32> to vector<32x64xbf16>
    %cst_20 = arith.constant dense<0.000000e+00> : vector<256x64xf32>
    %23 = tpu.matmul %5, %20, %cst_20 {dimension_numbers = #tpu.dot_dimension_numbers<[1], [0], [0], [1], [0, 0, 1, 1], [], []>} : vector<256x32xbf16>, vector<32x64xbf16>, vector<256x64xf32> -> vector<256x64xf32>
    %24 = arith.mulf %23, %6 : vector<256x64xf32>
    %25 = arith.truncf %24 : vector<256x64xf32> to vector<256x64xbf16>
    %cst_21 = arith.constant dense<0.000000e+00> : vector<256x64xf32>
    %26 = tpu.matmul %5, %22, %cst_21 {dimension_numbers = #tpu.dot_dimension_numbers<[1], [0], [0], [1], [0, 0, 1, 1], [], []>} : vector<256x32xbf16>, vector<32x64xbf16>, vector<256x64xf32> -> vector<256x64xf32>
    %27 = arith.mulf %26, %6 : vector<256x64xf32>
    %28 = arith.truncf %27 : vector<256x64xf32> to vector<256x64xbf16>
    %cst_22 = arith.constant dense<0.000000e+00> : vector<32x256xf32>
    %29 = tpu.matmul %18, %25, %cst_22 {dimension_numbers = #tpu.dot_dimension_numbers<[1], [1], [0], [0], [0, 0, 1, 0], [], []>} : vector<32x64xbf16>, vector<256x64xbf16>, vector<32x256xf32> -> vector<32x256xf32>
    %30 = arith.addf %29, %8 : vector<32x256xf32>
    %cst_23 = arith.constant dense<0xFF800000> : vector<32xf32>
    %31 = vector.multi_reduction <maximumf>, %30, %cst_23 [1] : vector<32x256xf32> to vector<32xf32>
    %32 = vector.shape_cast %31 : vector<32xf32> to vector<32x1xf32>
    %33 = vector.broadcast %32 : vector<32x1xf32> to vector<32x256xf32>
    %34 = arith.subf %30, %33 : vector<32x256xf32>
    %35 = math.exp %34 : vector<32x256xf32>
    %36 = arith.truncf %35 : vector<32x256xf32> to vector<32x256xbf16>
    %cst_24 = arith.constant dense<0.000000e+00> : vector<32x64xf32>
    %37 = tpu.matmul %36, %28, %cst_24 {dimension_numbers = #tpu.dot_dimension_numbers<[1], [0], [0], [1], [0, 0, 1, 1], [], []>} : vector<32x256xbf16>, vector<256x64xbf16>, vector<32x64xf32> -> vector<32x64xf32>
    %cst_25 = arith.constant dense<0.000000e+00> : vector<32x64xf32>
    %38 = tpu.matmul %36, %7, %cst_25 {dimension_numbers = #tpu.dot_dimension_numbers<[1], [0], [0], [1], [0, 0, 1, 1], [], []>} : vector<32x256xbf16>, vector<256x64xbf16>, vector<32x64xf32> -> vector<32x64xf32>
    %39 = tpu.reciprocal %38 {approx = true} : vector<32x64xf32> -> vector<32x64xf32>
    %40 = arith.mulf %37, %39 : vector<32x64xf32>
    %c0_26 = arith.constant 0 : index
    %c0_27 = arith.constant 0 : index
    %c0_28 = arith.constant 0 : index
    %41 = vector.load %arg12[%c0_26, %c0_27, %c0_28] : memref<2x7x128xf32, #tpu.memory_space<vmem>>, vector<1x7x128xf32>
    %42 = vector.shape_cast %41 : vector<1x7x128xf32> to vector<7x128xf32>
    %43 = vector.extract_strided_slice %42 {offsets = [0, 0], sizes = [1, 128], strides = [1, 1]} : vector<7x128xf32> to vector<1x128xf32>
    %44 = vector.extract_strided_slice %42 {offsets = [1, 0], sizes = [1, 64], strides = [1, 1]} : vector<7x128xf32> to vector<1x64xf32>
    %45 = vector.extract_strided_slice %42 {offsets = [2, 0], sizes = [1, 64], strides = [1, 1]} : vector<7x128xf32> to vector<1x64xf32>
    %46 = vector.extract_strided_slice %42 {offsets = [3, 0], sizes = [1, 64], strides = [1, 1]} : vector<7x128xf32> to vector<1x64xf32>
    %47 = vector.extract_strided_slice %42 {offsets = [4, 0], sizes = [1, 64], strides = [1, 1]} : vector<7x128xf32> to vector<1x64xf32>
    %48 = vector.extract_strided_slice %42 {offsets = [5, 0], sizes = [1, 64], strides = [1, 1]} : vector<7x128xf32> to vector<1x64xf32>
    %49 = vector.extract_strided_slice %42 {offsets = [6, 0], sizes = [1, 64], strides = [1, 1]} : vector<7x128xf32> to vector<1x64xf32>
    %50 = arith.truncf %40 : vector<32x64xf32> to vector<32x64xbf16>
    %c0_29 = arith.constant 0 : index
    %c0_30 = arith.constant 0 : index
    %c0_31 = arith.constant 0 : index
    %51 = vector.load %arg9[%c0_29, %c0_30, %c0_31] : memref<2x64x64xbf16, #tpu.memory_space<vmem>>, vector<1x64x64xbf16>
    %52 = vector.shape_cast %51 : vector<1x64x64xbf16> to vector<64x64xbf16>
    %cst_32 = arith.constant dense<0.000000e+00> : vector<32x64xf32>
    %53 = tpu.matmul %50, %52, %cst_32 {dimension_numbers = #tpu.dot_dimension_numbers<[1], [0], [0], [1], [0, 0, 1, 1], [], []>} : vector<32x64xbf16>, vector<64x64xbf16>, vector<32x64xf32> -> vector<32x64xf32>
    %54 = vector.broadcast %44 : vector<1x64xf32> to vector<32x64xf32>
    %55 = arith.addf %53, %54 : vector<32x64xf32>
    %56 = arith.addf %4, %55 : vector<32x64xf32>
    %cst_33 = arith.constant dense<0.000000e+00> : vector<32xf32>
    %57 = vector.multi_reduction <add>, %56, %cst_33 [1] : vector<32x64xf32> to vector<32xf32>
    %58 = vector.shape_cast %57 : vector<32xf32> to vector<32x1xf32>
    %cst_34 = arith.constant 6.400000e+01 : f32
    %59 = vector.broadcast %cst_34 : f32 to vector<32x1xf32>
    %60 = arith.divf %58, %59 : vector<32x1xf32>
    %61 = vector.broadcast %60 : vector<32x1xf32> to vector<32x64xf32>
    %62 = arith.subf %56, %61 : vector<32x64xf32>
    %63 = arith.mulf %62, %62 : vector<32x64xf32>
    %cst_35 = arith.constant dense<0.000000e+00> : vector<32xf32>
    %64 = vector.multi_reduction <add>, %63, %cst_35 [1] : vector<32x64xf32> to vector<32xf32>
    %65 = vector.shape_cast %64 : vector<32xf32> to vector<32x1xf32>
    %cst_36 = arith.constant 6.400000e+01 : f32
    %66 = vector.broadcast %cst_36 : f32 to vector<32x1xf32>
    %67 = arith.divf %65, %66 : vector<32x1xf32>
    %68 = vector.broadcast %60 : vector<32x1xf32> to vector<32x64xf32>
    %69 = arith.subf %56, %68 : vector<32x64xf32>
    %cst_37 = arith.constant 9.99999974E-6 : f32
    %70 = vector.broadcast %cst_37 : f32 to vector<32x1xf32>
    %71 = arith.addf %67, %70 : vector<32x1xf32>
    %72 = math.rsqrt %71 : vector<32x1xf32>
    %73 = vector.broadcast %72 : vector<32x1xf32> to vector<32x64xf32>
    %74 = arith.mulf %69, %73 : vector<32x64xf32>
    %75 = vector.broadcast %45 : vector<1x64xf32> to vector<32x64xf32>
    %76 = arith.mulf %74, %75 : vector<32x64xf32>
    %77 = vector.broadcast %46 : vector<1x64xf32> to vector<32x64xf32>
    %78 = arith.addf %76, %77 : vector<32x64xf32>
    %79 = arith.truncf %78 : vector<32x64xf32> to vector<32x64xbf16>
    %c0_38 = arith.constant 0 : index
    %c0_39 = arith.constant 0 : index
    %c0_40 = arith.constant 0 : index
    %80 = vector.load %arg10[%c0_38, %c0_39, %c0_40] : memref<2x64x128xbf16, #tpu.memory_space<vmem>>, vector<1x64x128xbf16>
    %81 = vector.shape_cast %80 : vector<1x64x128xbf16> to vector<64x128xbf16>
    %cst_41 = arith.constant dense<0.000000e+00> : vector<32x128xf32>
    %82 = tpu.matmul %79, %81, %cst_41 {dimension_numbers = #tpu.dot_dimension_numbers<[1], [0], [0], [1], [0, 0, 1, 1], [], []>} : vector<32x64xbf16>, vector<64x128xbf16>, vector<32x128xf32> -> vector<32x128xf32>
    %83 = vector.broadcast %43 : vector<1x128xf32> to vector<32x128xf32>
    %84 = arith.addf %82, %83 : vector<32x128xf32>
    %cst_42 = arith.constant 0.000000e+00 : f32
    %85 = vector.broadcast %cst_42 : f32 to vector<32x128xf32>
    %86 = arith.maximumf %84, %85 : vector<32x128xf32>
    %87 = arith.truncf %86 : vector<32x128xf32> to vector<32x128xbf16>
    %c0_43 = arith.constant 0 : index
    %c0_44 = arith.constant 0 : index
    %c0_45 = arith.constant 0 : index
    %88 = vector.load %arg11[%c0_43, %c0_44, %c0_45] : memref<2x128x64xbf16, #tpu.memory_space<vmem>>, vector<1x128x64xbf16>
    %89 = vector.shape_cast %88 : vector<1x128x64xbf16> to vector<128x64xbf16>
    %cst_46 = arith.constant dense<0.000000e+00> : vector<32x64xf32>
    %90 = tpu.matmul %87, %89, %cst_46 {dimension_numbers = #tpu.dot_dimension_numbers<[1], [0], [0], [1], [0, 0, 1, 1], [], []>} : vector<32x128xbf16>, vector<128x64xbf16>, vector<32x64xf32> -> vector<32x64xf32>
    %91 = vector.broadcast %47 : vector<1x64xf32> to vector<32x64xf32>
    %92 = arith.addf %90, %91 : vector<32x64xf32>
    %93 = arith.addf %78, %92 : vector<32x64xf32>
    %cst_47 = arith.constant dense<0.000000e+00> : vector<32xf32>
    %94 = vector.multi_reduction <add>, %93, %cst_47 [1] : vector<32x64xf32> to vector<32xf32>
    %95 = vector.shape_cast %94 : vector<32xf32> to vector<32x1xf32>
    %cst_48 = arith.constant 6.400000e+01 : f32
    %96 = vector.broadcast %cst_48 : f32 to vector<32x1xf32>
    %97 = arith.divf %95, %96 : vector<32x1xf32>
    %98 = vector.broadcast %97 : vector<32x1xf32> to vector<32x64xf32>
    %99 = arith.subf %93, %98 : vector<32x64xf32>
    %100 = arith.mulf %99, %99 : vector<32x64xf32>
    %cst_49 = arith.constant dense<0.000000e+00> : vector<32xf32>
    %101 = vector.multi_reduction <add>, %100, %cst_49 [1] : vector<32x64xf32> to vector<32xf32>
    %102 = vector.shape_cast %101 : vector<32xf32> to vector<32x1xf32>
    %cst_50 = arith.constant 6.400000e+01 : f32
    %103 = vector.broadcast %cst_50 : f32 to vector<32x1xf32>
    %104 = arith.divf %102, %103 : vector<32x1xf32>
    %105 = vector.broadcast %97 : vector<32x1xf32> to vector<32x64xf32>
    %106 = arith.subf %93, %105 : vector<32x64xf32>
    %cst_51 = arith.constant 9.99999974E-6 : f32
    %107 = vector.broadcast %cst_51 : f32 to vector<32x1xf32>
    %108 = arith.addf %104, %107 : vector<32x1xf32>
    %109 = math.rsqrt %108 : vector<32x1xf32>
    %110 = vector.broadcast %109 : vector<32x1xf32> to vector<32x64xf32>
    %111 = arith.mulf %106, %110 : vector<32x64xf32>
    %112 = vector.broadcast %48 : vector<1x64xf32> to vector<32x64xf32>
    %113 = arith.mulf %111, %112 : vector<32x64xf32>
    %114 = vector.broadcast %49 : vector<1x64xf32> to vector<32x64xf32>
    %115 = arith.addf %113, %114 : vector<32x64xf32>
    %116 = arith.truncf %115 : vector<32x64xf32> to vector<32x64xbf16>
    %c1 = arith.constant 1 : index
    %c0_52 = arith.constant 0 : index
    %c0_53 = arith.constant 0 : index
    %117 = vector.load %arg7[%c1, %c0_52, %c0_53] : memref<2x64x384xbf16, #tpu.memory_space<vmem>>, vector<1x64x384xbf16>
    %118 = vector.shape_cast %117 : vector<1x64x384xbf16> to vector<64x384xbf16>
    %cst_54 = arith.constant dense<0.000000e+00> : vector<32x384xf32>
    %119 = tpu.matmul %116, %118, %cst_54 {dimension_numbers = #tpu.dot_dimension_numbers<[1], [0], [0], [1], [0, 0, 1, 1], [], []>} : vector<32x64xbf16>, vector<64x384xbf16>, vector<32x384xf32> -> vector<32x384xf32>
    %c1_55 = arith.constant 1 : index
    %c0_56 = arith.constant 0 : index
    %c0_57 = arith.constant 0 : index
    %120 = vector.load %arg8[%c1_55, %c0_56, %c0_57] : memref<2x1x384xf32, #tpu.memory_space<vmem>>, vector<1x1x384xf32>
    %121 = vector.shape_cast %120 : vector<1x1x384xf32> to vector<1x384xf32>
    %122 = vector.broadcast %121 : vector<1x384xf32> to vector<32x384xf32>
    %123 = arith.addf %119, %122 : vector<32x384xf32>
    %124 = vector.extract_strided_slice %123 {offsets = [0, 0], sizes = [32, 64], strides = [1, 1]} : vector<32x384xf32> to vector<32x64xf32>
    %125 = arith.truncf %124 : vector<32x64xf32> to vector<32x64xbf16>
    %126 = vector.extract_strided_slice %123 {offsets = [0, 128], sizes = [32, 64], strides = [1, 1]} : vector<32x384xf32> to vector<32x64xf32>
    %127 = arith.truncf %126 : vector<32x64xf32> to vector<32x64xbf16>
    %128 = vector.extract_strided_slice %123 {offsets = [0, 256], sizes = [32, 64], strides = [1, 1]} : vector<32x384xf32> to vector<32x64xf32>
    %129 = arith.truncf %128 : vector<32x64xf32> to vector<32x64xbf16>
    %cst_58 = arith.constant dense<0.000000e+00> : vector<256x64xf32>
    %130 = tpu.matmul %5, %127, %cst_58 {dimension_numbers = #tpu.dot_dimension_numbers<[1], [0], [0], [1], [0, 0, 1, 1], [], []>} : vector<256x32xbf16>, vector<32x64xbf16>, vector<256x64xf32> -> vector<256x64xf32>
    %131 = arith.mulf %130, %6 : vector<256x64xf32>
    %132 = arith.truncf %131 : vector<256x64xf32> to vector<256x64xbf16>
    %cst_59 = arith.constant dense<0.000000e+00> : vector<256x64xf32>
    %133 = tpu.matmul %5, %129, %cst_59 {dimension_numbers = #tpu.dot_dimension_numbers<[1], [0], [0], [1], [0, 0, 1, 1], [], []>} : vector<256x32xbf16>, vector<32x64xbf16>, vector<256x64xf32> -> vector<256x64xf32>
    %134 = arith.mulf %133, %6 : vector<256x64xf32>
    %135 = arith.truncf %134 : vector<256x64xf32> to vector<256x64xbf16>
    %cst_60 = arith.constant dense<0.000000e+00> : vector<32x256xf32>
    %136 = tpu.matmul %125, %132, %cst_60 {dimension_numbers = #tpu.dot_dimension_numbers<[1], [1], [0], [0], [0, 0, 1, 0], [], []>} : vector<32x64xbf16>, vector<256x64xbf16>, vector<32x256xf32> -> vector<32x256xf32>
    %137 = arith.addf %136, %8 : vector<32x256xf32>
    %cst_61 = arith.constant dense<0xFF800000> : vector<32xf32>
    %138 = vector.multi_reduction <maximumf>, %137, %cst_61 [1] : vector<32x256xf32> to vector<32xf32>
    %139 = vector.shape_cast %138 : vector<32xf32> to vector<32x1xf32>
    %140 = vector.broadcast %139 : vector<32x1xf32> to vector<32x256xf32>
    %141 = arith.subf %137, %140 : vector<32x256xf32>
    %142 = math.exp %141 : vector<32x256xf32>
    %143 = arith.truncf %142 : vector<32x256xf32> to vector<32x256xbf16>
    %cst_62 = arith.constant dense<0.000000e+00> : vector<32x64xf32>
    %144 = tpu.matmul %143, %135, %cst_62 {dimension_numbers = #tpu.dot_dimension_numbers<[1], [0], [0], [1], [0, 0, 1, 1], [], []>} : vector<32x256xbf16>, vector<256x64xbf16>, vector<32x64xf32> -> vector<32x64xf32>
    %cst_63 = arith.constant dense<0.000000e+00> : vector<32x64xf32>
    %145 = tpu.matmul %143, %7, %cst_63 {dimension_numbers = #tpu.dot_dimension_numbers<[1], [0], [0], [1], [0, 0, 1, 1], [], []>} : vector<32x256xbf16>, vector<256x64xbf16>, vector<32x64xf32> -> vector<32x64xf32>
    %146 = tpu.reciprocal %145 {approx = true} : vector<32x64xf32> -> vector<32x64xf32>
    %147 = arith.mulf %144, %146 : vector<32x64xf32>
    %c1_64 = arith.constant 1 : index
    %c0_65 = arith.constant 0 : index
    %c0_66 = arith.constant 0 : index
    %148 = vector.load %arg12[%c1_64, %c0_65, %c0_66] : memref<2x7x128xf32, #tpu.memory_space<vmem>>, vector<1x7x128xf32>
    %149 = vector.shape_cast %148 : vector<1x7x128xf32> to vector<7x128xf32>
    %150 = vector.extract_strided_slice %149 {offsets = [0, 0], sizes = [1, 128], strides = [1, 1]} : vector<7x128xf32> to vector<1x128xf32>
    %151 = vector.extract_strided_slice %149 {offsets = [1, 0], sizes = [1, 64], strides = [1, 1]} : vector<7x128xf32> to vector<1x64xf32>
    %152 = vector.extract_strided_slice %149 {offsets = [2, 0], sizes = [1, 64], strides = [1, 1]} : vector<7x128xf32> to vector<1x64xf32>
    %153 = vector.extract_strided_slice %149 {offsets = [3, 0], sizes = [1, 64], strides = [1, 1]} : vector<7x128xf32> to vector<1x64xf32>
    %154 = vector.extract_strided_slice %149 {offsets = [4, 0], sizes = [1, 64], strides = [1, 1]} : vector<7x128xf32> to vector<1x64xf32>
    %155 = vector.extract_strided_slice %149 {offsets = [5, 0], sizes = [1, 64], strides = [1, 1]} : vector<7x128xf32> to vector<1x64xf32>
    %156 = vector.extract_strided_slice %149 {offsets = [6, 0], sizes = [1, 64], strides = [1, 1]} : vector<7x128xf32> to vector<1x64xf32>
    %157 = arith.truncf %147 : vector<32x64xf32> to vector<32x64xbf16>
    %c1_67 = arith.constant 1 : index
    %c0_68 = arith.constant 0 : index
    %c0_69 = arith.constant 0 : index
    %158 = vector.load %arg9[%c1_67, %c0_68, %c0_69] : memref<2x64x64xbf16, #tpu.memory_space<vmem>>, vector<1x64x64xbf16>
    %159 = vector.shape_cast %158 : vector<1x64x64xbf16> to vector<64x64xbf16>
    %cst_70 = arith.constant dense<0.000000e+00> : vector<32x64xf32>
    %160 = tpu.matmul %157, %159, %cst_70 {dimension_numbers = #tpu.dot_dimension_numbers<[1], [0], [0], [1], [0, 0, 1, 1], [], []>} : vector<32x64xbf16>, vector<64x64xbf16>, vector<32x64xf32> -> vector<32x64xf32>
    %161 = vector.broadcast %151 : vector<1x64xf32> to vector<32x64xf32>
    %162 = arith.addf %160, %161 : vector<32x64xf32>
    %163 = arith.addf %115, %162 : vector<32x64xf32>
    %cst_71 = arith.constant dense<0.000000e+00> : vector<32xf32>
    %164 = vector.multi_reduction <add>, %163, %cst_71 [1] : vector<32x64xf32> to vector<32xf32>
    %165 = vector.shape_cast %164 : vector<32xf32> to vector<32x1xf32>
    %cst_72 = arith.constant 6.400000e+01 : f32
    %166 = vector.broadcast %cst_72 : f32 to vector<32x1xf32>
    %167 = arith.divf %165, %166 : vector<32x1xf32>
    %168 = vector.broadcast %167 : vector<32x1xf32> to vector<32x64xf32>
    %169 = arith.subf %163, %168 : vector<32x64xf32>
    %170 = arith.mulf %169, %169 : vector<32x64xf32>
    %cst_73 = arith.constant dense<0.000000e+00> : vector<32xf32>
    %171 = vector.multi_reduction <add>, %170, %cst_73 [1] : vector<32x64xf32> to vector<32xf32>
    %172 = vector.shape_cast %171 : vector<32xf32> to vector<32x1xf32>
    %cst_74 = arith.constant 6.400000e+01 : f32
    %173 = vector.broadcast %cst_74 : f32 to vector<32x1xf32>
    %174 = arith.divf %172, %173 : vector<32x1xf32>
    %175 = vector.broadcast %167 : vector<32x1xf32> to vector<32x64xf32>
    %176 = arith.subf %163, %175 : vector<32x64xf32>
    %cst_75 = arith.constant 9.99999974E-6 : f32
    %177 = vector.broadcast %cst_75 : f32 to vector<32x1xf32>
    %178 = arith.addf %174, %177 : vector<32x1xf32>
    %179 = math.rsqrt %178 : vector<32x1xf32>
    %180 = vector.broadcast %179 : vector<32x1xf32> to vector<32x64xf32>
    %181 = arith.mulf %176, %180 : vector<32x64xf32>
    %182 = vector.broadcast %152 : vector<1x64xf32> to vector<32x64xf32>
    %183 = arith.mulf %181, %182 : vector<32x64xf32>
    %184 = vector.broadcast %153 : vector<1x64xf32> to vector<32x64xf32>
    %185 = arith.addf %183, %184 : vector<32x64xf32>
    %186 = arith.truncf %185 : vector<32x64xf32> to vector<32x64xbf16>
    %c1_76 = arith.constant 1 : index
    %c0_77 = arith.constant 0 : index
    %c0_78 = arith.constant 0 : index
    %187 = vector.load %arg10[%c1_76, %c0_77, %c0_78] : memref<2x64x128xbf16, #tpu.memory_space<vmem>>, vector<1x64x128xbf16>
    %188 = vector.shape_cast %187 : vector<1x64x128xbf16> to vector<64x128xbf16>
    %cst_79 = arith.constant dense<0.000000e+00> : vector<32x128xf32>
    %189 = tpu.matmul %186, %188, %cst_79 {dimension_numbers = #tpu.dot_dimension_numbers<[1], [0], [0], [1], [0, 0, 1, 1], [], []>} : vector<32x64xbf16>, vector<64x128xbf16>, vector<32x128xf32> -> vector<32x128xf32>
    %190 = vector.broadcast %150 : vector<1x128xf32> to vector<32x128xf32>
    %191 = arith.addf %189, %190 : vector<32x128xf32>
    %cst_80 = arith.constant 0.000000e+00 : f32
    %192 = vector.broadcast %cst_80 : f32 to vector<32x128xf32>
    %193 = arith.maximumf %191, %192 : vector<32x128xf32>
    %194 = arith.truncf %193 : vector<32x128xf32> to vector<32x128xbf16>
    %c1_81 = arith.constant 1 : index
    %c0_82 = arith.constant 0 : index
    %c0_83 = arith.constant 0 : index
    %195 = vector.load %arg11[%c1_81, %c0_82, %c0_83] : memref<2x128x64xbf16, #tpu.memory_space<vmem>>, vector<1x128x64xbf16>
    %196 = vector.shape_cast %195 : vector<1x128x64xbf16> to vector<128x64xbf16>
    %cst_84 = arith.constant dense<0.000000e+00> : vector<32x64xf32>
    %197 = tpu.matmul %194, %196, %cst_84 {dimension_numbers = #tpu.dot_dimension_numbers<[1], [0], [0], [1], [0, 0, 1, 1], [], []>} : vector<32x128xbf16>, vector<128x64xbf16>, vector<32x64xf32> -> vector<32x64xf32>
    %198 = vector.broadcast %154 : vector<1x64xf32> to vector<32x64xf32>
    %199 = arith.addf %197, %198 : vector<32x64xf32>
    %200 = arith.addf %185, %199 : vector<32x64xf32>
    %cst_85 = arith.constant dense<0.000000e+00> : vector<32xf32>
    %201 = vector.multi_reduction <add>, %200, %cst_85 [1] : vector<32x64xf32> to vector<32xf32>
    %202 = vector.shape_cast %201 : vector<32xf32> to vector<32x1xf32>
    %cst_86 = arith.constant 6.400000e+01 : f32
    %203 = vector.broadcast %cst_86 : f32 to vector<32x1xf32>
    %204 = arith.divf %202, %203 : vector<32x1xf32>
    %205 = vector.broadcast %204 : vector<32x1xf32> to vector<32x64xf32>
    %206 = arith.subf %200, %205 : vector<32x64xf32>
    %207 = arith.mulf %206, %206 : vector<32x64xf32>
    %cst_87 = arith.constant dense<0.000000e+00> : vector<32xf32>
    %208 = vector.multi_reduction <add>, %207, %cst_87 [1] : vector<32x64xf32> to vector<32xf32>
    %209 = vector.shape_cast %208 : vector<32xf32> to vector<32x1xf32>
    %cst_88 = arith.constant 6.400000e+01 : f32
    %210 = vector.broadcast %cst_88 : f32 to vector<32x1xf32>
    %211 = arith.divf %209, %210 : vector<32x1xf32>
    %212 = vector.broadcast %204 : vector<32x1xf32> to vector<32x64xf32>
    %213 = arith.subf %200, %212 : vector<32x64xf32>
    %cst_89 = arith.constant 9.99999974E-6 : f32
    %214 = vector.broadcast %cst_89 : f32 to vector<32x1xf32>
    %215 = arith.addf %211, %214 : vector<32x1xf32>
    %216 = math.rsqrt %215 : vector<32x1xf32>
    %217 = vector.broadcast %216 : vector<32x1xf32> to vector<32x64xf32>
    %218 = arith.mulf %213, %217 : vector<32x64xf32>
    %219 = vector.broadcast %155 : vector<1x64xf32> to vector<32x64xf32>
    %220 = arith.mulf %218, %219 : vector<32x64xf32>
    %221 = vector.broadcast %156 : vector<1x64xf32> to vector<32x64xf32>
    %222 = arith.addf %220, %221 : vector<32x64xf32>
    %c0_90 = arith.constant 0 : index
    %c0_91 = arith.constant 0 : index
    %223 = vector.load %arg13[%c0_90, %c0_91] : memref<32x64xf32, #tpu.memory_space<vmem>>, vector<32x64xf32>
    tpu.vector_store %arg13[%c0_90, %c0_91], %222 {strides = array<i32>} : memref<32x64xf32, #tpu.memory_space<vmem>>, vector<32x64xf32>,
    return
  }
}

</mosaic_0001>

<llo_original>
// kernel: tpu_custom_call.1
$region0: #{tpu_custom_call.1}
  #allocation0 [shape = 'u32[]', space=smem, size = 0x4, offset = 0x4, fixed_abs, tag = 'smem constant byte address 0x4 - core index']
  #allocation1 [shape = 'u32[144,128]{1,0:T(1,128)}', space=vmem, size = 0x12000, scoped, tag = 'internal scratch']
  %s0 = inlined_call_operand.vmem [shape: bf16[32,8], index: 0, kind: input, shape index: {}]
  %s1 = inlined_call_operand.vmem [shape: bf16[8,64], index: 1, kind: input, shape index: {}]
  %s2 = inlined_call_operand.vmem [shape: f32[32,64], index: 2, kind: input, shape index: {}]
  %s3 = inlined_call_operand.vmem [shape: bf16[256,32], index: 3, kind: input, shape index: {}]
  %s4 = inlined_call_operand.vmem [shape: f32[256,64], index: 4, kind: input, shape index: {}]
  %s5 = inlined_call_operand.vmem [shape: bf16[256,64], index: 5, kind: input, shape index: {}]
  %s6 = inlined_call_operand.vmem [shape: f32[32,256], index: 6, kind: input, shape index: {}]
  %s7 = inlined_call_operand.vmem [shape: bf16[2,64,384], index: 7, kind: input, shape index: {}]
  %s8 = inlined_call_operand.vmem [shape: f32[2,1,384], index: 8, kind: input, shape index: {}]
  %s9 = inlined_call_operand.vmem [shape: bf16[2,64,64], index: 9, kind: input, shape index: {}]
  %s10 = inlined_call_operand.vmem [shape: bf16[2,64,128], index: 10, kind: input, shape index: {}]
  %s11 = inlined_call_operand.vmem [shape: bf16[2,128,64], index: 11, kind: input, shape index: {}]
  %s12 = inlined_call_operand.vmem [shape: f32[2,7,128], index: 12, kind: input, shape index: {}]
  %s13 = inlined_call_operand.hbm [shape: f32[32,64], index: 13, kind: output, shape index: {}]
  %s14 = sld [smem:[#allocation0]]
  $region62: #{tpu_custom_call.1} parent=0
    _
  %s16 = ssub.s32 1, %s14
  %s17 = scalar_select 0, %s16, %s14
  $region1: #{tpu_custom_call.1} parent=0
    #allocation2 [shape = 'u8[16384]{0}', space=vmem, size = 0x4000, scoped, tag = 'output window, operand 0, single buffered']
    #allocation3 [shape = 's32[1]{0}', space=sflag, size = 0x4, scoped, tag = 'scoped memory for tpu_custom_call.1']
    %18 = vsyncpa [#allocation3], 0
    // Predicated region
    $region2: #{tpu_custom_call.1} parent=1 // pred_check
      _
    $region3: #{tpu_custom_call.1} parent=1 // pred_check_branch
      %20 = sbr.rel (0) target = $region5
    $region4: #{tpu_custom_call.1} parent=1 // pred_region
      _
    $region5: #{tpu_custom_call.1} parent=1 // pred_fallthru
      _
    // Predicated region
    $region6: #{tpu_custom_call.1} parent=1 // pred_check
      _
    $region7: #{tpu_custom_call.1} parent=1 // pred_check_branch
      %22 = sbr.rel (0) target = $region9
    $region8: #{tpu_custom_call.1} parent=1 // pred_region
      _
    $region9: #{tpu_custom_call.1} parent=1 // pred_fallthru
      _
    // Predicated region
    $region10: #{tpu_custom_call.1} parent=1 // pred_check
      _
    $region11: #{tpu_custom_call.1} parent=1 // pred_check_branch
      %24 = sbr.rel (0) target = $region13
    $region12: #{tpu_custom_call.1} parent=1 // pred_region
      _
    $region13: #{tpu_custom_call.1} parent=1 // pred_fallthru
      _
    // Predicated region
    $region14: #{tpu_custom_call.1} parent=1 // pred_check
      _
    $region15: #{tpu_custom_call.1} parent=1 // pred_check_branch
      %26 = sbr.rel (0) target = $region17
    $region16: #{tpu_custom_call.1} parent=1 // pred_region
      _
    $region17: #{tpu_custom_call.1} parent=1 // pred_fallthru
      _
    // Predicated region
    $region18: #{tpu_custom_call.1} parent=1 // pred_check
      _
    $region19: #{tpu_custom_call.1} parent=1 // pred_check_branch
      %28 = sbr.rel (0) target = $region21
    $region20: #{tpu_custom_call.1} parent=1 // pred_region
      _
    $region21: #{tpu_custom_call.1} parent=1 // pred_fallthru
      _
    // Predicated region
    $region22: #{tpu_custom_call.1} parent=1 // pred_check
      _
    $region23: #{tpu_custom_call.1} parent=1 // pred_check_branch
      %30 = sbr.rel (0) target = $region25
    $region24: #{tpu_custom_call.1} parent=1 // pred_region
      _
    $region25: #{tpu_custom_call.1} parent=1 // pred_fallthru
      _
    // Predicated region
    $region26: #{tpu_custom_call.1} parent=1 // pred_check
      _
    $region27: #{tpu_custom_call.1} parent=1 // pred_check_branch
      %32 = sbr.rel (0) target = $region29
    $region28: #{tpu_custom_call.1} parent=1 // pred_region
      _
    $region29: #{tpu_custom_call.1} parent=1 // pred_fallthru
      _
    // Predicated region
    $region30: #{tpu_custom_call.1} parent=1 // pred_check
      _
    $region31: #{tpu_custom_call.1} parent=1 // pred_check_branch
      %34 = sbr.rel (0) target = $region33
    $region32: #{tpu_custom_call.1} parent=1 // pred_region
      _
    $region33: #{tpu_custom_call.1} parent=1 // pred_fallthru
      _
    // Predicated region
    $region34: #{tpu_custom_call.1} parent=1 // pred_check
      _
    $region35: #{tpu_custom_call.1} parent=1 // pred_check_branch
      %36 = sbr.rel (0) target = $region37
    $region36: #{tpu_custom_call.1} parent=1 // pred_region
      _
    $region37: #{tpu_custom_call.1} parent=1 // pred_fallthru
      _
    // Predicated region
    $region38: #{tpu_custom_call.1} parent=1 // pred_check
      _
    $region39: #{tpu_custom_call.1} parent=1 // pred_check_branch
      %38 = sbr.rel (0) target = $region41
    $region40: #{tpu_custom_call.1} parent=1 // pred_region
      _
    $region41: #{tpu_custom_call.1} parent=1 // pred_fallthru
      _
    // Predicated region
    $region42: #{tpu_custom_call.1} parent=1 // pred_check
      _
    $region43: #{tpu_custom_call.1} parent=1 // pred_check_branch
      %40 = sbr.rel (0) target = $region45
    $region44: #{tpu_custom_call.1} parent=1 // pred_region
      _
    $region45: #{tpu_custom_call.1} parent=1 // pred_fallthru
      _
    // Predicated region
    $region46: #{tpu_custom_call.1} parent=1 // pred_check
      _
    $region47: #{tpu_custom_call.1} parent=1 // pred_check_branch
      %42 = sbr.rel (0) target = $region49
    $region48: #{tpu_custom_call.1} parent=1 // pred_region
      _
    $region49: #{tpu_custom_call.1} parent=1 // pred_fallthru
      _
    // Predicated region
    $region50: #{tpu_custom_call.1} parent=1 // pred_check
      _
    $region51: #{tpu_custom_call.1} parent=1 // pred_check_branch
      %44 = sbr.rel (0) target = $region53
    $region52: #{tpu_custom_call.1} parent=1 // pred_region
      _
    $region53: #{tpu_custom_call.1} parent=1 // pred_fallthru
      _
    %v46 = vld [vmem:[%s0] sm:$0xf]
    %v47 = vld [vmem:[%s0 + $0x4] sm:$0xf]
    %v48 = vld [vmem:[%s0 + $0x8] sm:$0xf]
    %v49 = vld [vmem:[%s0 + $0xc] sm:$0xf]
    %v50 = vld [vmem:[%s1] sm:$0xf]
    %v51 = vld [vmem:[%s2] sm:$0xff]
    %v52 = vld [vmem:[%s2 + $0x8] sm:$0xff]
    %v53 = vld [vmem:[%s2 + $0x10] sm:$0xff]
    %v54 = vld [vmem:[%s2 + $0x18] sm:$0xff]
    %v59 = vunpack.c.l.b16 %v46
    %v60 = vunpack.c.l.b16 %v47
    %v61 = vunpack.c.l.b16 %v48
    %v62 = vunpack.c.l.b16 %v49
    %v63 = vpack.c.b16 %v60, %v59
    %v64 = vpack.c.b16 %v62, %v61
    %vm65 = vcmask 64512
    %v67 = vsel %vm65, %v63, 0
    %v70 = vsel %vm65, %v64, 0
    %vm72 = vcmask 1043456
    %v74 = vsel %vm72, %v50, 0
    %76 = vmatprep.subr.bf16.mxu0 0
    %77 = vmatpush1.bf16.msra.mxu0 %v74
    %78 = vmatprep.subr.bf16.mxu0 0
    %79 = vmatpush1.bf16.msra.mxu0 0
    %80 = vmatprep.subr.bf16.mxu0 0
    %81 = vmatpush1.bf16.msra.mxu0 0
    %82 = vmatprep.subr.bf16.mxu0 0
    %83 = vmatpush1.bf16.msra.mxu0 0
    %84 = vmatprep.subr.bf16.mxu0 0
    %85 = vmatpush1.bf16.msra.mxu0 0
    %86 = vmatprep.subr.bf16.mxu0 0
    %87 = vmatpush1.bf16.msra.mxu0 0
    %88 = vmatprep.subr.bf16.mxu0 0
    %89 = vmatpush1.bf16.msra.mxu0 0
    %90 = vmatprep.subr.bf16.mxu0 0
    %91 = vmatpush1.bf16.msra.mxu0 0
    %92 = vmatprep.subr.bf16.mxu0 0
    %93 = vmatpush1.bf16.msra.mxu0 0
    %94 = vmatprep.subr.bf16.mxu0 0
    %95 = vmatpush1.bf16.msra.mxu0 0
    %96 = vmatprep.subr.bf16.mxu0 0
    %97 = vmatpush1.bf16.msra.mxu0 0
    %98 = vmatprep.subr.bf16.mxu0 0
    %99 = vmatpush1.bf16.msra.mxu0 0
    %100 = vmatprep.subr.bf16.mxu0 0
    %101 = vmatpush1.bf16.msra.mxu0 0
    %102 = vmatprep.subr.bf16.mxu0 0
    %103 = vmatpush1.bf16.msra.mxu0 0
    %104 = vmatprep.subr.bf16.mxu0 0
    %105 = vmatpush1.bf16.msra.mxu0 0
    %106 = vmatprep.subr.bf16.mxu0 0
    %107 = vmatpush1.bf16.msra.mxu0 0
    %108 = vmatprep.mubr.bf16.mxu0 0
    %109 = vmatmul.mubr.bf16.gmra.mrb[0].mxu0 %v67
    %v110 = vpop.f32.mrb[0].mxu0
    %v111 = vadd.f32 %v51, %v110
    %v112 = vpop.f32.mrb[0].mxu0
    %v113 = vpop.f32.mrb[0].mxu0
    %v114 = vadd.f32 %v52, %v113
    %v115 = vpop.f32.mrb[0].mxu0
    %116 = vmatprep.mubr.bf16.mxu0 0
    %117 = vmatmul.mubr.bf16.gmra.mrb[0].mxu0 %v70
    %v118 = vpop.f32.mrb[0].mxu0
    %v119 = vadd.f32 %v53, %v118
    %v120 = vpop.f32.mrb[0].mxu0
    %v121 = vpop.f32.mrb[0].mxu0
    %v122 = vadd.f32 %v54, %v121
    %v123 = vpop.f32.mrb[0].mxu0
    %124 = vdwg.mxu0
    %v125 = vld [vmem:[%s3] sm:$0xf]
    %v126 = vld [vmem:[%s3 + $0x4] sm:$0xf]
    %v127 = vld [vmem:[%s3 + $0x8] sm:$0xf]
    %v128 = vld [vmem:[%s3 + $0xc] sm:$0xf]
    %v129 = vld [vmem:[%s3 + $0x10] sm:$0xf]
    %v130 = vld [vmem:[%s3 + $0x14] sm:$0xf]
    %v131 = vld [vmem:[%s3 + $0x18] sm:$0xf]
    %v132 = vld [vmem:[%s3 + $0x1c] sm:$0xf]
    %v133 = vld [vmem:[%s3 + $0x20] sm:$0xf]
    %v134 = vld [vmem:[%s3 + $0x24] sm:$0xf]
    %v135 = vld [vmem:[%s3 + $0x28] sm:$0xf]
    %v136 = vld [vmem:[%s3 + $0x2c] sm:$0xf]
    %v137 = vld [vmem:[%s3 + $0x30] sm:$0xf]
    %v138 = vld [vmem:[%s3 + $0x34] sm:$0xf]
    %v139 = vld [vmem:[%s3 + $0x38] sm:$0xf]
    %v140 = vld [vmem:[%s3 + $0x3c] sm:$0xf]
    %v141 = vld [vmem:[%s3 + $0x40] sm:$0xf]
    %v142 = vld [vmem:[%s3 + $0x44] sm:$0xf]
    %v143 = vld [vmem:[%s3 + $0x48] sm:$0xf]
    %v144 = vld [vmem:[%s3 + $0x4c] sm:$0xf]
    %v145 = vld [vmem:[%s3 + $0x50] sm:$0xf]
    %v146 = vld [vmem:[%s3 + $0x54] sm:$0xf]
    %v147 = vld [vmem:[%s3 + $0x58] sm:$0xf]
    %v148 = vld [vmem:[%s3 + $0x5c] sm:$0xf]
    %v149 = vld [vmem:[%s3 + $0x60] sm:$0xf]
    %v150 = vld [vmem:[%s3 + $0x64] sm:$0xf]
    %v151 = vld [vmem:[%s3 + $0x68] sm:$0xf]
    %v152 = vld [vmem:[%s3 + $0x6c] sm:$0xf]
    %v153 = vld [vmem:[%s3 + $0x70] sm:$0xf]
    %v154 = vld [vmem:[%s3 + $0x74] sm:$0xf]
    %v155 = vld [vmem:[%s3 + $0x78] sm:$0xf]
    %v156 = vld [vmem:[%s3 + $0x7c] sm:$0xf]
    %v157 = vld [vmem:[%s4] sm:$0xff]
    %v158 = vld [vmem:[%s4 + $0x8] sm:$0xff]
    %v159 = vld [vmem:[%s4 + $0x10] sm:$0xff]
    %v160 = vld [vmem:[%s4 + $0x18] sm:$0xff]
    %v161 = vld [vmem:[%s4 + $0x20] sm:$0xff]
    %v162 = vld [vmem:[%s4 + $0x28] sm:$0xff]
    %v163 = vld [vmem:[%s4 + $0x30] sm:$0xff]
    %v164 = vld [vmem:[%s4 + $0x38] sm:$0xff]
    %v165 = vld [vmem:[%s4 + $0x40] sm:$0xff]
    %v166 = vld [vmem:[%s4 + $0x48] sm:$0xff]
    %v167 = vld [vmem:[%s4 + $0x50] sm:$0xff]
    %v168 = vld [vmem:[%s4 + $0x58] sm:$0xff]
    %v169 = vld [vmem:[%s4 + $0x60] sm:$0xff]
    %v170 = vld [vmem:[%s4 + $0x68] sm:$0xff]
    %v171 = vld [vmem:[%s4 + $0x70] sm:$0xff]
    %v172 = vld [vmem:[%s4 + $0x78] sm:$0xff]
    %v173 = vld [vmem:[%s4 + $0x80] sm:$0xff]
    %v174 = vld [vmem:[%s4 + $0x88] sm:$0xff]
    %v175 = vld [vmem:[%s4 + $0x90] sm:$0xff]
    %v176 = vld [vmem:[%s4 + $0x98] sm:$0xff]
    %v177 = vld [vmem:[%s4 + $0xa0] sm:$0xff]
    %v178 = vld [vmem:[%s4 + $0xa8] sm:$0xff]
    %v179 = vld [vmem:[%s4 + $0xb0] sm:$0xff]
    %v180 = vld [vmem:[%s4 + $0xb8] sm:$0xff]
    %v181 = vld [vmem:[%s4 + $0xc0] sm:$0xff]
    %v182 = vld [vmem:[%s4 + $0xc8] sm:$0xff]
    %v183 = vld [vmem:[%s4 + $0xd0] sm:$0xff]
    %v184 = vld [vmem:[%s4 + $0xd8] sm:$0xff]
    %v185 = vld [vmem:[%s4 + $0xe0] sm:$0xff]
    %v186 = vld [vmem:[%s4 + $0xe8] sm:$0xff]
    %v187 = vld [vmem:[%s4 + $0xf0] sm:$0xff]
    %v188 = vld [vmem:[%s4 + $0xf8] sm:$0xff]
    %v189 = vld [vmem:[%s5] sm:$0xf]
    %v190 = vld [vmem:[%s5 + $0x4] sm:$0xf]
    %v191 = vld [vmem:[%s5 + $0x8] sm:$0xf]
    %v192 = vld [vmem:[%s5 + $0xc] sm:$0xf]
    %v193 = vld [vmem:[%s5 + $0x10] sm:$0xf]
    %v194 = vld [vmem:[%s5 + $0x14] sm:$0xf]
    %v195 = vld [vmem:[%s5 + $0x18] sm:$0xf]
    %v196 = vld [vmem:[%s5 + $0x1c] sm:$0xf]
    %v197 = vld [vmem:[%s5 + $0x20] sm:$0xf]
    %v198 = vld [vmem:[%s5 + $0x24] sm:$0xf]
    %v199 = vld [vmem:[%s5 + $0x28] sm:$0xf]
    %v200 = vld [vmem:[%s5 + $0x2c] sm:$0xf]
    %v201 = vld [vmem:[%s5 + $0x30] sm:$0xf]
    %v202 = vld [vmem:[%s5 + $0x34] sm:$0xf]
    %v203 = vld [vmem:[%s5 + $0x38] sm:$0xf]
    %v204 = vld [vmem:[%s5 + $0x3c] sm:$0xf]
    %v205 = vld [vmem:[%s5 + $0x40] sm:$0xf]
    %v206 = vld [vmem:[%s5 + $0x44] sm:$0xf]
    %v207 = vld [vmem:[%s5 + $0x48] sm:$0xf]
    %v208 = vld [vmem:[%s5 + $0x4c] sm:$0xf]
    %v209 = vld [vmem:[%s5 + $0x50] sm:$0xf]
    %v210 = vld [vmem:[%s5 + $0x54] sm:$0xf]
    %v211 = vld [vmem:[%s5 + $0x58] sm:$0xf]
    %v212 = vld [vmem:[%s5 + $0x5c] sm:$0xf]
    %v213 = vld [vmem:[%s5 + $0x60] sm:$0xf]
    %v214 = vld [vmem:[%s5 + $0x64] sm:$0xf]
    %v215 = vld [vmem:[%s5 + $0x68] sm:$0xf]
    %v216 = vld [vmem:[%s5 + $0x6c] sm:$0xf]
    %v217 = vld [vmem:[%s5 + $0x70] sm:$0xf]
    %v218 = vld [vmem:[%s5 + $0x74] sm:$0xf]
    %v219 = vld [vmem:[%s5 + $0x78] sm:$0xf]
    %v220 = vld [vmem:[%s5 + $0x7c] sm:$0xf]
    %v221 = vld [vmem:[%s6] sm:$0xff]
    %v222 = vld [vmem:[%s6 + $0x8] sm:$0xff]
    %v223 = vld [vmem:[%s6 + $0x10] sm:$0xff]
    %v224 = vld [vmem:[%s6 + $0x18] sm:$0xff]
    %v225 = vld [vmem:[%s6 + $0x20] sm:$0xff]
    %v226 = vld [vmem:[%s6 + $0x28] sm:$0xff]
    %v227 = vld [vmem:[%s6 + $0x30] sm:$0xff]
    %v228 = vld [vmem:[%s6 + $0x38] sm:$0xff]
    %v229 = vpack.c.bf16 %v114, %v111
    %v230 = vpack.c.bf16 %v122, %v119
    %v231 = vld [vmem:[%s7] sm:$0xff]
    %v232 = vld [vmem:[%s7 + $0x8] sm:$0xf]
    %v233 = vld [vmem:[%s7 + $0xc] sm:$0xff]
    %v234 = vld [vmem:[%s7 + $0x14] sm:$0xf]
    %v235 = vld [vmem:[%s7 + $0x18] sm:$0xff]
    %v236 = vld [vmem:[%s7 + $0x20] sm:$0xf]
    %v237 = vld [vmem:[%s7 + $0x24] sm:$0xff]
    %v238 = vld [vmem:[%s7 + $0x2c] sm:$0xf]
    %v239 = vld [vmem:[%s7 + $0x30] sm:$0xff]
    %v240 = vld [vmem:[%s7 + $0x38] sm:$0xf]
    %v241 = vld [vmem:[%s7 + $0x3c] sm:$0xff]
    %v242 = vld [vmem:[%s7 + $0x44] sm:$0xf]
    %v243 = vld [vmem:[%s7 + $0x48] sm:$0xff]
    %v244 = vld [vmem:[%s7 + $0x50] sm:$0xf]
    %v245 = vld [vmem:[%s7 + $0x54] sm:$0xff]
    %v246 = vld [vmem:[%s7 + $0x5c] sm:$0xf]
    %v247 = vld [vmem:[%s8] sm:$0x7]
    %v249 = vlaneseq
    %v250 = vshrl.u32 %v249, 7
    %v251 = vsub.s32 0, %v250
    %v252 = vrot.slane %v247, %v251
    %v253 = vlaneseq
    %v254 = vshrl.u32 %v253, 7
    %v255 = vsub.s32 1, %v254
    %v256 = vrot.slane %v247, %v255
    %v257 = vlaneseq
    %v258 = vshrl.u32 %v257, 7
    %v259 = vsub.s32 2, %v258
    %v260 = vrot.slane %v247, %v259
    %v280 = vunpack.c.l.b16 %v231
    %v281 = vunpack.c.h.b16 %v231
    %v282 = vunpack.c.l.b16 %v232
    %v283 = vunpack.c.l.b16 %v233
    %v284 = vunpack.c.h.b16 %v233
    %v285 = vunpack.c.l.b16 %v234
    %v286 = vunpack.c.l.b16 %v235
    %v287 = vunpack.c.h.b16 %v235
    %v288 = vunpack.c.l.b16 %v236
    %v289 = vunpack.c.l.b16 %v237
    %v290 = vunpack.c.h.b16 %v237
    %v291 = vunpack.c.l.b16 %v238
    %v292 = vunpack.c.l.b16 %v239
    %v293 = vunpack.c.h.b16 %v239
    %v294 = vunpack.c.l.b16 %v240
    %v295 = vunpack.c.l.b16 %v241
    %v296 = vunpack.c.h.b16 %v241
    %v297 = vunpack.c.l.b16 %v242
    %v298 = vunpack.c.l.b16 %v243
    %v299 = vunpack.c.h.b16 %v243
    %v300 = vunpack.c.l.b16 %v244
    %v301 = vunpack.c.l.b16 %v245
    %v302 = vunpack.c.h.b16 %v245
    %v303 = vunpack.c.l.b16 %v246
    %v304 = vpack.c.b16 %v283, %v280
    %v305 = vpack.c.b16 %v284, %v281
    %v306 = vpack.c.b16 %v285, %v282
    %v307 = vpack.c.b16 %v289, %v286
    %v308 = vpack.c.b16 %v290, %v287
    %v309 = vpack.c.b16 %v291, %v288
    %v310 = vpack.c.b16 %v295, %v292
    %v311 = vpack.c.b16 %v296, %v293
    %v312 = vpack.c.b16 %v297, %v294
    %v313 = vpack.c.b16 %v301, %v298
    %v314 = vpack.c.b16 %v302, %v299
    %v315 = vpack.c.b16 %v303, %v300
    %vm328 = vcmask 523264
    %v330 = vsel %vm328, %v229, 0
    %v333 = vsel %vm328, %v230, 0
    %335 = vmatprep.subr.bf16.mxu0 %v305
    %336 = vmatpush1.bf16.msra.mxu0 %v304
    %337 = vmatprep.subr.bf16.mxu0 %v308
    %338 = vmatpush1.bf16.msra.mxu0 %v307
    %339 = vmatprep.subr.bf16.mxu0 %v311
    %340 = vmatpush1.bf16.msra.mxu0 %v310
    %341 = vmatprep.subr.bf16.mxu0 %v314
    %342 = vmatpush1.bf16.msra.mxu0 %v313
    %343 = vmatprep.subr.bf16.mxu0 0
    %344 = vmatpush1.bf16.msra.mxu0 0
    %345 = vmatprep.subr.bf16.mxu0 0
    %346 = vmatpush1.bf16.msra.mxu0 0
    %347 = vmatprep.subr.bf16.mxu0 0
    %348 = vmatpush1.bf16.msra.mxu0 0
    %349 = vmatprep.subr.bf16.mxu0 0
    %350 = vmatpush1.bf16.msra.mxu0 0
    %351 = vmatprep.subr.bf16.mxu0 0
    %352 = vmatpush1.bf16.msra.mxu0 0
    %353 = vmatprep.subr.bf16.mxu0 0
    %354 = vmatpush1.bf16.msra.mxu0 0
    %355 = vmatprep.subr.bf16.mxu0 0
    %356 = vmatpush1.bf16.msra.mxu0 0
    %357 = vmatprep.subr.bf16.mxu0 0
    %358 = vmatpush1.bf16.msra.mxu0 0
    %359 = vmatprep.subr.bf16.mxu0 0
    %360 = vmatpush1.bf16.msra.mxu0 0
    %361 = vmatprep.subr.bf16.mxu0 0
    %362 = vmatpush1.bf16.msra.mxu0 0
    %363 = vmatprep.subr.bf16.mxu0 0
    %364 = vmatpush1.bf16.msra.mxu0 0
    %365 = vmatprep.subr.bf16.mxu0 0
    %366 = vmatpush1.bf16.msra.mxu0 0
    %367 = vmatprep.mubr.bf16.mxu0 0
    %368 = vmatmul.mubr.bf16.gmra.mrb[0].mxu0 %v330
    %v369 = vpop.f32.mrb[0].mxu0
    %v370 = vadd.f32 %v252, %v369
    %v371 = vpop.f32.mrb[0].mxu0
    %v372 = vadd.f32 %v256, %v371
    %v373 = vpop.f32.mrb[0].mxu0
    %v374 = vadd.f32 %v252, %v373
    %v375 = vpop.f32.mrb[0].mxu0
    %v376 = vadd.f32 %v256, %v375
    %377 = vmatprep.mubr.bf16.mxu0 0
    %378 = vmatmul.mubr.bf16.gmra.mrb[0].mxu0 %v333
    %v379 = vpop.f32.mrb[0].mxu0
    %v380 = vadd.f32 %v252, %v379
    %v381 = vpop.f32.mrb[0].mxu0
    %v382 = vadd.f32 %v256, %v381
    %v383 = vpop.f32.mrb[0].mxu0
    %v384 = vadd.f32 %v252, %v383
    %v385 = vpop.f32.mrb[0].mxu0
    %v386 = vadd.f32 %v256, %v385
    %387 = vdwg.mxu0
    %388 = vmatprep.subr.bf16.mxu0 0
    %389 = vmatpush1.bf16.msra.mxu0 %v306
    %390 = vmatprep.subr.bf16.mxu0 0
    %391 = vmatpush1.bf16.msra.mxu0 %v309
    %392 = vmatprep.subr.bf16.mxu0 0
    %393 = vmatpush1.bf16.msra.mxu0 %v312
    %394 = vmatprep.subr.bf16.mxu0 0
    %395 = vmatpush1.bf16.msra.mxu0 %v315
    %396 = vmatprep.subr.bf16.mxu0 0
    %397 = vmatpush1.bf16.msra.mxu0 0
    %398 = vmatprep.subr.bf16.mxu0 0
    %399 = vmatpush1.bf16.msra.mxu0 0
    %400 = vmatprep.subr.bf16.mxu0 0
    %401 = vmatpush1.bf16.msra.mxu0 0
    %402 = vmatprep.subr.bf16.mxu0 0
    %403 = vmatpush1.bf16.msra.mxu0 0
    %404 = vmatprep.subr.bf16.mxu0 0
    %405 = vmatpush1.bf16.msra.mxu0 0
    %406 = vmatprep.subr.bf16.mxu0 0
    %407 = vmatpush1.bf16.msra.mxu0 0
    %408 = vmatprep.subr.bf16.mxu0 0
    %409 = vmatpush1.bf16.msra.mxu0 0
    %410 = vmatprep.subr.bf16.mxu0 0
    %411 = vmatpush1.bf16.msra.mxu0 0
    %412 = vmatprep.subr.bf16.mxu0 0
    %413 = vmatpush1.bf16.msra.mxu0 0
    %414 = vmatprep.subr.bf16.mxu0 0
    %415 = vmatpush1.bf16.msra.mxu0 0
    %416 = vmatprep.subr.bf16.mxu0 0
    %417 = vmatpush1.bf16.msra.mxu0 0
    %418 = vmatprep.subr.bf16.mxu0 0
    %419 = vmatpush1.bf16.msra.mxu0 0
    %420 = vmatprep.mubr.bf16.mxu0 0
    %421 = vmatmul.mubr.bf16.gmra.mrb[0].mxu0 %v330
    %v422 = vpop.f32.mrb[0].mxu0
    %v423 = vadd.f32 %v260, %v422
    %v424 = vpop.f32.mrb[0].mxu0
    %v425 = vpop.f32.mrb[0].mxu0
    %v426 = vadd.f32 %v260, %v425
    %v427 = vpop.f32.mrb[0].mxu0
    %428 = vmatprep.mubr.bf16.mxu0 0
    %429 = vmatmul.mubr.bf16.gmra.mrb[0].mxu0 %v333
    %v430 = vpop.f32.mrb[0].mxu0
    %v431 = vadd.f32 %v260, %v430
    %v432 = vpop.f32.mrb[0].mxu0
    %v433 = vpop.f32.mrb[0].mxu0
    %v434 = vadd.f32 %v260, %v433
    %v435 = vpop.f32.mrb[0].mxu0
    %436 = vdwg.mxu0
    %v437 = vpack.c.bf16 %v374, %v370
    %v438 = vpack.c.bf16 %v384, %v380
    %v439 = vpack.c.bf16 %v376, %v372
    %v440 = vpack.c.bf16 %v386, %v382
    %v441 = vpack.c.bf16 %v426, %v423
    %v442 = vpack.c.bf16 %v434, %v431
    %v475 = vunpack.c.l.b16 %v125
    %v476 = vunpack.c.l.b16 %v126
    %v477 = vunpack.c.l.b16 %v127
    %v478 = vunpack.c.l.b16 %v128
    %v479 = vunpack.c.l.b16 %v129
    %v480 = vunpack.c.l.b16 %v130
    %v481 = vunpack.c.l.b16 %v131
    %v482 = vunpack.c.l.b16 %v132
    %v483 = vunpack.c.l.b16 %v133
    %v484 = vunpack.c.l.b16 %v134
    %v485 = vunpack.c.l.b16 %v135
    %v486 = vunpack.c.l.b16 %v136
    %v487 = vunpack.c.l.b16 %v137
    %v488 = vunpack.c.l.b16 %v138
    %v489 = vunpack.c.l.b16 %v139
    %v490 = vunpack.c.l.b16 %v140
    %v491 = vunpack.c.l.b16 %v141
    %v492 = vunpack.c.l.b16 %v142
    %v493 = vunpack.c.l.b16 %v143
    %v494 = vunpack.c.l.b16 %v144
    %v495 = vunpack.c.l.b16 %v145
    %v496 = vunpack.c.l.b16 %v146
    %v497 = vunpack.c.l.b16 %v147
    %v498 = vunpack.c.l.b16 %v148
    %v499 = vunpack.c.l.b16 %v149
    %v500 = vunpack.c.l.b16 %v150
    %v501 = vunpack.c.l.b16 %v151
    %v502 = vunpack.c.l.b16 %v152
    %v503 = vunpack.c.l.b16 %v153
    %v504 = vunpack.c.l.b16 %v154
    %v505 = vunpack.c.l.b16 %v155
    %v506 = vunpack.c.l.b16 %v156
    %v507 = vpack.c.b16 %v476, %v475
    %v508 = vpack.c.b16 %v478, %v477
    %v509 = vpack.c.b16 %v480, %v479
    %v510 = vpack.c.b16 %v482, %v481
    %v511 = vpack.c.b16 %v484, %v483
    %v512 = vpack.c.b16 %v486, %v485
    %v513 = vpack.c.b16 %v488, %v487
    %v514 = vpack.c.b16 %v490, %v489
    %v515 = vpack.c.b16 %v492, %v491
    %v516 = vpack.c.b16 %v494, %v493
    %v517 = vpack.c.b16 %v496, %v495
    %v518 = vpack.c.b16 %v498, %v497
    %v519 = vpack.c.b16 %v500, %v499
    %v520 = vpack.c.b16 %v502, %v501
    %v521 = vpack.c.b16 %v504, %v503
    %v522 = vpack.c.b16 %v506, %v505
    %vm523 = vcmask 261120
    %v525 = vsel %vm523, %v507, 0
    %v528 = vsel %vm523, %v508, 0
    %v531 = vsel %vm523, %v509, 0
    %v534 = vsel %vm523, %v510, 0
    %v537 = vsel %vm523, %v511, 0
    %v540 = vsel %vm523, %v512, 0
    %v543 = vsel %vm523, %v513, 0
    %v546 = vsel %vm523, %v514, 0
    %v549 = vsel %vm523, %v515, 0
    %v552 = vsel %vm523, %v516, 0
    %v555 = vsel %vm523, %v517, 0
    %v558 = vsel %vm523, %v518, 0
    %v561 = vsel %vm523, %v519, 0
    %v564 = vsel %vm523, %v520, 0
    %v567 = vsel %vm523, %v521, 0
    %v570 = vsel %vm523, %v522, 0
    %572 = vmatprep.subr.bf16.mxu0 0
    %573 = vmatpush1.bf16.msra.mxu0 %v439
    %574 = vmatprep.subr.bf16.mxu0 0
    %575 = vmatpush1.bf16.msra.mxu0 %v440
    %576 = vmatprep.subr.bf16.mxu0 0
    %577 = vmatpush1.bf16.msra.mxu0 0
    %578 = vmatprep.subr.bf16.mxu0 0
    %579 = vmatpush1.bf16.msra.mxu0 0
    %580 = vmatprep.subr.bf16.mxu0 0
    %581 = vmatpush1.bf16.msra.mxu0 0
    %582 = vmatprep.subr.bf16.mxu0 0
    %583 = vmatpush1.bf16.msra.mxu0 0
    %584 = vmatprep.subr.bf16.mxu0 0
    %585 = vmatpush1.bf16.msra.mxu0 0
    %586 = vmatprep.subr.bf16.mxu0 0
    %587 = vmatpush1.bf16.msra.mxu0 0
    %588 = vmatprep.subr.bf16.mxu0 0
    %589 = vmatpush1.bf16.msra.mxu0 0
    %590 = vmatprep.subr.bf16.mxu0 0
    %591 = vmatpush1.bf16.msra.mxu0 0
    %592 = vmatprep.subr.bf16.mxu0 0
    %593 = vmatpush1.bf16.msra.mxu0 0
    %594 = vmatprep.subr.bf16.mxu0 0
    %595 = vmatpush1.bf16.msra.mxu0 0
    %596 = vmatprep.subr.bf16.mxu0 0
    %597 = vmatpush1.bf16.msra.mxu0 0
    %598 = vmatprep.subr.bf16.mxu0 0
    %599 = vmatpush1.bf16.msra.mxu0 0
    %600 = vmatprep.subr.bf16.mxu0 0
    %601 = vmatpush1.bf16.msra.mxu0 0
    %602 = vmatprep.subr.bf16.mxu0 0
    %603 = vmatpush1.bf16.msra.mxu0 0
    %604 = vmatprep.mubr.bf16.mxu0 0
    %605 = vmatmul.mubr.bf16.gmra.mrb[0].mxu0 %v525
    %v606 = vpop.f32.mrb[0].mxu0
    %v607 = vadd.f32 0.0, %v606
    %v608 = vpop.f32.mrb[0].mxu0
    %v609 = vpop.f32.mrb[0].mxu0
    %v610 = vadd.f32 0.0, %v609
    %v611 = vpop.f32.mrb[0].mxu0
    %612 = vmatprep.mubr.bf16.mxu0 0
    %613 = vmatmul.mubr.bf16.gmra.mrb[0].mxu0 %v528
    %v614 = vpop.f32.mrb[0].mxu0
    %v615 = vadd.f32 0.0, %v614
    %v616 = vpop.f32.mrb[0].mxu0
    %v617 = vpop.f32.mrb[0].mxu0
    %v618 = vadd.f32 0.0, %v617
    %v619 = vpop.f32.mrb[0].mxu0
    %620 = vmatprep.mubr.bf16.mxu0 0
    %621 = vmatmul.mubr.bf16.gmra.mrb[0].mxu0 %v531
    %v622 = vpop.f32.mrb[0].mxu0
    %v623 = vadd.f32 0.0, %v622
    %v624 = vpop.f32.mrb[0].mxu0
    %v625 = vpop.f32.mrb[0].mxu0
    %v626 = vadd.f32 0.0, %v625
    %v627 = vpop.f32.mrb[0].mxu0
    %628 = vmatprep.mubr.bf16.mxu0 0
    %629 = vmatmul.mubr.bf16.gmra.mrb[0].mxu0 %v534
    %v630 = vpop.f32.mrb[0].mxu0
    %v631 = vadd.f32 0.0, %v630
    %v632 = vpop.f32.mrb[0].mxu0
    %v633 = vpop.f32.mrb[0].mxu0
    %v634 = vadd.f32 0.0, %v633
    %v635 = vpop.f32.mrb[0].mxu0
    %636 = vmatprep.mubr.bf16.mxu0 0
    %637 = vmatmul.mubr.bf16.gmra.mrb[0].mxu0 %v537
    %v638 = vpop.f32.mrb[0].mxu0
    %v639 = vadd.f32 0.0, %v638
    %v640 = vpop.f32.mrb[0].mxu0
    %v641 = vpop.f32.mrb[0].mxu0
    %v642 = vadd.f32 0.0, %v641
    %v643 = vpop.f32.mrb[0].mxu0
    %644 = vmatprep.mubr.bf16.mxu0 0
    %645 = vmatmul.mubr.bf16.gmra.mrb[0].mxu0 %v540
    %v646 = vpop.f32.mrb[0].mxu0
    %v647 = vadd.f32 0.0, %v646
    %v648 = vpop.f32.mrb[0].mxu0
    %v649 = vpop.f32.mrb[0].mxu0
    %v650 = vadd.f32 0.0, %v649
    %v651 = vpop.f32.mrb[0].mxu0
    %652 = vmatprep.mubr.bf16.mxu0 0
    %653 = vmatmul.mubr.bf16.gmra.mrb[0].mxu0 %v543
    %v654 = vpop.f32.mrb[0].mxu0
    %v655 = vadd.f32 0.0, %v654
    %v656 = vpop.f32.mrb[0].mxu0
    %v657 = vpop.f32.mrb[0].mxu0
    %v658 = vadd.f32 0.0, %v657
    %v659 = vpop.f32.mrb[0].mxu0
    %660 = vmatprep.mubr.bf16.mxu0 0
    %661 = vmatmul.mubr.bf16.gmra.mrb[0].mxu0 %v546
    %v662 = vpop.f32.mrb[0].mxu0
    %v663 = vadd.f32 0.0, %v662
    %v664 = vpop.f32.mrb[0].mxu0
    %v665 = vpop.f32.mrb[0].mxu0
    %v666 = vadd.f32 0.0, %v665
    %v667 = vpop.f32.mrb[0].mxu0
    %668 = vmatprep.mubr.bf16.mxu0 0
    %669 = vmatmul.mubr.bf16.gmra.mrb[0].mxu0 %v549
    %v670 = vpop.f32.mrb[0].mxu0
    %v671 = vadd.f32 0.0, %v670
    %v672 = vpop.f32.mrb[0].mxu0
    %v673 = vpop.f32.mrb[0].mxu0
    %v674 = vadd.f32 0.0, %v673
    %v675 = vpop.f32.mrb[0].mxu0
    %676 = vmatprep.mubr.bf16.mxu0 0
    %677 = vmatmul.mubr.bf16.gmra.mrb[0].mxu0 %v552
    %v678 = vpop.f32.mrb[0].mxu0
    %v679 = vadd.f32 0.0, %v678
    %v680 = vpop.f32.mrb[0].mxu0
    %v681 = vpop.f32.mrb[0].mxu0
    %v682 = vadd.f32 0.0, %v681
    %v683 = vpop.f32.mrb[0].mxu0
    %684 = vmatprep.mubr.bf16.mxu0 0
    %685 = vmatmul.mubr.bf16.gmra.mrb[0].mxu0 %v555
    %v686 = vpop.f32.mrb[0].mxu0
    %v687 = vadd.f32 0.0, %v686
    %v688 = vpop.f32.mrb[0].mxu0
    %v689 = vpop.f32.mrb[0].mxu0
    %v690 = vadd.f32 0.0, %v689
    %v691 = vpop.f32.mrb[0].mxu0
    %692 = vmatprep.mubr.bf16.mxu0 0
    %693 = vmatmul.mubr.bf16.gmra.mrb[0].mxu0 %v558
    %v694 = vpop.f32.mrb[0].mxu0
    %v695 = vadd.f32 0.0, %v694
    %v696 = vpop.f32.mrb[0].mxu0
    %v697 = vpop.f32.mrb[0].mxu0
    %v698 = vadd.f32 0.0, %v697
    %v699 = vpop.f32.mrb[0].mxu0
    %700 = vmatprep.mubr.bf16.mxu0 0
    %701 = vmatmul.mubr.bf16.gmra.mrb[0].mxu0 %v561
    %v702 = vpop.f32.mrb[0].mxu0
    %v703 = vadd.f32 0.0, %v702
    %v704 = vpop.f32.mrb[0].mxu0
    %v705 = vpop.f32.mrb[0].mxu0
    %v706 = vadd.f32 0.0, %v705
    %v707 = vpop.f32.mrb[0].mxu0
    %708 = vmatprep.mubr.bf16.mxu0 0
    %709 = vmatmul.mubr.bf16.gmra.mrb[0].mxu0 %v564
    %v710 = vpop.f32.mrb[0].mxu0
    %v711 = vadd.f32 0.0, %v710
    %v712 = vpop.f32.mrb[0].mxu0
    %v713 = vpop.f32.mrb[0].mxu0
    %v714 = vadd.f32 0.0, %v713
    %v715 = vpop.f32.mrb[0].mxu0
    %716 = vmatprep.mubr.bf16.mxu0 0
    %717 = vmatmul.mubr.bf16.gmra.mrb[0].mxu0 %v567
    %v718 = vpop.f32.mrb[0].mxu0
    %v719 = vadd.f32 0.0, %v718
    %v720 = vpop.f32.mrb[0].mxu0
    %v721 = vpop.f32.mrb[0].mxu0
    %v722 = vadd.f32 0.0, %v721
    %v723 = vpop.f32.mrb[0].mxu0
    %724 = vmatprep.mubr.bf16.mxu0 0
    %725 = vmatmul.mubr.bf16.gmra.mrb[0].mxu0 %v570
    %v726 = vpop.f32.mrb[0].mxu0
    %v727 = vadd.f32 0.0, %v726
    %v728 = vpop.f32.mrb[0].mxu0
    %v729 = vpop.f32.mrb[0].mxu0
    %v730 = vadd.f32 0.0, %v729
    %v731 = vpop.f32.mrb[0].mxu0
    %732 = vdwg.mxu0
    %v733 = vmul.f32 %v607, %v157
    %v734 = vmul.f32 %v610, %v158
    %v735 = vmul.f32 %v615, %v159
    %v736 = vmul.f32 %v618, %v160
    %v737 = vmul.f32 %v623, %v161
    %v738 = vmul.f32 %v626, %v162
    %v739 = vmul.f32 %v631, %v163
    %v740 = vmul.f32 %v634, %v164
    %v741 = vmul.f32 %v639, %v165
    %v742 = vmul.f32 %v642, %v166
    %v743 = vmul.f32 %v647, %v167
    %v744 = vmul.f32 %v650, %v168
    %v745 = vmul.f32 %v655, %v169
    %v746 = vmul.f32 %v658, %v170
    %v747 = vmul.f32 %v663, %v171
    %v748 = vmul.f32 %v666, %v172
    %v749 = vmul.f32 %v671, %v173
    %v750 = vmul.f32 %v674, %v174
    %v751 = vmul.f32 %v679, %v175
    %v752 = vmul.f32 %v682, %v176
    %v753 = vmul.f32 %v687, %v177
    %v754 = vmul.f32 %v690, %v178
    %v755 = vmul.f32 %v695, %v179
    %v756 = vmul.f32 %v698, %v180
    %v757 = vmul.f32 %v703, %v181
    %v758 = vmul.f32 %v706, %v182
    %v759 = vmul.f32 %v711, %v183
    %v760 = vmul.f32 %v714, %v184
    %v761 = vmul.f32 %v719, %v185
    %v762 = vmul.f32 %v722, %v186
    %v763 = vmul.f32 %v727, %v187
    %v764 = vmul.f32 %v730, %v188
    %v765 = vpack.c.bf16 %v734, %v733
    %v766 = vpack.c.bf16 %v736, %v735
    %v767 = vpack.c.bf16 %v738, %v737
    %v768 = vpack.c.bf16 %v740, %v739
    %v769 = vpack.c.bf16 %v742, %v741
    %v770 = vpack.c.bf16 %v744, %v743
    %v771 = vpack.c.bf16 %v746, %v745
    %v772 = vpack.c.bf16 %v748, %v747
    %v773 = vpack.c.bf16 %v750, %v749
    %v774 = vpack.c.bf16 %v752, %v751
    %v775 = vpack.c.bf16 %v754, %v753
    %v776 = vpack.c.bf16 %v756, %v755
    %v777 = vpack.c.bf16 %v758, %v757
    %v778 = vpack.c.bf16 %v760, %v759
    %v779 = vpack.c.bf16 %v762, %v761
    %v780 = vpack.c.bf16 %v764, %v763
    %781 = vmatprep.subr.bf16.mxu0 0
    %782 = vmatpush1.bf16.msra.mxu0 %v441
    %783 = vmatprep.subr.bf16.mxu0 0
    %784 = vmatpush1.bf16.msra.mxu0 %v442
    %785 = vmatprep.subr.bf16.mxu0 0
    %786 = vmatpush1.bf16.msra.mxu0 0
    %787 = vmatprep.subr.bf16.mxu0 0
    %788 = vmatpush1.bf16.msra.mxu0 0
    %789 = vmatprep.subr.bf16.mxu0 0
    %790 = vmatpush1.bf16.msra.mxu0 0
    %791 = vmatprep.subr.bf16.mxu0 0
    %792 = vmatpush1.bf16.msra.mxu0 0
    %793 = vmatprep.subr.bf16.mxu0 0
    %794 = vmatpush1.bf16.msra.mxu0 0
    %795 = vmatprep.subr.bf16.mxu0 0
    %796 = vmatpush1.bf16.msra.mxu0 0
    %797 = vmatprep.subr.bf16.mxu0 0
    %798 = vmatpush1.bf16.msra.mxu0 0
    %799 = vmatprep.subr.bf16.mxu0 0
    %800 = vmatpush1.bf16.msra.mxu0 0
    %801 = vmatprep.subr.bf16.mxu0 0
    %802 = vmatpush1.bf16.msra.mxu0 0
    %803 = vmatprep.subr.bf16.mxu0 0
    %804 = vmatpush1.bf16.msra.mxu0 0
    %805 = vmatprep.subr.bf16.mxu0 0
    %806 = vmatpush1.bf16.msra.mxu0 0
    %807 = vmatprep.subr.bf16.mxu0 0
    %808 = vmatpush1.bf16.msra.mxu0 0
    %809 = vmatprep.subr.bf16.mxu0 0
    %810 = vmatpush1.bf16.msra.mxu0 0
    %811 = vmatprep.subr.bf16.mxu0 0
    %812 = vmatpush1.bf16.msra.mxu0 0
    %813 = vmatprep.mubr.bf16.mxu0 0
    %814 = vmatmul.mubr.bf16.gmra.mrb[0].mxu0 %v525
    %v815 = vpop.f32.mrb[0].mxu0
    %v816 = vadd.f32 0.0, %v815
    %v817 = vpop.f32.mrb[0].mxu0
    %v818 = vpop.f32.mrb[0].mxu0
    %v819 = vadd.f32 0.0, %v818
    %v820 = vpop.f32.mrb[0].mxu0
    %821 = vmatprep.mubr.bf16.mxu0 0
    %822 = vmatmul.mubr.bf16.gmra.mrb[0].mxu0 %v528
    %v823 = vpop.f32.mrb[0].mxu0
    %v824 = vadd.f32 0.0, %v823
    %v825 = vpop.f32.mrb[0].mxu0
    %v826 = vpop.f32.mrb[0].mxu0
    %v827 = vadd.f32 0.0, %v826
    %v828 = vpop.f32.mrb[0].mxu0
    %829 = vmatprep.mubr.bf16.mxu0 0
    %830 = vmatmul.mubr.bf16.gmra.mrb[0].mxu0 %v531
    %v831 = vpop.f32.mrb[0].mxu0
    %v832 = vadd.f32 0.0, %v831
    %v833 = vpop.f32.mrb[0].mxu0
    %v834 = vpop.f32.mrb[0].mxu0
    %v835 = vadd.f32 0.0, %v834
    %v836 = vpop.f32.mrb[0].mxu0
    %837 = vmatprep.mubr.bf16.mxu0 0
    %838 = vmatmul.mubr.bf16.gmra.mrb[0].mxu0 %v534
    %v839 = vpop.f32.mrb[0].mxu0
    %v840 = vadd.f32 0.0, %v839
    %v841 = vpop.f32.mrb[0].mxu0
    %v842 = vpop.f32.mrb[0].mxu0
    %v843 = vadd.f32 0.0, %v842
    %v844 = vpop.f32.mrb[0].mxu0
    %845 = vmatprep.mubr.bf16.mxu0 0
    %846 = vmatmul.mubr.bf16.gmra.mrb[0].mxu0 %v537
    %v847 = vpop.f32.mrb[0].mxu0
    %v848 = vadd.f32 0.0, %v847
    %v849 = vpop.f32.mrb[0].mxu0
    %v850 = vpop.f32.mrb[0].mxu0
    %v851 = vadd.f32 0.0, %v850
    %v852 = vpop.f32.mrb[0].mxu0
    %853 = vmatprep.mubr.bf16.mxu0 0
    %854 = vmatmul.mubr.bf16.gmra.mrb[0].mxu0 %v540
    %v855 = vpop.f32.mrb[0].mxu0
    %v856 = vadd.f32 0.0, %v855
    %v857 = vpop.f32.mrb[0].mxu0
    %v858 = vpop.f32.mrb[0].mxu0
    %v859 = vadd.f32 0.0, %v858
    %v860 = vpop.f32.mrb[0].mxu0
    %861 = vmatprep.mubr.bf16.mxu0 0
    %862 = vmatmul.mubr.bf16.gmra.mrb[0].mxu0 %v543
    %v863 = vpop.f32.mrb[0].mxu0
    %v864 = vadd.f32 0.0, %v863
    %v865 = vpop.f32.mrb[0].mxu0
    %v866 = vpop.f32.mrb[0].mxu0
    %v867 = vadd.f32 0.0, %v866
    %v868 = vpop.f32.mrb[0].mxu0
    %869 = vmatprep.mubr.bf16.mxu0 0
    %870 = vmatmul.mubr.bf16.gmra.mrb[0].mxu0 %v546
    %v871 = vpop.f32.mrb[0].mxu0
    %v872 = vadd.f32 0.0, %v871
    %v873 = vpop.f32.mrb[0].mxu0
    %v874 = vpop.f32.mrb[0].mxu0
    %v875 = vadd.f32 0.0, %v874
    %v876 = vpop.f32.mrb[0].mxu0
    %877 = vmatprep.mubr.bf16.mxu0 0
    %878 = vmatmul.mubr.bf16.gmra.mrb[0].mxu0 %v549
    %v879 = vpop.f32.mrb[0].mxu0
    %v880 = vadd.f32 0.0, %v879
    %v881 = vpop.f32.mrb[0].mxu0
    %v882 = vpop.f32.mrb[0].mxu0
    %v883 = vadd.f32 0.0, %v882
    %v884 = vpop.f32.mrb[0].mxu0
    %885 = vmatprep.mubr.bf16.mxu0 0
    %886 = vmatmul.mubr.bf16.gmra.mrb[0].mxu0 %v552
    %v887 = vpop.f32.mrb[0].mxu0
    %v888 = vadd.f32 0.0, %v887
    %v889 = vpop.f32.mrb[0].mxu0
    %v890 = vpop.f32.mrb[0].mxu0
    %v891 = vadd.f32 0.0, %v890
    %v892 = vpop.f32.mrb[0].mxu0
    %893 = vmatprep.mubr.bf16.mxu0 0
    %894 = vmatmul.mubr.bf16.gmra.mrb[0].mxu0 %v555
    %v895 = vpop.f32.mrb[0].mxu0
    %v896 = vadd.f32 0.0, %v895
    %v897 = vpop.f32.mrb[0].mxu0
    %v898 = vpop.f32.mrb[0].mxu0
    %v899 = vadd.f32 0.0, %v898
    %v900 = vpop.f32.mrb[0].mxu0
    %901 = vmatprep.mubr.bf16.mxu0 0
    %902 = vmatmul.mubr.bf16.gmra.mrb[0].mxu0 %v558
    %v903 = vpop.f32.mrb[0].mxu0
    %v904 = vadd.f32 0.0, %v903
    %v905 = vpop.f32.mrb[0].mxu0
    %v906 = vpop.f32.mrb[0].mxu0
    %v907 = vadd.f32 0.0, %v906
    %v908 = vpop.f32.mrb[0].mxu0
    %909 = vmatprep.mubr.bf16.mxu0 0
    %910 = vmatmul.mubr.bf16.gmra.mrb[0].mxu0 %v561
    %v911 = vpop.f32.mrb[0].mxu0
    %v912 = vadd.f32 0.0, %v911
    %v913 = vpop.f32.mrb[0].mxu0
    %v914 = vpop.f32.mrb[0].mxu0
    %v915 = vadd.f32 0.0, %v914
    %v916 = vpop.f32.mrb[0].mxu0
    %917 = vmatprep.mubr.bf16.mxu0 0
    %918 = vmatmul.mubr.bf16.gmra.mrb[0].mxu0 %v564
    %v919 = vpop.f32.mrb[0].mxu0
    %v920 = vadd.f32 0.0, %v919
    %v921 = vpop.f32.mrb[0].mxu0
    %v922 = vpop.f32.mrb[0].mxu0
    %v923 = vadd.f32 0.0, %v922
    %v924 = vpop.f32.mrb[0].mxu0
    %925 = vmatprep.mubr.bf16.mxu0 0
    %926 = vmatmul.mubr.bf16.gmra.mrb[0].mxu0 %v567
    %v927 = vpop.f32.mrb[0].mxu0
    %v928 = vadd.f32 0.0, %v927
    %v929 = vpop.f32.mrb[0].mxu0
    %v930 = vpop.f32.mrb[0].mxu0
    %v931 = vadd.f32 0.0, %v930
    %v932 = vpop.f32.mrb[0].mxu0
    %933 = vmatprep.mubr.bf16.mxu0 0
    %934 = vmatmul.mubr.bf16.gmra.mrb[0].mxu0 %v570
    %v935 = vpop.f32.mrb[0].mxu0
    %v936 = vadd.f32 0.0, %v935
    %v937 = vpop.f32.mrb[0].mxu0
    %v938 = vpop.f32.mrb[0].mxu0
    %v939 = vadd.f32 0.0, %v938
    %v940 = vpop.f32.mrb[0].mxu0
    %941 = vdwg.mxu0
    %v942 = vmul.f32 %v816, %v157
    %v943 = vmul.f32 %v819, %v158
    %v944 = vmul.f32 %v824, %v159
    %v945 = vmul.f32 %v827, %v160
    %v946 = vmul.f32 %v832, %v161
    %v947 = vmul.f32 %v835, %v162
    %v948 = vmul.f32 %v840, %v163
    %v949 = vmul.f32 %v843, %v164
    %v950 = vmul.f32 %v848, %v165
    %v951 = vmul.f32 %v851, %v166
    %v952 = vmul.f32 %v856, %v167
    %v953 = vmul.f32 %v859, %v168
    %v954 = vmul.f32 %v864, %v169
    %v955 = vmul.f32 %v867, %v170
    %v956 = vmul.f32 %v872, %v171
    %v957 = vmul.f32 %v875, %v172
    %v958 = vmul.f32 %v880, %v173
    %v959 = vmul.f32 %v883, %v174
    %v960 = vmul.f32 %v888, %v175
    %v961 = vmul.f32 %v891, %v176
    %v962 = vmul.f32 %v896, %v177
    %v963 = vmul.f32 %v899, %v178
    %v964 = vmul.f32 %v904, %v179
    %v965 = vmul.f32 %v907, %v180
    %v966 = vmul.f32 %v912, %v181
    %v967 = vmul.f32 %v915, %v182
    %v968 = vmul.f32 %v920, %v183
    %v969 = vmul.f32 %v923, %v184
    %v970 = vmul.f32 %v928, %v185
    %v971 = vmul.f32 %v931, %v186
    %v972 = vmul.f32 %v936, %v187
    %v973 = vmul.f32 %v939, %v188
    %v974 = vpack.c.bf16 %v943, %v942
    %v975 = vpack.c.bf16 %v945, %v944
    %v976 = vpack.c.bf16 %v947, %v946
    %v977 = vpack.c.bf16 %v949, %v948
    %v978 = vpack.c.bf16 %v951, %v950
    %v979 = vpack.c.bf16 %v953, %v952
    %v980 = vpack.c.bf16 %v955, %v954
    %v981 = vpack.c.bf16 %v957, %v956
    %v982 = vpack.c.bf16 %v959, %v958
    %v983 = vpack.c.bf16 %v961, %v960
    %v984 = vpack.c.bf16 %v963, %v962
    %v985 = vpack.c.bf16 %v965, %v964
    %v986 = vpack.c.bf16 %v967, %v966
    %v987 = vpack.c.bf16 %v969, %v968
    %v988 = vpack.c.bf16 %v971, %v970
    %v989 = vpack.c.bf16 %v973, %v972
    %v991 = vsel %vm328, %v437, 0
    %v994 = vsel %vm328, %v438, 0
    %v997 = vsel %vm328, %v765, 0
    %v1000 = vsel %vm328, %v766, 0
    %v1003 = vsel %vm328, %v767, 0
    %v1006 = vsel %vm328, %v768, 0
    %v1009 = vsel %vm328, %v769, 0
    %v1012 = vsel %vm328, %v770, 0
    %v1015 = vsel %vm328, %v771, 0
    %v1018 = vsel %vm328, %v772, 0
    %v1021 = vsel %vm328, %v773, 0
    %v1024 = vsel %vm328, %v774, 0
    %v1027 = vsel %vm328, %v775, 0
    %v1030 = vsel %vm328, %v776, 0
    %v1033 = vsel %vm328, %v777, 0
    %v1036 = vsel %vm328, %v778, 0
    %v1039 = vsel %vm328, %v779, 0
    %v1042 = vsel %vm328, %v780, 0
    %1044 = vmatprep.subr.bf16.mxu0 0
    %1045 = vmatpush1.bf16.xpose.msra.mxu0 %v997
    %1046 = vmatprep.subr.bf16.mxu0 0
    %1047 = vmatpush1.bf16.xpose.msra.mxu0 %v1000
    %1048 = vmatprep.subr.bf16.mxu0 0
    %1049 = vmatpush1.bf16.xpose.msra.mxu0 %v1003
    %1050 = vmatprep.subr.bf16.mxu0 0
    %1051 = vmatpush1.bf16.xpose.msra.mxu0 %v1006
    %1052 = vmatprep.subr.bf16.mxu0 0
    %1053 = vmatpush1.bf16.xpose.msra.mxu0 %v1009
    %1054 = vmatprep.subr.bf16.mxu0 0
    %1055 = vmatpush1.bf16.xpose.msra.mxu0 %v1012
    %1056 = vmatprep.subr.bf16.mxu0 0
    %1057 = vmatpush1.bf16.xpose.msra.mxu0 %v1015
    %1058 = vmatprep.subr.bf16.mxu0 0
    %1059 = vmatpush1.bf16.xpose.msra.mxu0 %v1018
    %1060 = vmatprep.subr.bf16.mxu0 0
    %1061 = vmatpush1.bf16.xpose.msra.mxu0 %v1021
    %1062 = vmatprep.subr.bf16.mxu0 0
    %1063 = vmatpush1.bf16.xpose.msra.mxu0 %v1024
    %1064 = vmatprep.subr.bf16.mxu0 0
    %1065 = vmatpush1.bf16.xpose.msra.mxu0 %v1027
    %1066 = vmatprep.subr.bf16.mxu0 0
    %1067 = vmatpush1.bf16.xpose.msra.mxu0 %v1030
    %1068 = vmatprep.subr.bf16.mxu0 0
    %1069 = vmatpush1.bf16.xpose.msra.mxu0 %v1033
    %1070 = vmatprep.subr.bf16.mxu0 0
    %1071 = vmatpush1.bf16.xpose.msra.mxu0 %v1036
    %1072 = vmatprep.subr.bf16.mxu0 0
    %1073 = vmatpush1.bf16.xpose.msra.mxu0 %v1039
    %1074 = vmatprep.subr.bf16.mxu0 0
    %1075 = vmatpush1.bf16.xpose.msra.mxu0 %v1042
    %1076 = vmatprep.mubr.bf16.mxu0 0
    %1077 = vmatmul.mubr.bf16.gmra.mrb[0].mxu0 %v991
    %v1078 = vpop.f32.mrb[0].mxu0
    %v1079 = vadd.f32 %v221, %v1078
    %v1080 = vpop.f32.mrb[0].mxu0
    %v1081 = vadd.f32 %v222, %v1080
    %v1082 = vpop.f32.mrb[0].mxu0
    %v1083 = vadd.f32 %v223, %v1082
    %v1084 = vpop.f32.mrb[0].mxu0
    %v1085 = vadd.f32 %v224, %v1084
    %1086 = vmatprep.mubr.bf16.mxu0 0
    %1087 = vmatmul.mubr.bf16.gmra.mrb[0].mxu0 %v994
    %v1088 = vpop.f32.mrb[0].mxu0
    %v1089 = vadd.f32 %v225, %v1088
    %v1090 = vpop.f32.mrb[0].mxu0
    %v1091 = vadd.f32 %v226, %v1090
    %v1092 = vpop.f32.mrb[0].mxu0
    %v1093 = vadd.f32 %v227, %v1092
    %v1094 = vpop.f32.mrb[0].mxu0
    %v1095 = vadd.f32 %v228, %v1094
    %1096 = vdwg.mxu0
    %v1097 = vmax.f32 %v1079, %v1081
    %1098 = vmax.xlane.f32.xlu0 %v1097
    %v1099 = vpop.xlane.xlu0 %1098
    %v1100 = vmax.f32 %v1083, %v1085
    %1101 = vmax.xlane.f32.xlu0 %v1100
    %v1102 = vpop.xlane.xlu0 %1101
    %v1103 = vmax.f32 %v1089, %v1091
    %1104 = vmax.xlane.f32.xlu0 %v1103
    %v1105 = vpop.xlane.xlu0 %1104
    %v1106 = vmax.f32 %v1093, %v1095
    %1107 = vmax.xlane.f32.xlu0 %v1106
    %v1108 = vpop.xlane.xlu0 %1107
    %v1109 = vsub.f32 %v1079, %v1099
    %v1110 = vsub.f32 %v1081, %v1099
    %v1111 = vsub.f32 %v1083, %v1102
    %v1112 = vsub.f32 %v1085, %v1102
    %v1113 = vsub.f32 %v1089, %v1105
    %v1114 = vsub.f32 %v1091, %v1105
    %v1115 = vsub.f32 %v1093, %v1108
    %v1116 = vsub.f32 %v1095, %v1108
    %v1117 = vmul.f32 %v1109, 1.442695
    %v1118 = vpow.pop %v1117
    %v1119 = vmul.f32 %v1110, 1.442695
    %v1120 = vpow.pop %v1119
    %v1121 = vmul.f32 %v1111, 1.442695
    %v1122 = vpow.pop %v1121
    %v1123 = vmul.f32 %v1112, 1.442695
    %v1124 = vpow.pop %v1123
    %v1125 = vmul.f32 %v1113, 1.442695
    %v1126 = vpow.pop %v1125
    %v1127 = vmul.f32 %v1114, 1.442695
    %v1128 = vpow.pop %v1127
    %v1129 = vmul.f32 %v1115, 1.442695
    %v1130 = vpow.pop %v1129
    %v1131 = vmul.f32 %v1116, 1.442695
    %v1132 = vpow.pop %v1131
    %v1133 = vpack.c.bf16 %v1122, %v1118
    %v1134 = vpack.c.bf16 %v1124, %v1120
    %v1135 = vpack.c.bf16 %v1130, %v1126
    %v1136 = vpack.c.bf16 %v1132, %v1128
    %1137 = vmatprep.subr.bf16.mxu0 0
    %1138 = vmatpush1.bf16.msra.mxu0 %v974
    %1139 = vmatprep.subr.bf16.mxu0 0
    %1140 = vmatpush1.bf16.msra.mxu0 %v975
    %1141 = vmatprep.subr.bf16.mxu0 0
    %1142 = vmatpush1.bf16.msra.mxu0 %v976
    %1143 = vmatprep.subr.bf16.mxu0 0
    %1144 = vmatpush1.bf16.msra.mxu0 %v977
    %1145 = vmatprep.subr.bf16.mxu0 0
    %1146 = vmatpush1.bf16.msra.mxu0 %v978
    %1147 = vmatprep.subr.bf16.mxu0 0
    %1148 = vmatpush1.bf16.msra.mxu0 %v979
    %1149 = vmatprep.subr.bf16.mxu0 0
    %1150 = vmatpush1.bf16.msra.mxu0 %v980
    %1151 = vmatprep.subr.bf16.mxu0 0
    %1152 = vmatpush1.bf16.msra.mxu0 %v981
    %1153 = vmatprep.subr.bf16.mxu0 0
    %1154 = vmatpush1.bf16.msra.mxu0 %v982
    %1155 = vmatprep.subr.bf16.mxu0 0
    %1156 = vmatpush1.bf16.msra.mxu0 %v983
    %1157 = vmatprep.subr.bf16.mxu0 0
    %1158 = vmatpush1.bf16.msra.mxu0 %v984
    %1159 = vmatprep.subr.bf16.mxu0 0
    %1160 = vmatpush1.bf16.msra.mxu0 %v985
    %1161 = vmatprep.subr.bf16.mxu0 0
    %1162 = vmatpush1.bf16.msra.mxu0 %v986
    %1163 = vmatprep.subr.bf16.mxu0 0
    %1164 = vmatpush1.bf16.msra.mxu0 %v987
    %1165 = vmatprep.subr.bf16.mxu0 0
    %1166 = vmatpush1.bf16.msra.mxu0 %v988
    %1167 = vmatprep.subr.bf16.mxu0 0
    %1168 = vmatpush1.bf16.msra.mxu0 %v989
    %1169 = vmatprep.mubr.bf16.mxu0 %v1134
    %1170 = vmatmul.mubr.bf16.gmra.mrb[0].mxu0 %v1133
    %v1171 = vpop.f32.mrb[0].mxu0
    %v1172 = vadd.f32 0.0, %v1171
    %v1173 = vpop.f32.mrb[0].mxu0
    %v1174 = vpop.f32.mrb[0].mxu0
    %v1175 = vadd.f32 0.0, %v1174
    %v1176 = vpop.f32.mrb[0].mxu0
    %1177 = vmatprep.mubr.bf16.mxu0 %v1136
    %1178 = vmatmul.mubr.bf16.gmra.mrb[0].mxu0 %v1135
    %v1179 = vpop.f32.mrb[0].mxu0
    %v1180 = vadd.f32 0.0, %v1179
    %v1181 = vpop.f32.mrb[0].mxu0
    %v1182 = vpop.f32.mrb[0].mxu0
    %v1183 = vadd.f32 0.0, %v1182
    %v1184 = vpop.f32.mrb[0].mxu0
    %1185 = vdwg.mxu0
    %v1218 = vunpack.c.l.b16 %v189
    %v1219 = vunpack.c.l.b16 %v190
    %v1220 = vunpack.c.l.b16 %v191
    %v1221 = vunpack.c.l.b16 %v192
    %v1222 = vunpack.c.l.b16 %v193
    %v1223 = vunpack.c.l.b16 %v194
    %v1224 = vunpack.c.l.b16 %v195
    %v1225 = vunpack.c.l.b16 %v196
    %v1226 = vunpack.c.l.b16 %v197
    %v1227 = vunpack.c.l.b16 %v198
    %v1228 = vunpack.c.l.b16 %v199
    %v1229 = vunpack.c.l.b16 %v200
    %v1230 = vunpack.c.l.b16 %v201
    %v1231 = vunpack.c.l.b16 %v202
    %v1232 = vunpack.c.l.b16 %v203
    %v1233 = vunpack.c.l.b16 %v204
    %v1234 = vunpack.c.l.b16 %v205
    %v1235 = vunpack.c.l.b16 %v206
    %v1236 = vunpack.c.l.b16 %v207
    %v1237 = vunpack.c.l.b16 %v208
    %v1238 = vunpack.c.l.b16 %v209
    %v1239 = vunpack.c.l.b16 %v210
    %v1240 = vunpack.c.l.b16 %v211
    %v1241 = vunpack.c.l.b16 %v212
    %v1242 = vunpack.c.l.b16 %v213
    %v1243 = vunpack.c.l.b16 %v214
    %v1244 = vunpack.c.l.b16 %v215
    %v1245 = vunpack.c.l.b16 %v216
    %v1246 = vunpack.c.l.b16 %v217
    %v1247 = vunpack.c.l.b16 %v218
    %v1248 = vunpack.c.l.b16 %v219
    %v1249 = vunpack.c.l.b16 %v220
    %v1250 = vpack.c.b16 %v1219, %v1218
    %v1251 = vpack.c.b16 %v1221, %v1220
    %v1252 = vpack.c.b16 %v1223, %v1222
    %v1253 = vpack.c.b16 %v1225, %v1224
    %v1254 = vpack.c.b16 %v1227, %v1226
    %v1255 = vpack.c.b16 %v1229, %v1228
    %v1256 = vpack.c.b16 %v1231, %v1230
    %v1257 = vpack.c.b16 %v1233, %v1232
    %v1258 = vpack.c.b16 %v1235, %v1234
    %v1259 = vpack.c.b16 %v1237, %v1236
    %v1260 = vpack.c.b16 %v1239, %v1238
    %v1261 = vpack.c.b16 %v1241, %v1240
    %v1262 = vpack.c.b16 %v1243, %v1242
    %v1263 = vpack.c.b16 %v1245, %v1244
    %v1264 = vpack.c.b16 %v1247, %v1246
    %v1265 = vpack.c.b16 %v1249, %v1248
    %1282 = vmatprep.subr.bf16.mxu0 0
    %1283 = vmatpush1.bf16.msra.mxu0 %v1250
    %1284 = vmatprep.subr.bf16.mxu0 0
    %1285 = vmatpush1.bf16.msra.mxu0 %v1251
    %1286 = vmatprep.subr.bf16.mxu0 0
    %1287 = vmatpush1.bf16.msra.mxu0 %v1252
    %1288 = vmatprep.subr.bf16.mxu0 0
    %1289 = vmatpush1.bf16.msra.mxu0 %v1253
    %1290 = vmatprep.subr.bf16.mxu0 0
    %1291 = vmatpush1.bf16.msra.mxu0 %v1254
    %1292 = vmatprep.subr.bf16.mxu0 0
    %1293 = vmatpush1.bf16.msra.mxu0 %v1255
    %1294 = vmatprep.subr.bf16.mxu0 0
    %1295 = vmatpush1.bf16.msra.mxu0 %v1256
    %1296 = vmatprep.subr.bf16.mxu0 0
    %1297 = vmatpush1.bf16.msra.mxu0 %v1257
    %1298 = vmatprep.subr.bf16.mxu0 0
    %1299 = vmatpush1.bf16.msra.mxu0 %v1258
    %1300 = vmatprep.subr.bf16.mxu0 0
    %1301 = vmatpush1.bf16.msra.mxu0 %v1259
    %1302 = vmatprep.subr.bf16.mxu0 0
    %1303 = vmatpush1.bf16.msra.mxu0 %v1260
    %1304 = vmatprep.subr.bf16.mxu0 0
    %1305 = vmatpush1.bf16.msra.mxu0 %v1261
    %1306 = vmatprep.subr.bf16.mxu0 0
    %1307 = vmatpush1.bf16.msra.mxu0 %v1262
    %1308 = vmatprep.subr.bf16.mxu0 0
    %1309 = vmatpush1.bf16.msra.mxu0 %v1263
    %1310 = vmatprep.subr.bf16.mxu0 0
    %1311 = vmatpush1.bf16.msra.mxu0 %v1264
    %1312 = vmatprep.subr.bf16.mxu0 0
    %1313 = vmatpush1.bf16.msra.mxu0 %v1265
    %1314 = vmatprep.mubr.bf16.mxu0 %v1134
    %1315 = vmatmul.mubr.bf16.gmra.mrb[0].mxu0 %v1133
    %v1316 = vpop.f32.mrb[0].mxu0
    %v1317 = vadd.f32 0.0, %v1316
    %v1318 = vpop.f32.mrb[0].mxu0
    %v1319 = vpop.f32.mrb[0].mxu0
    %v1320 = vadd.f32 0.0, %v1319
    %v1321 = vpop.f32.mrb[0].mxu0
    %1322 = vmatprep.mubr.bf16.mxu0 %v1136
    %1323 = vmatmul.mubr.bf16.gmra.mrb[0].mxu0 %v1135
    %v1324 = vpop.f32.mrb[0].mxu0
    %v1325 = vadd.f32 0.0, %v1324
    %v1326 = vpop.f32.mrb[0].mxu0
    %v1327 = vpop.f32.mrb[0].mxu0
    %v1328 = vadd.f32 0.0, %v1327
    %v1329 = vpop.f32.mrb[0].mxu0
    %1330 = vdwg.mxu0
    %v1331 = vrcp.pop %v1317
    %v1332 = vrcp.pop %v1320
    %v1333 = vrcp.pop %v1325
    %v1334 = vrcp.pop %v1328
    %v1335 = vmul.f32 %v1172, %v1331
    %v1336 = vmul.f32 %v1175, %v1332
    %v1337 = vmul.f32 %v1180, %v1333
    %v1338 = vmul.f32 %v1183, %v1334
    %v1339 = vld [vmem:[%s12] sm:$0x7f]
    %v1340 = vpack.c.bf16 %v1336, %v1335
    %v1341 = vpack.c.bf16 %v1338, %v1337
    %v1342 = vld [vmem:[%s9] sm:$0xf]
    %v1343 = vld [vmem:[%s9 + $0x4] sm:$0xf]
    %v1344 = vld [vmem:[%s9 + $0x8] sm:$0xf]
    %v1345 = vld [vmem:[%s9 + $0xc] sm:$0xf]
    %v1346 = vld [vmem:[%s9 + $0x10] sm:$0xf]
    %v1347 = vld [vmem:[%s9 + $0x14] sm:$0xf]
    %v1348 = vld [vmem:[%s9 + $0x18] sm:$0xf]
    %v1349 = vld [vmem:[%s9 + $0x1c] sm:$0xf]
    %v1350 = vlaneseq
    %v1351 = vshrl.u32 %v1350, 7
    %v1352 = vsub.s32 1, %v1351
    %v1353 = vrot.slane %v1339, %v1352
    %v1362 = vunpack.c.l.b16 %v1342
    %v1363 = vunpack.c.l.b16 %v1343
    %v1364 = vunpack.c.l.b16 %v1344
    %v1365 = vunpack.c.l.b16 %v1345
    %v1366 = vunpack.c.l.b16 %v1346
    %v1367 = vunpack.c.l.b16 %v1347
    %v1368 = vunpack.c.l.b16 %v1348
    %v1369 = vunpack.c.l.b16 %v1349
    %v1370 = vpack.c.b16 %v1363, %v1362
    %v1371 = vpack.c.b16 %v1365, %v1364
    %v1372 = vpack.c.b16 %v1367, %v1366
    %v1373 = vpack.c.b16 %v1369, %v1368
    %v1379 = vsel %vm328, %v1340, 0
    %v1382 = vsel %vm328, %v1341, 0
    %1384 = vmatprep.subr.bf16.mxu0 0
    %1385 = vmatpush1.bf16.msra.mxu0 %v1370
    %1386 = vmatprep.subr.bf16.mxu0 0
    %1387 = vmatpush1.bf16.msra.mxu0 %v1371
    %1388 = vmatprep.subr.bf16.mxu0 0
    %1389 = vmatpush1.bf16.msra.mxu0 %v1372
    %1390 = vmatprep.subr.bf16.mxu0 0
    %1391 = vmatpush1.bf16.msra.mxu0 %v1373
    %1392 = vmatprep.subr.bf16.mxu0 0
    %1393 = vmatpush1.bf16.msra.mxu0 0
    %1394 = vmatprep.subr.bf16.mxu0 0
    %1395 = vmatpush1.bf16.msra.mxu0 0
    %1396 = vmatprep.subr.bf16.mxu0 0
    %1397 = vmatpush1.bf16.msra.mxu0 0
    %1398 = vmatprep.subr.bf16.mxu0 0
    %1399 = vmatpush1.bf16.msra.mxu0 0
    %1400 = vmatprep.subr.bf16.mxu0 0
    %1401 = vmatpush1.bf16.msra.mxu0 0
    %1402 = vmatprep.subr.bf16.mxu0 0
    %1403 = vmatpush1.bf16.msra.mxu0 0
    %1404 = vmatprep.subr.bf16.mxu0 0
    %1405 = vmatpush1.bf16.msra.mxu0 0
    %1406 = vmatprep.subr.bf16.mxu0 0
    %1407 = vmatpush1.bf16.msra.mxu0 0
    %1408 = vmatprep.subr.bf16.mxu0 0
    %1409 = vmatpush1.bf16.msra.mxu0 0
    %1410 = vmatprep.subr.bf16.mxu0 0
    %1411 = vmatpush1.bf16.msra.mxu0 0
    %1412 = vmatprep.subr.bf16.mxu0 0
    %1413 = vmatpush1.bf16.msra.mxu0 0
    %1414 = vmatprep.subr.bf16.mxu0 0
    %1415 = vmatpush1.bf16.msra.mxu0 0
    %1416 = vmatprep.mubr.bf16.mxu0 0
    %1417 = vmatmul.mubr.bf16.gmra.mrb[0].mxu0 %v1379
    %v1418 = vpop.f32.mrb[0].mxu0
    %v1419 = vadd.f32 %v1353, %v1418
    %v1420 = vpop.f32.mrb[0].mxu0
    %v1421 = vpop.f32.mrb[0].mxu0
    %v1422 = vadd.f32 %v1353, %v1421
    %v1423 = vpop.f32.mrb[0].mxu0
    %1424 = vmatprep.mubr.bf16.mxu0 0
    %1425 = vmatmul.mubr.bf16.gmra.mrb[0].mxu0 %v1382
    %v1426 = vpop.f32.mrb[0].mxu0
    %v1427 = vadd.f32 %v1353, %v1426
    %v1428 = vpop.f32.mrb[0].mxu0
    %v1429 = vpop.f32.mrb[0].mxu0
    %v1430 = vadd.f32 %v1353, %v1429
    %v1431 = vpop.f32.mrb[0].mxu0
    %1432 = vdwg.mxu0
    %v1433 = vadd.f32 %v111, %v1419
    %v1434 = vadd.f32 %v114, %v1422
    %v1435 = vadd.f32 %v119, %v1427
    %v1436 = vadd.f32 %v122, %v1430
    %v1437 = vsel %vm328, %v1433, 0.0
    %1438 = vadd.xlane.f32.xlu0 %v1437
    %v1439 = vpop.xlane.xlu0 %1438
    %v1440 = vsel %vm328, %v1434, 0.0
    %1441 = vadd.xlane.f32.xlu0 %v1440
    %v1442 = vpop.xlane.xlu0 %1441
    %v1443 = vsel %vm328, %v1435, 0.0
    %1444 = vadd.xlane.f32.xlu0 %v1443
    %v1445 = vpop.xlane.xlu0 %1444
    %v1446 = vsel %vm328, %v1436, 0.0
    %1447 = vadd.xlane.f32.xlu0 %v1446
    %v1448 = vpop.xlane.xlu0 %1447
    %v1449 = vrcp.pop 64.0
    %v1450 = vmul.f32 %v1439, %v1449
    %v1451 = vmul.f32 %v1442, %v1449
    %v1452 = vmul.f32 %v1445, %v1449
    %v1453 = vmul.f32 %v1448, %v1449
    %v1454 = vsub.f32 %v1433, %v1450
    %v1455 = vsub.f32 %v1434, %v1451
    %v1456 = vsub.f32 %v1435, %v1452
    %v1457 = vsub.f32 %v1436, %v1453
    %v1458 = vmul.f32 %v1454, %v1454
    %v1459 = vmul.f32 %v1455, %v1455
    %v1460 = vmul.f32 %v1456, %v1456
    %v1461 = vmul.f32 %v1457, %v1457
    %v1462 = vsel %vm328, %v1458, 0.0
    %1463 = vadd.xlane.f32.xlu0 %v1462
    %v1464 = vpop.xlane.xlu0 %1463
    %v1465 = vsel %vm328, %v1459, 0.0
    %1466 = vadd.xlane.f32.xlu0 %v1465
    %v1467 = vpop.xlane.xlu0 %1466
    %v1468 = vsel %vm328, %v1460, 0.0
    %1469 = vadd.xlane.f32.xlu0 %v1468
    %v1470 = vpop.xlane.xlu0 %1469
    %v1471 = vsel %vm328, %v1461, 0.0
    %1472 = vadd.xlane.f32.xlu0 %v1471
    %v1473 = vpop.xlane.xlu0 %1472
    %v1474 = vmul.f32 %v1464, %v1449
    %v1475 = vmul.f32 %v1467, %v1449
    %v1476 = vmul.f32 %v1470, %v1449
    %v1477 = vmul.f32 %v1473, %v1449
    %v1478 = vadd.f32 %v1474, 1e-05
    %v1479 = vadd.f32 %v1475, 1e-05
    %v1480 = vadd.f32 %v1476, 1e-05
    %v1481 = vadd.f32 %v1477, 1e-05
    %v1482 = vrsqrt.pop %v1478
    %v1483 = vrsqrt.pop %v1479
    %v1484 = vrsqrt.pop %v1480
    %v1485 = vrsqrt.pop %v1481
    %v1486 = vmul.f32 %v1454, %v1482
    %v1487 = vmul.f32 %v1455, %v1483
    %v1488 = vmul.f32 %v1456, %v1484
    %v1489 = vmul.f32 %v1457, %v1485
    %v1490 = vlaneseq
    %v1491 = vshrl.u32 %v1490, 7
    %v1492 = vsub.s32 2, %v1491
    %v1493 = vrot.slane %v1339, %v1492
    %v1494 = vmul.f32 %v1486, %v1493
    %v1495 = vmul.f32 %v1487, %v1493
    %v1496 = vmul.f32 %v1488, %v1493
    %v1497 = vmul.f32 %v1489, %v1493
    %v1498 = vlaneseq
    %v1499 = vshrl.u32 %v1498, 7
    %v1500 = vsub.s32 3, %v1499
    %v1501 = vrot.slane %v1339, %v1500
    %v1502 = vadd.f32 %v1494, %v1501
    %v1503 = vadd.f32 %v1495, %v1501
    %v1504 = vadd.f32 %v1496, %v1501
    %v1505 = vadd.f32 %v1497, %v1501
    %v1506 = vpack.c.bf16 %v1503, %v1502
    %v1507 = vpack.c.bf16 %v1505, %v1504
    %v1508 = vld [vmem:[%s10] sm:$0xf]
    %v1509 = vld [vmem:[%s10 + $0x4] sm:$0xf]
    %v1510 = vld [vmem:[%s10 + $0x8] sm:$0xf]
    %v1511 = vld [vmem:[%s10 + $0xc] sm:$0xf]
    %v1512 = vld [vmem:[%s10 + $0x10] sm:$0xf]
    %v1513 = vld [vmem:[%s10 + $0x14] sm:$0xf]
    %v1514 = vld [vmem:[%s10 + $0x18] sm:$0xf]
    %v1515 = vld [vmem:[%s10 + $0x1c] sm:$0xf]
    %v1516 = vlaneseq
    %v1517 = vshrl.u32 %v1516, 7
    %v1518 = vsub.s32 0, %v1517
    %v1519 = vrot.slane %v1339, %v1518
    %v1528 = vunpack.c.l.b16 %v1508
    %v1529 = vunpack.c.l.b16 %v1509
    %v1530 = vunpack.c.l.b16 %v1510
    %v1531 = vunpack.c.l.b16 %v1511
    %v1532 = vunpack.c.l.b16 %v1512
    %v1533 = vunpack.c.l.b16 %v1513
    %v1534 = vunpack.c.l.b16 %v1514
    %v1535 = vunpack.c.l.b16 %v1515
    %v1536 = vpack.c.b16 %v1529, %v1528
    %v1537 = vpack.c.b16 %v1531, %v1530
    %v1538 = vpack.c.b16 %v1533, %v1532
    %v1539 = vpack.c.b16 %v1535, %v1534
    %v1545 = vsel %vm328, %v1506, 0
    %v1548 = vsel %vm328, %v1507, 0
    %1550 = vmatprep.subr.bf16.mxu0 0
    %1551 = vmatpush1.bf16.msra.mxu0 %v1536
    %1552 = vmatprep.subr.bf16.mxu0 0
    %1553 = vmatpush1.bf16.msra.mxu0 %v1537
    %1554 = vmatprep.subr.bf16.mxu0 0
    %1555 = vmatpush1.bf16.msra.mxu0 %v1538
    %1556 = vmatprep.subr.bf16.mxu0 0
    %1557 = vmatpush1.bf16.msra.mxu0 %v1539
    %1558 = vmatprep.subr.bf16.mxu0 0
    %1559 = vmatpush1.bf16.msra.mxu0 0
    %1560 = vmatprep.subr.bf16.mxu0 0
    %1561 = vmatpush1.bf16.msra.mxu0 0
    %1562 = vmatprep.subr.bf16.mxu0 0
    %1563 = vmatpush1.bf16.msra.mxu0 0
    %1564 = vmatprep.subr.bf16.mxu0 0
    %1565 = vmatpush1.bf16.msra.mxu0 0
    %1566 = vmatprep.subr.bf16.mxu0 0
    %1567 = vmatpush1.bf16.msra.mxu0 0
    %1568 = vmatprep.subr.bf16.mxu0 0
    %1569 = vmatpush1.bf16.msra.mxu0 0
    %1570 = vmatprep.subr.bf16.mxu0 0
    %1571 = vmatpush1.bf16.msra.mxu0 0
    %1572 = vmatprep.subr.bf16.mxu0 0
    %1573 = vmatpush1.bf16.msra.mxu0 0
    %1574 = vmatprep.subr.bf16.mxu0 0
    %1575 = vmatpush1.bf16.msra.mxu0 0
    %1576 = vmatprep.subr.bf16.mxu0 0
    %1577 = vmatpush1.bf16.msra.mxu0 0
    %1578 = vmatprep.subr.bf16.mxu0 0
    %1579 = vmatpush1.bf16.msra.mxu0 0
    %1580 = vmatprep.subr.bf16.mxu0 0
    %1581 = vmatpush1.bf16.msra.mxu0 0
    %1582 = vmatprep.mubr.bf16.mxu0 0
    %1583 = vmatmul.mubr.bf16.gmra.mrb[0].mxu0 %v1545
    %v1584 = vpop.f32.mrb[0].mxu0
    %v1585 = vadd.f32 %v1519, %v1584
    %v1586 = vpop.f32.mrb[0].mxu0
    %v1587 = vpop.f32.mrb[0].mxu0
    %v1588 = vadd.f32 %v1519, %v1587
    %v1589 = vpop.f32.mrb[0].mxu0
    %1590 = vmatprep.mubr.bf16.mxu0 0
    %1591 = vmatmul.mubr.bf16.gmra.mrb[0].mxu0 %v1548
    %v1592 = vpop.f32.mrb[0].mxu0
    %v1593 = vadd.f32 %v1519, %v1592
    %v1594 = vpop.f32.mrb[0].mxu0
    %v1595 = vpop.f32.mrb[0].mxu0
    %v1596 = vadd.f32 %v1519, %v1595
    %v1597 = vpop.f32.mrb[0].mxu0
    %1598 = vdwg.mxu0
    %v1599 = vmax.f32 %v1585, 0.0
    %v1600 = vmax.f32 %v1588, 0.0
    %v1601 = vmax.f32 %v1593, 0.0
    %v1602 = vmax.f32 %v1596, 0.0
    %v1603 = vpack.c.bf16 %v1600, %v1599
    %v1604 = vpack.c.bf16 %v1602, %v1601
    %v1605 = vld [vmem:[%s11] sm:$0xf]
    %v1606 = vld [vmem:[%s11 + $0x4] sm:$0xf]
    %v1607 = vld [vmem:[%s11 + $0x8] sm:$0xf]
    %v1608 = vld [vmem:[%s11 + $0xc] sm:$0xf]
    %v1609 = vld [vmem:[%s11 + $0x10] sm:$0xf]
    %v1610 = vld [vmem:[%s11 + $0x14] sm:$0xf]
    %v1611 = vld [vmem:[%s11 + $0x18] sm:$0xf]
    %v1612 = vld [vmem:[%s11 + $0x1c] sm:$0xf]
    %v1613 = vld [vmem:[%s11 + $0x20] sm:$0xf]
    %v1614 = vld [vmem:[%s11 + $0x24] sm:$0xf]
    %v1615 = vld [vmem:[%s11 + $0x28] sm:$0xf]
    %v1616 = vld [vmem:[%s11 + $0x2c] sm:$0xf]
    %v1617 = vld [vmem:[%s11 + $0x30] sm:$0xf]
    %v1618 = vld [vmem:[%s11 + $0x34] sm:$0xf]
    %v1619 = vld [vmem:[%s11 + $0x38] sm:$0xf]
    %v1620 = vld [vmem:[%s11 + $0x3c] sm:$0xf]
    %v1621 = vlaneseq
    %v1622 = vshrl.u32 %v1621, 7
    %v1623 = vsub.s32 4, %v1622
    %v1624 = vrot.slane %v1339, %v1623
    %v1641 = vunpack.c.l.b16 %v1605
    %v1642 = vunpack.c.l.b16 %v1606
    %v1643 = vunpack.c.l.b16 %v1607
    %v1644 = vunpack.c.l.b16 %v1608
    %v1645 = vunpack.c.l.b16 %v1609
    %v1646 = vunpack.c.l.b16 %v1610
    %v1647 = vunpack.c.l.b16 %v1611
    %v1648 = vunpack.c.l.b16 %v1612
    %v1649 = vunpack.c.l.b16 %v1613
    %v1650 = vunpack.c.l.b16 %v1614
    %v1651 = vunpack.c.l.b16 %v1615
    %v1652 = vunpack.c.l.b16 %v1616
    %v1653 = vunpack.c.l.b16 %v1617
    %v1654 = vunpack.c.l.b16 %v1618
    %v1655 = vunpack.c.l.b16 %v1619
    %v1656 = vunpack.c.l.b16 %v1620
    %v1657 = vpack.c.b16 %v1642, %v1641
    %v1658 = vpack.c.b16 %v1644, %v1643
    %v1659 = vpack.c.b16 %v1646, %v1645
    %v1660 = vpack.c.b16 %v1648, %v1647
    %v1661 = vpack.c.b16 %v1650, %v1649
    %v1662 = vpack.c.b16 %v1652, %v1651
    %v1663 = vpack.c.b16 %v1654, %v1653
    %v1664 = vpack.c.b16 %v1656, %v1655
    %1673 = vmatprep.subr.bf16.mxu0 0
    %1674 = vmatpush1.bf16.msra.mxu0 %v1657
    %1675 = vmatprep.subr.bf16.mxu0 0
    %1676 = vmatpush1.bf16.msra.mxu0 %v1658
    %1677 = vmatprep.subr.bf16.mxu0 0
    %1678 = vmatpush1.bf16.msra.mxu0 %v1659
    %1679 = vmatprep.subr.bf16.mxu0 0
    %1680 = vmatpush1.bf16.msra.mxu0 %v1660
    %1681 = vmatprep.subr.bf16.mxu0 0
    %1682 = vmatpush1.bf16.msra.mxu0 %v1661
    %1683 = vmatprep.subr.bf16.mxu0 0
    %1684 = vmatpush1.bf16.msra.mxu0 %v1662
    %1685 = vmatprep.subr.bf16.mxu0 0
    %1686 = vmatpush1.bf16.msra.mxu0 %v1663
    %1687 = vmatprep.subr.bf16.mxu0 0
    %1688 = vmatpush1.bf16.msra.mxu0 %v1664
    %1689 = vmatprep.subr.bf16.mxu0 0
    %1690 = vmatpush1.bf16.msra.mxu0 0
    %1691 = vmatprep.subr.bf16.mxu0 0
    %1692 = vmatpush1.bf16.msra.mxu0 0
    %1693 = vmatprep.subr.bf16.mxu0 0
    %1694 = vmatpush1.bf16.msra.mxu0 0
    %1695 = vmatprep.subr.bf16.mxu0 0
    %1696 = vmatpush1.bf16.msra.mxu0 0
    %1697 = vmatprep.subr.bf16.mxu0 0
    %1698 = vmatpush1.bf16.msra.mxu0 0
    %1699 = vmatprep.subr.bf16.mxu0 0
    %1700 = vmatpush1.bf16.msra.mxu0 0
    %1701 = vmatprep.subr.bf16.mxu0 0
    %1702 = vmatpush1.bf16.msra.mxu0 0
    %1703 = vmatprep.subr.bf16.mxu0 0
    %1704 = vmatpush1.bf16.msra.mxu0 0
    %1705 = vmatprep.mubr.bf16.mxu0 0
    %1706 = vmatmul.mubr.bf16.gmra.mrb[0].mxu0 %v1603
    %v1707 = vpop.f32.mrb[0].mxu0
    %v1708 = vadd.f32 %v1624, %v1707
    %v1709 = vpop.f32.mrb[0].mxu0
    %v1710 = vpop.f32.mrb[0].mxu0
    %v1711 = vadd.f32 %v1624, %v1710
    %v1712 = vpop.f32.mrb[0].mxu0
    %1713 = vmatprep.mubr.bf16.mxu0 0
    %1714 = vmatmul.mubr.bf16.gmra.mrb[0].mxu0 %v1604
    %v1715 = vpop.f32.mrb[0].mxu0
    %v1716 = vadd.f32 %v1624, %v1715
    %v1717 = vpop.f32.mrb[0].mxu0
    %v1718 = vpop.f32.mrb[0].mxu0
    %v1719 = vadd.f32 %v1624, %v1718
    %v1720 = vpop.f32.mrb[0].mxu0
    %1721 = vdwg.mxu0
    %v1722 = vadd.f32 %v1502, %v1708
    %v1723 = vadd.f32 %v1503, %v1711
    %v1724 = vadd.f32 %v1504, %v1716
    %v1725 = vadd.f32 %v1505, %v1719
    %v1726 = vsel %vm328, %v1722, 0.0
    %1727 = vadd.xlane.f32.xlu0 %v1726
    %v1728 = vpop.xlane.xlu0 %1727
    %v1729 = vsel %vm328, %v1723, 0.0
    %1730 = vadd.xlane.f32.xlu0 %v1729
    %v1731 = vpop.xlane.xlu0 %1730
    %v1732 = vsel %vm328, %v1724, 0.0
    %1733 = vadd.xlane.f32.xlu0 %v1732
    %v1734 = vpop.xlane.xlu0 %1733
    %v1735 = vsel %vm328, %v1725, 0.0
    %1736 = vadd.xlane.f32.xlu0 %v1735
    %v1737 = vpop.xlane.xlu0 %1736
    %v1738 = vmul.f32 %v1728, %v1449
    %v1739 = vmul.f32 %v1731, %v1449
    %v1740 = vmul.f32 %v1734, %v1449
    %v1741 = vmul.f32 %v1737, %v1449
    %v1742 = vsub.f32 %v1722, %v1738
    %v1743 = vsub.f32 %v1723, %v1739
    %v1744 = vsub.f32 %v1724, %v1740
    %v1745 = vsub.f32 %v1725, %v1741
    %v1746 = vmul.f32 %v1742, %v1742
    %v1747 = vmul.f32 %v1743, %v1743
    %v1748 = vmul.f32 %v1744, %v1744
    %v1749 = vmul.f32 %v1745, %v1745
    %v1750 = vsel %vm328, %v1746, 0.0
    %1751 = vadd.xlane.f32.xlu0 %v1750
    %v1752 = vpop.xlane.xlu0 %1751
    %v1753 = vsel %vm328, %v1747, 0.0
    %1754 = vadd.xlane.f32.xlu0 %v1753
    %v1755 = vpop.xlane.xlu0 %1754
    %v1756 = vsel %vm328, %v1748, 0.0
    %1757 = vadd.xlane.f32.xlu0 %v1756
    %v1758 = vpop.xlane.xlu0 %1757
    %v1759 = vsel %vm328, %v1749, 0.0
    %1760 = vadd.xlane.f32.xlu0 %v1759
    %v1761 = vpop.xlane.xlu0 %1760
    %v1762 = vmul.f32 %v1752, %v1449
    %v1763 = vmul.f32 %v1755, %v1449
    %v1764 = vmul.f32 %v1758, %v1449
    %v1765 = vmul.f32 %v1761, %v1449
    %v1766 = vadd.f32 %v1762, 1e-05
    %v1767 = vadd.f32 %v1763, 1e-05
    %v1768 = vadd.f32 %v1764, 1e-05
    %v1769 = vadd.f32 %v1765, 1e-05
    %v1770 = vrsqrt.pop %v1766
    %v1771 = vrsqrt.pop %v1767
    %v1772 = vrsqrt.pop %v1768
    %v1773 = vrsqrt.pop %v1769
    %v1774 = vmul.f32 %v1742, %v1770
    %v1775 = vmul.f32 %v1743, %v1771
    %v1776 = vmul.f32 %v1744, %v1772
    %v1777 = vmul.f32 %v1745, %v1773
    %v1778 = vlaneseq
    %v1779 = vshrl.u32 %v1778, 7
    %v1780 = vsub.s32 5, %v1779
    %v1781 = vrot.slane %v1339, %v1780
    %v1782 = vmul.f32 %v1774, %v1781
    %v1783 = vmul.f32 %v1775, %v1781
    %v1784 = vmul.f32 %v1776, %v1781
    %v1785 = vmul.f32 %v1777, %v1781
    %v1786 = vlaneseq
    %v1787 = vshrl.u32 %v1786, 7
    %v1788 = vsub.s32 6, %v1787
    %v1789 = vrot.slane %v1339, %v1788
    %v1790 = vadd.f32 %v1782, %v1789
    %v1791 = vadd.f32 %v1783, %v1789
    %v1792 = vadd.f32 %v1784, %v1789
    %v1793 = vadd.f32 %v1785, %v1789
    %v1794 = vpack.c.bf16 %v1791, %v1790
    %v1795 = vpack.c.bf16 %v1793, %v1792
    %s1796 = scalar_lea.vmem %s7, 96
    %v1797 = vld [vmem:[%s1796] sm:$0xff]
    %v1798 = vld [vmem:[%s1796 + $0x8] sm:$0xf]
    %v1799 = vld [vmem:[%s1796 + $0xc] sm:$0xff]
    %v1800 = vld [vmem:[%s1796 + $0x14] sm:$0xf]
    %v1801 = vld [vmem:[%s1796 + $0x18] sm:$0xff]
    %v1802 = vld [vmem:[%s1796 + $0x20] sm:$0xf]
    %v1803 = vld [vmem:[%s1796 + $0x24] sm:$0xff]
    %v1804 = vld [vmem:[%s1796 + $0x2c] sm:$0xf]
    %v1805 = vld [vmem:[%s1796 + $0x30] sm:$0xff]
    %v1806 = vld [vmem:[%s1796 + $0x38] sm:$0xf]
    %v1807 = vld [vmem:[%s1796 + $0x3c] sm:$0xff]
    %v1808 = vld [vmem:[%s1796 + $0x44] sm:$0xf]
    %v1809 = vld [vmem:[%s1796 + $0x48] sm:$0xff]
    %v1810 = vld [vmem:[%s1796 + $0x50] sm:$0xf]
    %v1811 = vld [vmem:[%s1796 + $0x54] sm:$0xff]
    %v1812 = vld [vmem:[%s1796 + $0x5c] sm:$0xf]
    %s1813 = scalar_lea.vmem %s8, 3
    %v1814 = vld [vmem:[%s1813] sm:$0x7]
    %v1816 = vlaneseq
    %v1817 = vshrl.u32 %v1816, 7
    %v1818 = vsub.s32 0, %v1817
    %v1819 = vrot.slane %v1814, %v1818
    %v1820 = vlaneseq
    %v1821 = vshrl.u32 %v1820, 7
    %v1822 = vsub.s32 1, %v1821
    %v1823 = vrot.slane %v1814, %v1822
    %v1824 = vlaneseq
    %v1825 = vshrl.u32 %v1824, 7
    %v1826 = vsub.s32 2, %v1825
    %v1827 = vrot.slane %v1814, %v1826
    %v1847 = vunpack.c.l.b16 %v1797
    %v1848 = vunpack.c.h.b16 %v1797
    %v1849 = vunpack.c.l.b16 %v1798
    %v1850 = vunpack.c.l.b16 %v1799
    %v1851 = vunpack.c.h.b16 %v1799
    %v1852 = vunpack.c.l.b16 %v1800
    %v1853 = vunpack.c.l.b16 %v1801
    %v1854 = vunpack.c.h.b16 %v1801
    %v1855 = vunpack.c.l.b16 %v1802
    %v1856 = vunpack.c.l.b16 %v1803
    %v1857 = vunpack.c.h.b16 %v1803
    %v1858 = vunpack.c.l.b16 %v1804
    %v1859 = vunpack.c.l.b16 %v1805
    %v1860 = vunpack.c.h.b16 %v1805
    %v1861 = vunpack.c.l.b16 %v1806
    %v1862 = vunpack.c.l.b16 %v1807
    %v1863 = vunpack.c.h.b16 %v1807
    %v1864 = vunpack.c.l.b16 %v1808
    %v1865 = vunpack.c.l.b16 %v1809
    %v1866 = vunpack.c.h.b16 %v1809
    %v1867 = vunpack.c.l.b16 %v1810
    %v1868 = vunpack.c.l.b16 %v1811
    %v1869 = vunpack.c.h.b16 %v1811
    %v1870 = vunpack.c.l.b16 %v1812
    %v1871 = vpack.c.b16 %v1850, %v1847
    %v1872 = vpack.c.b16 %v1851, %v1848
    %v1873 = vpack.c.b16 %v1852, %v1849
    %v1874 = vpack.c.b16 %v1856, %v1853
    %v1875 = vpack.c.b16 %v1857, %v1854
    %v1876 = vpack.c.b16 %v1858, %v1855
    %v1877 = vpack.c.b16 %v1862, %v1859
    %v1878 = vpack.c.b16 %v1863, %v1860
    %v1879 = vpack.c.b16 %v1864, %v1861
    %v1880 = vpack.c.b16 %v1868, %v1865
    %v1881 = vpack.c.b16 %v1869, %v1866
    %v1882 = vpack.c.b16 %v1870, %v1867
    %v1896 = vsel %vm328, %v1794, 0
    %v1899 = vsel %vm328, %v1795, 0
    %1901 = vmatprep.subr.bf16.mxu0 %v1872
    %1902 = vmatpush1.bf16.msra.mxu0 %v1871
    %1903 = vmatprep.subr.bf16.mxu0 %v1875
    %1904 = vmatpush1.bf16.msra.mxu0 %v1874
    %1905 = vmatprep.subr.bf16.mxu0 %v1878
    %1906 = vmatpush1.bf16.msra.mxu0 %v1877
    %1907 = vmatprep.subr.bf16.mxu0 %v1881
    %1908 = vmatpush1.bf16.msra.mxu0 %v1880
    %1909 = vmatprep.subr.bf16.mxu0 0
    %1910 = vmatpush1.bf16.msra.mxu0 0
    %1911 = vmatprep.subr.bf16.mxu0 0
    %1912 = vmatpush1.bf16.msra.mxu0 0
    %1913 = vmatprep.subr.bf16.mxu0 0
    %1914 = vmatpush1.bf16.msra.mxu0 0
    %1915 = vmatprep.subr.bf16.mxu0 0
    %1916 = vmatpush1.bf16.msra.mxu0 0
    %1917 = vmatprep.subr.bf16.mxu0 0
    %1918 = vmatpush1.bf16.msra.mxu0 0
    %1919 = vmatprep.subr.bf16.mxu0 0
    %1920 = vmatpush1.bf16.msra.mxu0 0
    %1921 = vmatprep.subr.bf16.mxu0 0
    %1922 = vmatpush1.bf16.msra.mxu0 0
    %1923 = vmatprep.subr.bf16.mxu0 0
    %1924 = vmatpush1.bf16.msra.mxu0 0
    %1925 = vmatprep.subr.bf16.mxu0 0
    %1926 = vmatpush1.bf16.msra.mxu0 0
    %1927 = vmatprep.subr.bf16.mxu0 0
    %1928 = vmatpush1.bf16.msra.mxu0 0
    %1929 = vmatprep.subr.bf16.mxu0 0
    %1930 = vmatpush1.bf16.msra.mxu0 0
    %1931 = vmatprep.subr.bf16.mxu0 0
    %1932 = vmatpush1.bf16.msra.mxu0 0
    %1933 = vmatprep.mubr.bf16.mxu0 0
    %1934 = vmatmul.mubr.bf16.gmra.mrb[0].mxu0 %v1896
    %v1935 = vpop.f32.mrb[0].mxu0
    %v1936 = vadd.f32 %v1819, %v1935
    %v1937 = vpop.f32.mrb[0].mxu0
    %v1938 = vadd.f32 %v1823, %v1937
    %v1939 = vpop.f32.mrb[0].mxu0
    %v1940 = vadd.f32 %v1819, %v1939
    %v1941 = vpop.f32.mrb[0].mxu0
    %v1942 = vadd.f32 %v1823, %v1941
    %1943 = vmatprep.mubr.bf16.mxu0 0
    %1944 = vmatmul.mubr.bf16.gmra.mrb[0].mxu0 %v1899
    %v1945 = vpop.f32.mrb[0].mxu0
    %v1946 = vadd.f32 %v1819, %v1945
    %v1947 = vpop.f32.mrb[0].mxu0
    %v1948 = vadd.f32 %v1823, %v1947
    %v1949 = vpop.f32.mrb[0].mxu0
    %v1950 = vadd.f32 %v1819, %v1949
    %v1951 = vpop.f32.mrb[0].mxu0
    %v1952 = vadd.f32 %v1823, %v1951
    %1953 = vdwg.mxu0
    %1954 = vmatprep.subr.bf16.mxu0 0
    %1955 = vmatpush1.bf16.msra.mxu0 %v1873
    %1956 = vmatprep.subr.bf16.mxu0 0
    %1957 = vmatpush1.bf16.msra.mxu0 %v1876
    %1958 = vmatprep.subr.bf16.mxu0 0
    %1959 = vmatpush1.bf16.msra.mxu0 %v1879
    %1960 = vmatprep.subr.bf16.mxu0 0
    %1961 = vmatpush1.bf16.msra.mxu0 %v1882
    %1962 = vmatprep.subr.bf16.mxu0 0
    %1963 = vmatpush1.bf16.msra.mxu0 0
    %1964 = vmatprep.subr.bf16.mxu0 0
    %1965 = vmatpush1.bf16.msra.mxu0 0
    %1966 = vmatprep.subr.bf16.mxu0 0
    %1967 = vmatpush1.bf16.msra.mxu0 0
    %1968 = vmatprep.subr.bf16.mxu0 0
    %1969 = vmatpush1.bf16.msra.mxu0 0
    %1970 = vmatprep.subr.bf16.mxu0 0
    %1971 = vmatpush1.bf16.msra.mxu0 0
    %1972 = vmatprep.subr.bf16.mxu0 0
    %1973 = vmatpush1.bf16.msra.mxu0 0
    %1974 = vmatprep.subr.bf16.mxu0 0
    %1975 = vmatpush1.bf16.msra.mxu0 0
    %1976 = vmatprep.subr.bf16.mxu0 0
    %1977 = vmatpush1.bf16.msra.mxu0 0
    %1978 = vmatprep.subr.bf16.mxu0 0
    %1979 = vmatpush1.bf16.msra.mxu0 0
    %1980 = vmatprep.subr.bf16.mxu0 0
    %1981 = vmatpush1.bf16.msra.mxu0 0
    %1982 = vmatprep.subr.bf16.mxu0 0
    %1983 = vmatpush1.bf16.msra.mxu0 0
    %1984 = vmatprep.subr.bf16.mxu0 0
    %1985 = vmatpush1.bf16.msra.mxu0 0
    %1986 = vmatprep.mubr.bf16.mxu0 0
    %1987 = vmatmul.mubr.bf16.gmra.mrb[0].mxu0 %v1896
    %v1988 = vpop.f32.mrb[0].mxu0
    %v1989 = vadd.f32 %v1827, %v1988
    %v1990 = vpop.f32.mrb[0].mxu0
    %v1991 = vpop.f32.mrb[0].mxu0
    %v1992 = vadd.f32 %v1827, %v1991
    %v1993 = vpop.f32.mrb[0].mxu0
    %1994 = vmatprep.mubr.bf16.mxu0 0
    %1995 = vmatmul.mubr.bf16.gmra.mrb[0].mxu0 %v1899
    %v1996 = vpop.f32.mrb[0].mxu0
    %v1997 = vadd.f32 %v1827, %v1996
    %v1998 = vpop.f32.mrb[0].mxu0
    %v1999 = vpop.f32.mrb[0].mxu0
    %v2000 = vadd.f32 %v1827, %v1999
    %v2001 = vpop.f32.mrb[0].mxu0
    %2002 = vdwg.mxu0
    %v2003 = vpack.c.bf16 %v1940, %v1936
    %v2004 = vpack.c.bf16 %v1950, %v1946
    %v2005 = vpack.c.bf16 %v1942, %v1938
    %v2006 = vpack.c.bf16 %v1952, %v1948
    %v2007 = vpack.c.bf16 %v1992, %v1989
    %v2008 = vpack.c.bf16 %v2000, %v1997
    %2009 = vmatprep.subr.bf16.mxu0 0
    %2010 = vmatpush1.bf16.msra.mxu0 %v2005
    %2011 = vmatprep.subr.bf16.mxu0 0
    %2012 = vmatpush1.bf16.msra.mxu0 %v2006
    %2013 = vmatprep.subr.bf16.mxu0 0
    %2014 = vmatpush1.bf16.msra.mxu0 0
    %2015 = vmatprep.subr.bf16.mxu0 0
    %2016 = vmatpush1.bf16.msra.mxu0 0
    %2017 = vmatprep.subr.bf16.mxu0 0
    %2018 = vmatpush1.bf16.msra.mxu0 0
    %2019 = vmatprep.subr.bf16.mxu0 0
    %2020 = vmatpush1.bf16.msra.mxu0 0
    %2021 = vmatprep.subr.bf16.mxu0 0
    %2022 = vmatpush1.bf16.msra.mxu0 0
    %2023 = vmatprep.subr.bf16.mxu0 0
    %2024 = vmatpush1.bf16.msra.mxu0 0
    %2025 = vmatprep.subr.bf16.mxu0 0
    %2026 = vmatpush1.bf16.msra.mxu0 0
    %2027 = vmatprep.subr.bf16.mxu0 0
    %2028 = vmatpush1.bf16.msra.mxu0 0
    %2029 = vmatprep.subr.bf16.mxu0 0
    %2030 = vmatpush1.bf16.msra.mxu0 0
    %2031 = vmatprep.subr.bf16.mxu0 0
    %2032 = vmatpush1.bf16.msra.mxu0 0
    %2033 = vmatprep.subr.bf16.mxu0 0
    %2034 = vmatpush1.bf16.msra.mxu0 0
    %2035 = vmatprep.subr.bf16.mxu0 0
    %2036 = vmatpush1.bf16.msra.mxu0 0
    %2037 = vmatprep.subr.bf16.mxu0 0
    %2038 = vmatpush1.bf16.msra.mxu0 0
    %2039 = vmatprep.subr.bf16.mxu0 0
    %2040 = vmatpush1.bf16.msra.mxu0 0
    %2041 = vmatprep.mubr.bf16.mxu0 0
    %2042 = vmatmul.mubr.bf16.gmra.mrb[0].mxu0 %v525
    %v2043 = vpop.f32.mrb[0].mxu0
    %v2044 = vadd.f32 0.0, %v2043
    %v2045 = vpop.f32.mrb[0].mxu0
    %v2046 = vpop.f32.mrb[0].mxu0
    %v2047 = vadd.f32 0.0, %v2046
    %v2048 = vpop.f32.mrb[0].mxu0
    %2049 = vmatprep.mubr.bf16.mxu0 0
    %2050 = vmatmul.mubr.bf16.gmra.mrb[0].mxu0 %v528
    %v2051 = vpop.f32.mrb[0].mxu0
    %v2052 = vadd.f32 0.0, %v2051
    %v2053 = vpop.f32.mrb[0].mxu0
    %v2054 = vpop.f32.mrb[0].mxu0
    %v2055 = vadd.f32 0.0, %v2054
    %v2056 = vpop.f32.mrb[0].mxu0
    %2057 = vmatprep.mubr.bf16.mxu0 0
    %2058 = vmatmul.mubr.bf16.gmra.mrb[0].mxu0 %v531
    %v2059 = vpop.f32.mrb[0].mxu0
    %v2060 = vadd.f32 0.0, %v2059
    %v2061 = vpop.f32.mrb[0].mxu0
    %v2062 = vpop.f32.mrb[0].mxu0
    %v2063 = vadd.f32 0.0, %v2062
    %v2064 = vpop.f32.mrb[0].mxu0
    %2065 = vmatprep.mubr.bf16.mxu0 0
    %2066 = vmatmul.mubr.bf16.gmra.mrb[0].mxu0 %v534
    %v2067 = vpop.f32.mrb[0].mxu0
    %v2068 = vadd.f32 0.0, %v2067
    %v2069 = vpop.f32.mrb[0].mxu0
    %v2070 = vpop.f32.mrb[0].mxu0
    %v2071 = vadd.f32 0.0, %v2070
    %v2072 = vpop.f32.mrb[0].mxu0
    %2073 = vmatprep.mubr.bf16.mxu0 0
    %2074 = vmatmul.mubr.bf16.gmra.mrb[0].mxu0 %v537
    %v2075 = vpop.f32.mrb[0].mxu0
    %v2076 = vadd.f32 0.0, %v2075
    %v2077 = vpop.f32.mrb[0].mxu0
    %v2078 = vpop.f32.mrb[0].mxu0
    %v2079 = vadd.f32 0.0, %v2078
    %v2080 = vpop.f32.mrb[0].mxu0
    %2081 = vmatprep.mubr.bf16.mxu0 0
    %2082 = vmatmul.mubr.bf16.gmra.mrb[0].mxu0 %v540
    %v2083 = vpop.f32.mrb[0].mxu0
    %v2084 = vadd.f32 0.0, %v2083
    %v2085 = vpop.f32.mrb[0].mxu0
    %v2086 = vpop.f32.mrb[0].mxu0
    %v2087 = vadd.f32 0.0, %v2086
    %v2088 = vpop.f32.mrb[0].mxu0
    %2089 = vmatprep.mubr.bf16.mxu0 0
    %2090 = vmatmul.mubr.bf16.gmra.mrb[0].mxu0 %v543
    %v2091 = vpop.f32.mrb[0].mxu0
    %v2092 = vadd.f32 0.0, %v2091
    %v2093 = vpop.f32.mrb[0].mxu0
    %v2094 = vpop.f32.mrb[0].mxu0
    %v2095 = vadd.f32 0.0, %v2094
    %v2096 = vpop.f32.mrb[0].mxu0
    %2097 = vmatprep.mubr.bf16.mxu0 0
    %2098 = vmatmul.mubr.bf16.gmra.mrb[0].mxu0 %v546
    %v2099 = vpop.f32.mrb[0].mxu0
    %v2100 = vadd.f32 0.0, %v2099
    %v2101 = vpop.f32.mrb[0].mxu0
    %v2102 = vpop.f32.mrb[0].mxu0
    %v2103 = vadd.f32 0.0, %v2102
    %v2104 = vpop.f32.mrb[0].mxu0
    %2105 = vmatprep.mubr.bf16.mxu0 0
    %2106 = vmatmul.mubr.bf16.gmra.mrb[0].mxu0 %v549
    %v2107 = vpop.f32.mrb[0].mxu0
    %v2108 = vadd.f32 0.0, %v2107
    %v2109 = vpop.f32.mrb[0].mxu0
    %v2110 = vpop.f32.mrb[0].mxu0
    %v2111 = vadd.f32 0.0, %v2110
    %v2112 = vpop.f32.mrb[0].mxu0
    %2113 = vmatprep.mubr.bf16.mxu0 0
    %2114 = vmatmul.mubr.bf16.gmra.mrb[0].mxu0 %v552
    %v2115 = vpop.f32.mrb[0].mxu0
    %v2116 = vadd.f32 0.0, %v2115
    %v2117 = vpop.f32.mrb[0].mxu0
    %v2118 = vpop.f32.mrb[0].mxu0
    %v2119 = vadd.f32 0.0, %v2118
    %v2120 = vpop.f32.mrb[0].mxu0
    %2121 = vmatprep.mubr.bf16.mxu0 0
    %2122 = vmatmul.mubr.bf16.gmra.mrb[0].mxu0 %v555
    %v2123 = vpop.f32.mrb[0].mxu0
    %v2124 = vadd.f32 0.0, %v2123
    %v2125 = vpop.f32.mrb[0].mxu0
    %v2126 = vpop.f32.mrb[0].mxu0
    %v2127 = vadd.f32 0.0, %v2126
    %v2128 = vpop.f32.mrb[0].mxu0
    %2129 = vmatprep.mubr.bf16.mxu0 0
    %2130 = vmatmul.mubr.bf16.gmra.mrb[0].mxu0 %v558
    %v2131 = vpop.f32.mrb[0].mxu0
    %v2132 = vadd.f32 0.0, %v2131
    %v2133 = vpop.f32.mrb[0].mxu0
    %v2134 = vpop.f32.mrb[0].mxu0
    %v2135 = vadd.f32 0.0, %v2134
    %v2136 = vpop.f32.mrb[0].mxu0
    %2137 = vmatprep.mubr.bf16.mxu0 0
    %2138 = vmatmul.mubr.bf16.gmra.mrb[0].mxu0 %v561
    %v2139 = vpop.f32.mrb[0].mxu0
    %v2140 = vadd.f32 0.0, %v2139
    %v2141 = vpop.f32.mrb[0].mxu0
    %v2142 = vpop.f32.mrb[0].mxu0
    %v2143 = vadd.f32 0.0, %v2142
    %v2144 = vpop.f32.mrb[0].mxu0
    %2145 = vmatprep.mubr.bf16.mxu0 0
    %2146 = vmatmul.mubr.bf16.gmra.mrb[0].mxu0 %v564
    %v2147 = vpop.f32.mrb[0].mxu0
    %v2148 = vadd.f32 0.0, %v2147
    %v2149 = vpop.f32.mrb[0].mxu0
    %v2150 = vpop.f32.mrb[0].mxu0
    %v2151 = vadd.f32 0.0, %v2150
    %v2152 = vpop.f32.mrb[0].mxu0
    %2153 = vmatprep.mubr.bf16.mxu0 0
    %2154 = vmatmul.mubr.bf16.gmra.mrb[0].mxu0 %v567
    %v2155 = vpop.f32.mrb[0].mxu0
    %v2156 = vadd.f32 0.0, %v2155
    %v2157 = vpop.f32.mrb[0].mxu0
    %v2158 = vpop.f32.mrb[0].mxu0
    %v2159 = vadd.f32 0.0, %v2158
    %v2160 = vpop.f32.mrb[0].mxu0
    %2161 = vmatprep.mubr.bf16.mxu0 0
    %2162 = vmatmul.mubr.bf16.gmra.mrb[0].mxu0 %v570
    %v2163 = vpop.f32.mrb[0].mxu0
    %v2164 = vadd.f32 0.0, %v2163
    %v2165 = vpop.f32.mrb[0].mxu0
    %v2166 = vpop.f32.mrb[0].mxu0
    %v2167 = vadd.f32 0.0, %v2166
    %v2168 = vpop.f32.mrb[0].mxu0
    %2169 = vdwg.mxu0
    %v2170 = vmul.f32 %v2044, %v157
    %v2171 = vmul.f32 %v2047, %v158
    %v2172 = vmul.f32 %v2052, %v159
    %v2173 = vmul.f32 %v2055, %v160
    %v2174 = vmul.f32 %v2060, %v161
    %v2175 = vmul.f32 %v2063, %v162
    %v2176 = vmul.f32 %v2068, %v163
    %v2177 = vmul.f32 %v2071, %v164
    %v2178 = vmul.f32 %v2076, %v165
    %v2179 = vmul.f32 %v2079, %v166
    %v2180 = vmul.f32 %v2084, %v167
    %v2181 = vmul.f32 %v2087, %v168
    %v2182 = vmul.f32 %v2092, %v169
    %v2183 = vmul.f32 %v2095, %v170
    %v2184 = vmul.f32 %v2100, %v171
    %v2185 = vmul.f32 %v2103, %v172
    %v2186 = vmul.f32 %v2108, %v173
    %v2187 = vmul.f32 %v2111, %v174
    %v2188 = vmul.f32 %v2116, %v175
    %v2189 = vmul.f32 %v2119, %v176
    %v2190 = vmul.f32 %v2124, %v177
    %v2191 = vmul.f32 %v2127, %v178
    %v2192 = vmul.f32 %v2132, %v179
    %v2193 = vmul.f32 %v2135, %v180
    %v2194 = vmul.f32 %v2140, %v181
    %v2195 = vmul.f32 %v2143, %v182
    %v2196 = vmul.f32 %v2148, %v183
    %v2197 = vmul.f32 %v2151, %v184
    %v2198 = vmul.f32 %v2156, %v185
    %v2199 = vmul.f32 %v2159, %v186
    %v2200 = vmul.f32 %v2164, %v187
    %v2201 = vmul.f32 %v2167, %v188
    %v2202 = vpack.c.bf16 %v2171, %v2170
    %v2203 = vpack.c.bf16 %v2173, %v2172
    %v2204 = vpack.c.bf16 %v2175, %v2174
    %v2205 = vpack.c.bf16 %v2177, %v2176
    %v2206 = vpack.c.bf16 %v2179, %v2178
    %v2207 = vpack.c.bf16 %v2181, %v2180
    %v2208 = vpack.c.bf16 %v2183, %v2182
    %v2209 = vpack.c.bf16 %v2185, %v2184
    %v2210 = vpack.c.bf16 %v2187, %v2186
    %v2211 = vpack.c.bf16 %v2189, %v2188
    %v2212 = vpack.c.bf16 %v2191, %v2190
    %v2213 = vpack.c.bf16 %v2193, %v2192
    %v2214 = vpack.c.bf16 %v2195, %v2194
    %v2215 = vpack.c.bf16 %v2197, %v2196
    %v2216 = vpack.c.bf16 %v2199, %v2198
    %v2217 = vpack.c.bf16 %v2201, %v2200
    %2218 = vmatprep.subr.bf16.mxu0 0
    %2219 = vmatpush1.bf16.msra.mxu0 %v2007
    %2220 = vmatprep.subr.bf16.mxu0 0
    %2221 = vmatpush1.bf16.msra.mxu0 %v2008
    %2222 = vmatprep.subr.bf16.mxu0 0
    %2223 = vmatpush1.bf16.msra.mxu0 0
    %2224 = vmatprep.subr.bf16.mxu0 0
    %2225 = vmatpush1.bf16.msra.mxu0 0
    %2226 = vmatprep.subr.bf16.mxu0 0
    %2227 = vmatpush1.bf16.msra.mxu0 0
    %2228 = vmatprep.subr.bf16.mxu0 0
    %2229 = vmatpush1.bf16.msra.mxu0 0
    %2230 = vmatprep.subr.bf16.mxu0 0
    %2231 = vmatpush1.bf16.msra.mxu0 0
    %2232 = vmatprep.subr.bf16.mxu0 0
    %2233 = vmatpush1.bf16.msra.mxu0 0
    %2234 = vmatprep.subr.bf16.mxu0 0
    %2235 = vmatpush1.bf16.msra.mxu0 0
    %2236 = vmatprep.subr.bf16.mxu0 0
    %2237 = vmatpush1.bf16.msra.mxu0 0
    %2238 = vmatprep.subr.bf16.mxu0 0
    %2239 = vmatpush1.bf16.msra.mxu0 0
    %2240 = vmatprep.subr.bf16.mxu0 0
    %2241 = vmatpush1.bf16.msra.mxu0 0
    %2242 = vmatprep.subr.bf16.mxu0 0
    %2243 = vmatpush1.bf16.msra.mxu0 0
    %2244 = vmatprep.subr.bf16.mxu0 0
    %2245 = vmatpush1.bf16.msra.mxu0 0
    %2246 = vmatprep.subr.bf16.mxu0 0
    %2247 = vmatpush1.bf16.msra.mxu0 0
    %2248 = vmatprep.subr.bf16.mxu0 0
    %2249 = vmatpush1.bf16.msra.mxu0 0
    %2250 = vmatprep.mubr.bf16.mxu0 0
    %2251 = vmatmul.mubr.bf16.gmra.mrb[0].mxu0 %v525
    %v2252 = vpop.f32.mrb[0].mxu0
    %v2253 = vadd.f32 0.0, %v2252
    %v2254 = vpop.f32.mrb[0].mxu0
    %v2255 = vpop.f32.mrb[0].mxu0
    %v2256 = vadd.f32 0.0, %v2255
    %v2257 = vpop.f32.mrb[0].mxu0
    %2258 = vmatprep.mubr.bf16.mxu0 0
    %2259 = vmatmul.mubr.bf16.gmra.mrb[0].mxu0 %v528
    %v2260 = vpop.f32.mrb[0].mxu0
    %v2261 = vadd.f32 0.0, %v2260
    %v2262 = vpop.f32.mrb[0].mxu0
    %v2263 = vpop.f32.mrb[0].mxu0
    %v2264 = vadd.f32 0.0, %v2263
    %v2265 = vpop.f32.mrb[0].mxu0
    %2266 = vmatprep.mubr.bf16.mxu0 0
    %2267 = vmatmul.mubr.bf16.gmra.mrb[0].mxu0 %v531
    %v2268 = vpop.f32.mrb[0].mxu0
    %v2269 = vadd.f32 0.0, %v2268
    %v2270 = vpop.f32.mrb[0].mxu0
    %v2271 = vpop.f32.mrb[0].mxu0
    %v2272 = vadd.f32 0.0, %v2271
    %v2273 = vpop.f32.mrb[0].mxu0
    %2274 = vmatprep.mubr.bf16.mxu0 0
    %2275 = vmatmul.mubr.bf16.gmra.mrb[0].mxu0 %v534
    %v2276 = vpop.f32.mrb[0].mxu0
    %v2277 = vadd.f32 0.0, %v2276
    %v2278 = vpop.f32.mrb[0].mxu0
    %v2279 = vpop.f32.mrb[0].mxu0
    %v2280 = vadd.f32 0.0, %v2279
    %v2281 = vpop.f32.mrb[0].mxu0
    %2282 = vmatprep.mubr.bf16.mxu0 0
    %2283 = vmatmul.mubr.bf16.gmra.mrb[0].mxu0 %v537
    %v2284 = vpop.f32.mrb[0].mxu0
    %v2285 = vadd.f32 0.0, %v2284
    %v2286 = vpop.f32.mrb[0].mxu0
    %v2287 = vpop.f32.mrb[0].mxu0
    %v2288 = vadd.f32 0.0, %v2287
    %v2289 = vpop.f32.mrb[0].mxu0
    %2290 = vmatprep.mubr.bf16.mxu0 0
    %2291 = vmatmul.mubr.bf16.gmra.mrb[0].mxu0 %v540
    %v2292 = vpop.f32.mrb[0].mxu0
    %v2293 = vadd.f32 0.0, %v2292
    %v2294 = vpop.f32.mrb[0].mxu0
    %v2295 = vpop.f32.mrb[0].mxu0
    %v2296 = vadd.f32 0.0, %v2295
    %v2297 = vpop.f32.mrb[0].mxu0
    %2298 = vmatprep.mubr.bf16.mxu0 0
    %2299 = vmatmul.mubr.bf16.gmra.mrb[0].mxu0 %v543
    %v2300 = vpop.f32.mrb[0].mxu0
    %v2301 = vadd.f32 0.0, %v2300
    %v2302 = vpop.f32.mrb[0].mxu0
    %v2303 = vpop.f32.mrb[0].mxu0
    %v2304 = vadd.f32 0.0, %v2303
    %v2305 = vpop.f32.mrb[0].mxu0
    %2306 = vmatprep.mubr.bf16.mxu0 0
    %2307 = vmatmul.mubr.bf16.gmra.mrb[0].mxu0 %v546
    %v2308 = vpop.f32.mrb[0].mxu0
    %v2309 = vadd.f32 0.0, %v2308
    %v2310 = vpop.f32.mrb[0].mxu0
    %v2311 = vpop.f32.mrb[0].mxu0
    %v2312 = vadd.f32 0.0, %v2311
    %v2313 = vpop.f32.mrb[0].mxu0
    %2314 = vmatprep.mubr.bf16.mxu0 0
    %2315 = vmatmul.mubr.bf16.gmra.mrb[0].mxu0 %v549
    %v2316 = vpop.f32.mrb[0].mxu0
    %v2317 = vadd.f32 0.0, %v2316
    %v2318 = vpop.f32.mrb[0].mxu0
    %v2319 = vpop.f32.mrb[0].mxu0
    %v2320 = vadd.f32 0.0, %v2319
    %v2321 = vpop.f32.mrb[0].mxu0
    %2322 = vmatprep.mubr.bf16.mxu0 0
    %2323 = vmatmul.mubr.bf16.gmra.mrb[0].mxu0 %v552
    %v2324 = vpop.f32.mrb[0].mxu0
    %v2325 = vadd.f32 0.0, %v2324
    %v2326 = vpop.f32.mrb[0].mxu0
    %v2327 = vpop.f32.mrb[0].mxu0
    %v2328 = vadd.f32 0.0, %v2327
    %v2329 = vpop.f32.mrb[0].mxu0
    %2330 = vmatprep.mubr.bf16.mxu0 0
    %2331 = vmatmul.mubr.bf16.gmra.mrb[0].mxu0 %v555
    %v2332 = vpop.f32.mrb[0].mxu0
    %v2333 = vadd.f32 0.0, %v2332
    %v2334 = vpop.f32.mrb[0].mxu0
    %v2335 = vpop.f32.mrb[0].mxu0
    %v2336 = vadd.f32 0.0, %v2335
    %v2337 = vpop.f32.mrb[0].mxu0
    %2338 = vmatprep.mubr.bf16.mxu0 0
    %2339 = vmatmul.mubr.bf16.gmra.mrb[0].mxu0 %v558
    %v2340 = vpop.f32.mrb[0].mxu0
    %v2341 = vadd.f32 0.0, %v2340
    %v2342 = vpop.f32.mrb[0].mxu0
    %v2343 = vpop.f32.mrb[0].mxu0
    %v2344 = vadd.f32 0.0, %v2343
    %v2345 = vpop.f32.mrb[0].mxu0
    %2346 = vmatprep.mubr.bf16.mxu0 0
    %2347 = vmatmul.mubr.bf16.gmra.mrb[0].mxu0 %v561
    %v2348 = vpop.f32.mrb[0].mxu0
    %v2349 = vadd.f32 0.0, %v2348
    %v2350 = vpop.f32.mrb[0].mxu0
    %v2351 = vpop.f32.mrb[0].mxu0
    %v2352 = vadd.f32 0.0, %v2351
    %v2353 = vpop.f32.mrb[0].mxu0
    %2354 = vmatprep.mubr.bf16.mxu0 0
    %2355 = vmatmul.mubr.bf16.gmra.mrb[0].mxu0 %v564
    %v2356 = vpop.f32.mrb[0].mxu0
    %v2357 = vadd.f32 0.0, %v2356
    %v2358 = vpop.f32.mrb[0].mxu0
    %v2359 = vpop.f32.mrb[0].mxu0
    %v2360 = vadd.f32 0.0, %v2359
    %v2361 = vpop.f32.mrb[0].mxu0
    %2362 = vmatprep.mubr.bf16.mxu0 0
    %2363 = vmatmul.mubr.bf16.gmra.mrb[0].mxu0 %v567
    %v2364 = vpop.f32.mrb[0].mxu0
    %v2365 = vadd.f32 0.0, %v2364
    %v2366 = vpop.f32.mrb[0].mxu0
    %v2367 = vpop.f32.mrb[0].mxu0
    %v2368 = vadd.f32 0.0, %v2367
    %v2369 = vpop.f32.mrb[0].mxu0
    %2370 = vmatprep.mubr.bf16.mxu0 0
    %2371 = vmatmul.mubr.bf16.gmra.mrb[0].mxu0 %v570
    %v2372 = vpop.f32.mrb[0].mxu0
    %v2373 = vadd.f32 0.0, %v2372
    %v2374 = vpop.f32.mrb[0].mxu0
    %v2375 = vpop.f32.mrb[0].mxu0
    %v2376 = vadd.f32 0.0, %v2375
    %v2377 = vpop.f32.mrb[0].mxu0
    %2378 = vdwg.mxu0
    %v2379 = vmul.f32 %v2253, %v157
    %v2380 = vmul.f32 %v2256, %v158
    %v2381 = vmul.f32 %v2261, %v159
    %v2382 = vmul.f32 %v2264, %v160
    %v2383 = vmul.f32 %v2269, %v161
    %v2384 = vmul.f32 %v2272, %v162
    %v2385 = vmul.f32 %v2277, %v163
    %v2386 = vmul.f32 %v2280, %v164
    %v2387 = vmul.f32 %v2285, %v165
    %v2388 = vmul.f32 %v2288, %v166
    %v2389 = vmul.f32 %v2293, %v167
    %v2390 = vmul.f32 %v2296, %v168
    %v2391 = vmul.f32 %v2301, %v169
    %v2392 = vmul.f32 %v2304, %v170
    %v2393 = vmul.f32 %v2309, %v171
    %v2394 = vmul.f32 %v2312, %v172
    %v2395 = vmul.f32 %v2317, %v173
    %v2396 = vmul.f32 %v2320, %v174
    %v2397 = vmul.f32 %v2325, %v175
    %v2398 = vmul.f32 %v2328, %v176
    %v2399 = vmul.f32 %v2333, %v177
    %v2400 = vmul.f32 %v2336, %v178
    %v2401 = vmul.f32 %v2341, %v179
    %v2402 = vmul.f32 %v2344, %v180
    %v2403 = vmul.f32 %v2349, %v181
    %v2404 = vmul.f32 %v2352, %v182
    %v2405 = vmul.f32 %v2357, %v183
    %v2406 = vmul.f32 %v2360, %v184
    %v2407 = vmul.f32 %v2365, %v185
    %v2408 = vmul.f32 %v2368, %v186
    %v2409 = vmul.f32 %v2373, %v187
    %v2410 = vmul.f32 %v2376, %v188
    %v2411 = vpack.c.bf16 %v2380, %v2379
    %v2412 = vpack.c.bf16 %v2382, %v2381
    %v2413 = vpack.c.bf16 %v2384, %v2383
    %v2414 = vpack.c.bf16 %v2386, %v2385
    %v2415 = vpack.c.bf16 %v2388, %v2387
    %v2416 = vpack.c.bf16 %v2390, %v2389
    %v2417 = vpack.c.bf16 %v2392, %v2391
    %v2418 = vpack.c.bf16 %v2394, %v2393
    %v2419 = vpack.c.bf16 %v2396, %v2395
    %v2420 = vpack.c.bf16 %v2398, %v2397
    %v2421 = vpack.c.bf16 %v2400, %v2399
    %v2422 = vpack.c.bf16 %v2402, %v2401
    %v2423 = vpack.c.bf16 %v2404, %v2403
    %v2424 = vpack.c.bf16 %v2406, %v2405
    %v2425 = vpack.c.bf16 %v2408, %v2407
    %v2426 = vpack.c.bf16 %v2410, %v2409
    %v2428 = vsel %vm328, %v2003, 0
    %v2431 = vsel %vm328, %v2004, 0
    %v2434 = vsel %vm328, %v2202, 0
    %v2437 = vsel %vm328, %v2203, 0
    %v2440 = vsel %vm328, %v2204, 0
    %v2443 = vsel %vm328, %v2205, 0
    %v2446 = vsel %vm328, %v2206, 0
    %v2449 = vsel %vm328, %v2207, 0
    %v2452 = vsel %vm328, %v2208, 0
    %v2455 = vsel %vm328, %v2209, 0
    %v2458 = vsel %vm328, %v2210, 0
    %v2461 = vsel %vm328, %v2211, 0
    %v2464 = vsel %vm328, %v2212, 0
    %v2467 = vsel %vm328, %v2213, 0
    %v2470 = vsel %vm328, %v2214, 0
    %v2473 = vsel %vm328, %v2215, 0
    %v2476 = vsel %vm328, %v2216, 0
    %v2479 = vsel %vm328, %v2217, 0
    %2481 = vmatprep.subr.bf16.mxu0 0
    %2482 = vmatpush1.bf16.xpose.msra.mxu0 %v2434
    %2483 = vmatprep.subr.bf16.mxu0 0
    %2484 = vmatpush1.bf16.xpose.msra.mxu0 %v2437
    %2485 = vmatprep.subr.bf16.mxu0 0
    %2486 = vmatpush1.bf16.xpose.msra.mxu0 %v2440
    %2487 = vmatprep.subr.bf16.mxu0 0
    %2488 = vmatpush1.bf16.xpose.msra.mxu0 %v2443
    %2489 = vmatprep.subr.bf16.mxu0 0
    %2490 = vmatpush1.bf16.xpose.msra.mxu0 %v2446
    %2491 = vmatprep.subr.bf16.mxu0 0
    %2492 = vmatpush1.bf16.xpose.msra.mxu0 %v2449
    %2493 = vmatprep.subr.bf16.mxu0 0
    %2494 = vmatpush1.bf16.xpose.msra.mxu0 %v2452
    %2495 = vmatprep.subr.bf16.mxu0 0
    %2496 = vmatpush1.bf16.xpose.msra.mxu0 %v2455
    %2497 = vmatprep.subr.bf16.mxu0 0
    %2498 = vmatpush1.bf16.xpose.msra.mxu0 %v2458
    %2499 = vmatprep.subr.bf16.mxu0 0
    %2500 = vmatpush1.bf16.xpose.msra.mxu0 %v2461
    %2501 = vmatprep.subr.bf16.mxu0 0
    %2502 = vmatpush1.bf16.xpose.msra.mxu0 %v2464
    %2503 = vmatprep.subr.bf16.mxu0 0
    %2504 = vmatpush1.bf16.xpose.msra.mxu0 %v2467
    %2505 = vmatprep.subr.bf16.mxu0 0
    %2506 = vmatpush1.bf16.xpose.msra.mxu0 %v2470
    %2507 = vmatprep.subr.bf16.mxu0 0
    %2508 = vmatpush1.bf16.xpose.msra.mxu0 %v2473
    %2509 = vmatprep.subr.bf16.mxu0 0
    %2510 = vmatpush1.bf16.xpose.msra.mxu0 %v2476
    %2511 = vmatprep.subr.bf16.mxu0 0
    %2512 = vmatpush1.bf16.xpose.msra.mxu0 %v2479
    %2513 = vmatprep.mubr.bf16.mxu0 0
    %2514 = vmatmul.mubr.bf16.gmra.mrb[0].mxu0 %v2428
    %v2515 = vpop.f32.mrb[0].mxu0
    %v2516 = vadd.f32 %v221, %v2515
    %v2517 = vpop.f32.mrb[0].mxu0
    %v2518 = vadd.f32 %v222, %v2517
    %v2519 = vpop.f32.mrb[0].mxu0
    %v2520 = vadd.f32 %v223, %v2519
    %v2521 = vpop.f32.mrb[0].mxu0
    %v2522 = vadd.f32 %v224, %v2521
    %2523 = vmatprep.mubr.bf16.mxu0 0
    %2524 = vmatmul.mubr.bf16.gmra.mrb[0].mxu0 %v2431
    %v2525 = vpop.f32.mrb[0].mxu0
    %v2526 = vadd.f32 %v225, %v2525
    %v2527 = vpop.f32.mrb[0].mxu0
    %v2528 = vadd.f32 %v226, %v2527
    %v2529 = vpop.f32.mrb[0].mxu0
    %v2530 = vadd.f32 %v227, %v2529
    %v2531 = vpop.f32.mrb[0].mxu0
    %v2532 = vadd.f32 %v228, %v2531
    %2533 = vdwg.mxu0
    %v2534 = vmax.f32 %v2516, %v2518
    %2535 = vmax.xlane.f32.xlu0 %v2534
    %v2536 = vpop.xlane.xlu0 %2535
    %v2537 = vmax.f32 %v2520, %v2522
    %2538 = vmax.xlane.f32.xlu0 %v2537
    %v2539 = vpop.xlane.xlu0 %2538
    %v2540 = vmax.f32 %v2526, %v2528
    %2541 = vmax.xlane.f32.xlu0 %v2540
    %v2542 = vpop.xlane.xlu0 %2541
    %v2543 = vmax.f32 %v2530, %v2532
    %2544 = vmax.xlane.f32.xlu0 %v2543
    %v2545 = vpop.xlane.xlu0 %2544
    %v2546 = vsub.f32 %v2516, %v2536
    %v2547 = vsub.f32 %v2518, %v2536
    %v2548 = vsub.f32 %v2520, %v2539
    %v2549 = vsub.f32 %v2522, %v2539
    %v2550 = vsub.f32 %v2526, %v2542
    %v2551 = vsub.f32 %v2528, %v2542
    %v2552 = vsub.f32 %v2530, %v2545
    %v2553 = vsub.f32 %v2532, %v2545
    %v2554 = vmul.f32 %v2546, 1.442695
    %v2555 = vpow.pop %v2554
    %v2556 = vmul.f32 %v2547, 1.442695
    %v2557 = vpow.pop %v2556
    %v2558 = vmul.f32 %v2548, 1.442695
    %v2559 = vpow.pop %v2558
    %v2560 = vmul.f32 %v2549, 1.442695
    %v2561 = vpow.pop %v2560
    %v2562 = vmul.f32 %v2550, 1.442695
    %v2563 = vpow.pop %v2562
    %v2564 = vmul.f32 %v2551, 1.442695
    %v2565 = vpow.pop %v2564
    %v2566 = vmul.f32 %v2552, 1.442695
    %v2567 = vpow.pop %v2566
    %v2568 = vmul.f32 %v2553, 1.442695
    %v2569 = vpow.pop %v2568
    %v2570 = vpack.c.bf16 %v2559, %v2555
    %v2571 = vpack.c.bf16 %v2561, %v2557
    %v2572 = vpack.c.bf16 %v2567, %v2563
    %v2573 = vpack.c.bf16 %v2569, %v2565
    %2574 = vmatprep.subr.bf16.mxu0 0
    %2575 = vmatpush1.bf16.msra.mxu0 %v2411
    %2576 = vmatprep.subr.bf16.mxu0 0
    %2577 = vmatpush1.bf16.msra.mxu0 %v2412
    %2578 = vmatprep.subr.bf16.mxu0 0
    %2579 = vmatpush1.bf16.msra.mxu0 %v2413
    %2580 = vmatprep.subr.bf16.mxu0 0
    %2581 = vmatpush1.bf16.msra.mxu0 %v2414
    %2582 = vmatprep.subr.bf16.mxu0 0
    %2583 = vmatpush1.bf16.msra.mxu0 %v2415
    %2584 = vmatprep.subr.bf16.mxu0 0
    %2585 = vmatpush1.bf16.msra.mxu0 %v2416
    %2586 = vmatprep.subr.bf16.mxu0 0
    %2587 = vmatpush1.bf16.msra.mxu0 %v2417
    %2588 = vmatprep.subr.bf16.mxu0 0
    %2589 = vmatpush1.bf16.msra.mxu0 %v2418
    %2590 = vmatprep.subr.bf16.mxu0 0
    %2591 = vmatpush1.bf16.msra.mxu0 %v2419
    %2592 = vmatprep.subr.bf16.mxu0 0
    %2593 = vmatpush1.bf16.msra.mxu0 %v2420
    %2594 = vmatprep.subr.bf16.mxu0 0
    %2595 = vmatpush1.bf16.msra.mxu0 %v2421
    %2596 = vmatprep.subr.bf16.mxu0 0
    %2597 = vmatpush1.bf16.msra.mxu0 %v2422
    %2598 = vmatprep.subr.bf16.mxu0 0
    %2599 = vmatpush1.bf16.msra.mxu0 %v2423
    %2600 = vmatprep.subr.bf16.mxu0 0
    %2601 = vmatpush1.bf16.msra.mxu0 %v2424
    %2602 = vmatprep.subr.bf16.mxu0 0
    %2603 = vmatpush1.bf16.msra.mxu0 %v2425
    %2604 = vmatprep.subr.bf16.mxu0 0
    %2605 = vmatpush1.bf16.msra.mxu0 %v2426
    %2606 = vmatprep.mubr.bf16.mxu0 %v2571
    %2607 = vmatmul.mubr.bf16.gmra.mrb[0].mxu0 %v2570
    %v2608 = vpop.f32.mrb[0].mxu0
    %v2609 = vadd.f32 0.0, %v2608
    %v2610 = vpop.f32.mrb[0].mxu0
    %v2611 = vpop.f32.mrb[0].mxu0
    %v2612 = vadd.f32 0.0, %v2611
    %v2613 = vpop.f32.mrb[0].mxu0
    %2614 = vmatprep.mubr.bf16.mxu0 %v2573
    %2615 = vmatmul.mubr.bf16.gmra.mrb[0].mxu0 %v2572
    %v2616 = vpop.f32.mrb[0].mxu0
    %v2617 = vadd.f32 0.0, %v2616
    %v2618 = vpop.f32.mrb[0].mxu0
    %v2619 = vpop.f32.mrb[0].mxu0
    %v2620 = vadd.f32 0.0, %v2619
    %v2621 = vpop.f32.mrb[0].mxu0
    %2622 = vdwg.mxu0
    %2623 = vmatprep.subr.bf16.mxu0 0
    %2624 = vmatpush1.bf16.msra.mxu0 %v1250
    %2625 = vmatprep.subr.bf16.mxu0 0
    %2626 = vmatpush1.bf16.msra.mxu0 %v1251
    %2627 = vmatprep.subr.bf16.mxu0 0
    %2628 = vmatpush1.bf16.msra.mxu0 %v1252
    %2629 = vmatprep.subr.bf16.mxu0 0
    %2630 = vmatpush1.bf16.msra.mxu0 %v1253
    %2631 = vmatprep.subr.bf16.mxu0 0
    %2632 = vmatpush1.bf16.msra.mxu0 %v1254
    %2633 = vmatprep.subr.bf16.mxu0 0
    %2634 = vmatpush1.bf16.msra.mxu0 %v1255
    %2635 = vmatprep.subr.bf16.mxu0 0
    %2636 = vmatpush1.bf16.msra.mxu0 %v1256
    %2637 = vmatprep.subr.bf16.mxu0 0
    %2638 = vmatpush1.bf16.msra.mxu0 %v1257
    %2639 = vmatprep.subr.bf16.mxu0 0
    %2640 = vmatpush1.bf16.msra.mxu0 %v1258
    %2641 = vmatprep.subr.bf16.mxu0 0
    %2642 = vmatpush1.bf16.msra.mxu0 %v1259
    %2643 = vmatprep.subr.bf16.mxu0 0
    %2644 = vmatpush1.bf16.msra.mxu0 %v1260
    %2645 = vmatprep.subr.bf16.mxu0 0
    %2646 = vmatpush1.bf16.msra.mxu0 %v1261
    %2647 = vmatprep.subr.bf16.mxu0 0
    %2648 = vmatpush1.bf16.msra.mxu0 %v1262
    %2649 = vmatprep.subr.bf16.mxu0 0
    %2650 = vmatpush1.bf16.msra.mxu0 %v1263
    %2651 = vmatprep.subr.bf16.mxu0 0
    %2652 = vmatpush1.bf16.msra.mxu0 %v1264
    %2653 = vmatprep.subr.bf16.mxu0 0
    %2654 = vmatpush1.bf16.msra.mxu0 %v1265
    %2655 = vmatprep.mubr.bf16.mxu0 %v2571
    %2656 = vmatmul.mubr.bf16.gmra.mrb[0].mxu0 %v2570
    %v2657 = vpop.f32.mrb[0].mxu0
    %v2658 = vadd.f32 0.0, %v2657
    %v2659 = vpop.f32.mrb[0].mxu0
    %v2660 = vpop.f32.mrb[0].mxu0
    %v2661 = vadd.f32 0.0, %v2660
    %v2662 = vpop.f32.mrb[0].mxu0
    %2663 = vmatprep.mubr.bf16.mxu0 %v2573
    %2664 = vmatmul.mubr.bf16.gmra.mrb[0].mxu0 %v2572
    %v2665 = vpop.f32.mrb[0].mxu0
    %v2666 = vadd.f32 0.0, %v2665
    %v2667 = vpop.f32.mrb[0].mxu0
    %v2668 = vpop.f32.mrb[0].mxu0
    %v2669 = vadd.f32 0.0, %v2668
    %v2670 = vpop.f32.mrb[0].mxu0
    %2671 = vdwg.mxu0
    %v2672 = vrcp.pop %v2658
    %v2673 = vrcp.pop %v2661
    %v2674 = vrcp.pop %v2666
    %v2675 = vrcp.pop %v2669
    %v2676 = vmul.f32 %v2609, %v2672
    %v2677 = vmul.f32 %v2612, %v2673
    %v2678 = vmul.f32 %v2617, %v2674
    %v2679 = vmul.f32 %v2620, %v2675
    %s2680 = scalar_lea.vmem %s12, 8
    %v2681 = vld [vmem:[%s2680] sm:$0x7f]
    %v2682 = vpack.c.bf16 %v2677, %v2676
    %v2683 = vpack.c.bf16 %v2679, %v2678
    %s2684 = scalar_lea.vmem %s9, 32
    %v2685 = vld [vmem:[%s2684] sm:$0xf]
    %v2686 = vld [vmem:[%s2684 + $0x4] sm:$0xf]
    %v2687 = vld [vmem:[%s2684 + $0x8] sm:$0xf]
    %v2688 = vld [vmem:[%s2684 + $0xc] sm:$0xf]
    %v2689 = vld [vmem:[%s2684 + $0x10] sm:$0xf]
    %v2690 = vld [vmem:[%s2684 + $0x14] sm:$0xf]
    %v2691 = vld [vmem:[%s2684 + $0x18] sm:$0xf]
    %v2692 = vld [vmem:[%s2684 + $0x1c] sm:$0xf]
    %v2693 = vlaneseq
    %v2694 = vshrl.u32 %v2693, 7
    %v2695 = vsub.s32 1, %v2694
    %v2696 = vrot.slane %v2681, %v2695
    %v2705 = vunpack.c.l.b16 %v2685
    %v2706 = vunpack.c.l.b16 %v2686
    %v2707 = vunpack.c.l.b16 %v2687
    %v2708 = vunpack.c.l.b16 %v2688
    %v2709 = vunpack.c.l.b16 %v2689
    %v2710 = vunpack.c.l.b16 %v2690
    %v2711 = vunpack.c.l.b16 %v2691
    %v2712 = vunpack.c.l.b16 %v2692
    %v2713 = vpack.c.b16 %v2706, %v2705
    %v2714 = vpack.c.b16 %v2708, %v2707
    %v2715 = vpack.c.b16 %v2710, %v2709
    %v2716 = vpack.c.b16 %v2712, %v2711
    %v2722 = vsel %vm328, %v2682, 0
    %v2725 = vsel %vm328, %v2683, 0
    %2727 = vmatprep.subr.bf16.mxu0 0
    %2728 = vmatpush1.bf16.msra.mxu0 %v2713
    %2729 = vmatprep.subr.bf16.mxu0 0
    %2730 = vmatpush1.bf16.msra.mxu0 %v2714
    %2731 = vmatprep.subr.bf16.mxu0 0
    %2732 = vmatpush1.bf16.msra.mxu0 %v2715
    %2733 = vmatprep.subr.bf16.mxu0 0
    %2734 = vmatpush1.bf16.msra.mxu0 %v2716
    %2735 = vmatprep.subr.bf16.mxu0 0
    %2736 = vmatpush1.bf16.msra.mxu0 0
    %2737 = vmatprep.subr.bf16.mxu0 0
    %2738 = vmatpush1.bf16.msra.mxu0 0
    %2739 = vmatprep.subr.bf16.mxu0 0
    %2740 = vmatpush1.bf16.msra.mxu0 0
    %2741 = vmatprep.subr.bf16.mxu0 0
    %2742 = vmatpush1.bf16.msra.mxu0 0
    %2743 = vmatprep.subr.bf16.mxu0 0
    %2744 = vmatpush1.bf16.msra.mxu0 0
    %2745 = vmatprep.subr.bf16.mxu0 0
    %2746 = vmatpush1.bf16.msra.mxu0 0
    %2747 = vmatprep.subr.bf16.mxu0 0
    %2748 = vmatpush1.bf16.msra.mxu0 0
    %2749 = vmatprep.subr.bf16.mxu0 0
    %2750 = vmatpush1.bf16.msra.mxu0 0
    %2751 = vmatprep.subr.bf16.mxu0 0
    %2752 = vmatpush1.bf16.msra.mxu0 0
    %2753 = vmatprep.subr.bf16.mxu0 0
    %2754 = vmatpush1.bf16.msra.mxu0 0
    %2755 = vmatprep.subr.bf16.mxu0 0
    %2756 = vmatpush1.bf16.msra.mxu0 0
    %2757 = vmatprep.subr.bf16.mxu0 0
    %2758 = vmatpush1.bf16.msra.mxu0 0
    %2759 = vmatprep.mubr.bf16.mxu0 0
    %2760 = vmatmul.mubr.bf16.gmra.mrb[0].mxu0 %v2722
    %v2761 = vpop.f32.mrb[0].mxu0
    %v2762 = vadd.f32 %v2696, %v2761
    %v2763 = vpop.f32.mrb[0].mxu0
    %v2764 = vpop.f32.mrb[0].mxu0
    %v2765 = vadd.f32 %v2696, %v2764
    %v2766 = vpop.f32.mrb[0].mxu0
    %2767 = vmatprep.mubr.bf16.mxu0 0
    %2768 = vmatmul.mubr.bf16.gmra.mrb[0].mxu0 %v2725
    %v2769 = vpop.f32.mrb[0].mxu0
    %v2770 = vadd.f32 %v2696, %v2769
    %v2771 = vpop.f32.mrb[0].mxu0
    %v2772 = vpop.f32.mrb[0].mxu0
    %v2773 = vadd.f32 %v2696, %v2772
    %v2774 = vpop.f32.mrb[0].mxu0
    %2775 = vdwg.mxu0
    %v2776 = vadd.f32 %v1790, %v2762
    %v2777 = vadd.f32 %v1791, %v2765
    %v2778 = vadd.f32 %v1792, %v2770
    %v2779 = vadd.f32 %v1793, %v2773
    %v2780 = vsel %vm328, %v2776, 0.0
    %2781 = vadd.xlane.f32.xlu0 %v2780
    %v2782 = vpop.xlane.xlu0 %2781
    %v2783 = vsel %vm328, %v2777, 0.0
    %2784 = vadd.xlane.f32.xlu0 %v2783
    %v2785 = vpop.xlane.xlu0 %2784
    %v2786 = vsel %vm328, %v2778, 0.0
    %2787 = vadd.xlane.f32.xlu0 %v2786
    %v2788 = vpop.xlane.xlu0 %2787
    %v2789 = vsel %vm328, %v2779, 0.0
    %2790 = vadd.xlane.f32.xlu0 %v2789
    %v2791 = vpop.xlane.xlu0 %2790
    %v2792 = vmul.f32 %v2782, %v1449
    %v2793 = vmul.f32 %v2785, %v1449
    %v2794 = vmul.f32 %v2788, %v1449
    %v2795 = vmul.f32 %v2791, %v1449
    %v2796 = vsub.f32 %v2776, %v2792
    %v2797 = vsub.f32 %v2777, %v2793
    %v2798 = vsub.f32 %v2778, %v2794
    %v2799 = vsub.f32 %v2779, %v2795
    %v2800 = vmul.f32 %v2796, %v2796
    %v2801 = vmul.f32 %v2797, %v2797
    %v2802 = vmul.f32 %v2798, %v2798
    %v2803 = vmul.f32 %v2799, %v2799
    %v2804 = vsel %vm328, %v2800, 0.0
    %2805 = vadd.xlane.f32.xlu0 %v2804
    %v2806 = vpop.xlane.xlu0 %2805
    %v2807 = vsel %vm328, %v2801, 0.0
    %2808 = vadd.xlane.f32.xlu0 %v2807
    %v2809 = vpop.xlane.xlu0 %2808
    %v2810 = vsel %vm328, %v2802, 0.0
    %2811 = vadd.xlane.f32.xlu0 %v2810
    %v2812 = vpop.xlane.xlu0 %2811
    %v2813 = vsel %vm328, %v2803, 0.0
    %2814 = vadd.xlane.f32.xlu0 %v2813
    %v2815 = vpop.xlane.xlu0 %2814
    %v2816 = vmul.f32 %v2806, %v1449
    %v2817 = vmul.f32 %v2809, %v1449
    %v2818 = vmul.f32 %v2812, %v1449
    %v2819 = vmul.f32 %v2815, %v1449
    %v2820 = vadd.f32 %v2816, 1e-05
    %v2821 = vadd.f32 %v2817, 1e-05
    %v2822 = vadd.f32 %v2818, 1e-05
    %v2823 = vadd.f32 %v2819, 1e-05
    %v2824 = vrsqrt.pop %v2820
    %v2825 = vrsqrt.pop %v2821
    %v2826 = vrsqrt.pop %v2822
    %v2827 = vrsqrt.pop %v2823
    %v2828 = vmul.f32 %v2796, %v2824
    %v2829 = vmul.f32 %v2797, %v2825
    %v2830 = vmul.f32 %v2798, %v2826
    %v2831 = vmul.f32 %v2799, %v2827
    %v2832 = vlaneseq
    %v2833 = vshrl.u32 %v2832, 7
    %v2834 = vsub.s32 2, %v2833
    %v2835 = vrot.slane %v2681, %v2834
    %v2836 = vmul.f32 %v2828, %v2835
    %v2837 = vmul.f32 %v2829, %v2835
    %v2838 = vmul.f32 %v2830, %v2835
    %v2839 = vmul.f32 %v2831, %v2835
    %v2840 = vlaneseq
    %v2841 = vshrl.u32 %v2840, 7
    %v2842 = vsub.s32 3, %v2841
    %v2843 = vrot.slane %v2681, %v2842
    %v2844 = vadd.f32 %v2836, %v2843
    %v2845 = vadd.f32 %v2837, %v2843
    %v2846 = vadd.f32 %v2838, %v2843
    %v2847 = vadd.f32 %v2839, %v2843
    %v2848 = vpack.c.bf16 %v2845, %v2844
    %v2849 = vpack.c.bf16 %v2847, %v2846
    %s2850 = scalar_lea.vmem %s10, 32
    %v2851 = vld [vmem:[%s2850] sm:$0xf]
    %v2852 = vld [vmem:[%s2850 + $0x4] sm:$0xf]
    %v2853 = vld [vmem:[%s2850 + $0x8] sm:$0xf]
    %v2854 = vld [vmem:[%s2850 + $0xc] sm:$0xf]
    %v2855 = vld [vmem:[%s2850 + $0x10] sm:$0xf]
    %v2856 = vld [vmem:[%s2850 + $0x14] sm:$0xf]
    %v2857 = vld [vmem:[%s2850 + $0x18] sm:$0xf]
    %v2858 = vld [vmem:[%s2850 + $0x1c] sm:$0xf]
    %v2859 = vlaneseq
    %v2860 = vshrl.u32 %v2859, 7
    %v2861 = vsub.s32 0, %v2860
    %v2862 = vrot.slane %v2681, %v2861
    %v2871 = vunpack.c.l.b16 %v2851
    %v2872 = vunpack.c.l.b16 %v2852
    %v2873 = vunpack.c.l.b16 %v2853
    %v2874 = vunpack.c.l.b16 %v2854
    %v2875 = vunpack.c.l.b16 %v2855
    %v2876 = vunpack.c.l.b16 %v2856
    %v2877 = vunpack.c.l.b16 %v2857
    %v2878 = vunpack.c.l.b16 %v2858
    %v2879 = vpack.c.b16 %v2872, %v2871
    %v2880 = vpack.c.b16 %v2874, %v2873
    %v2881 = vpack.c.b16 %v2876, %v2875
    %v2882 = vpack.c.b16 %v2878, %v2877
    %v2888 = vsel %vm328, %v2848, 0
    %v2891 = vsel %vm328, %v2849, 0
    %2893 = vmatprep.subr.bf16.mxu0 0
    %2894 = vmatpush1.bf16.msra.mxu0 %v2879
    %2895 = vmatprep.subr.bf16.mxu0 0
    %2896 = vmatpush1.bf16.msra.mxu0 %v2880
    %2897 = vmatprep.subr.bf16.mxu0 0
    %2898 = vmatpush1.bf16.msra.mxu0 %v2881
    %2899 = vmatprep.subr.bf16.mxu0 0
    %2900 = vmatpush1.bf16.msra.mxu0 %v2882
    %2901 = vmatprep.subr.bf16.mxu0 0
    %2902 = vmatpush1.bf16.msra.mxu0 0
    %2903 = vmatprep.subr.bf16.mxu0 0
    %2904 = vmatpush1.bf16.msra.mxu0 0
    %2905 = vmatprep.subr.bf16.mxu0 0
    %2906 = vmatpush1.bf16.msra.mxu0 0
    %2907 = vmatprep.subr.bf16.mxu0 0
    %2908 = vmatpush1.bf16.msra.mxu0 0
    %2909 = vmatprep.subr.bf16.mxu0 0
    %2910 = vmatpush1.bf16.msra.mxu0 0
    %2911 = vmatprep.subr.bf16.mxu0 0
    %2912 = vmatpush1.bf16.msra.mxu0 0
    %2913 = vmatprep.subr.bf16.mxu0 0
    %2914 = vmatpush1.bf16.msra.mxu0 0
    %2915 = vmatprep.subr.bf16.mxu0 0
    %2916 = vmatpush1.bf16.msra.mxu0 0
    %2917 = vmatprep.subr.bf16.mxu0 0
    %2918 = vmatpush1.bf16.msra.mxu0 0
    %2919 = vmatprep.subr.bf16.mxu0 0
    %2920 = vmatpush1.bf16.msra.mxu0 0
    %2921 = vmatprep.subr.bf16.mxu0 0
    %2922 = vmatpush1.bf16.msra.mxu0 0
    %2923 = vmatprep.subr.bf16.mxu0 0
    %2924 = vmatpush1.bf16.msra.mxu0 0
    %2925 = vmatprep.mubr.bf16.mxu0 0
    %2926 = vmatmul.mubr.bf16.gmra.mrb[0].mxu0 %v2888
    %v2927 = vpop.f32.mrb[0].mxu0
    %v2928 = vadd.f32 %v2862, %v2927
    %v2929 = vpop.f32.mrb[0].mxu0
    %v2930 = vpop.f32.mrb[0].mxu0
    %v2931 = vadd.f32 %v2862, %v2930
    %v2932 = vpop.f32.mrb[0].mxu0
    %2933 = vmatprep.mubr.bf16.mxu0 0
    %2934 = vmatmul.mubr.bf16.gmra.mrb[0].mxu0 %v2891
    %v2935 = vpop.f32.mrb[0].mxu0
    %v2936 = vadd.f32 %v2862, %v2935
    %v2937 = vpop.f32.mrb[0].mxu0
    %v2938 = vpop.f32.mrb[0].mxu0
    %v2939 = vadd.f32 %v2862, %v2938
    %v2940 = vpop.f32.mrb[0].mxu0
    %2941 = vdwg.mxu0
    %v2942 = vmax.f32 %v2928, 0.0
    %v2943 = vmax.f32 %v2931, 0.0
    %v2944 = vmax.f32 %v2936, 0.0
    %v2945 = vmax.f32 %v2939, 0.0
    %v2946 = vpack.c.bf16 %v2943, %v2942
    %v2947 = vpack.c.bf16 %v2945, %v2944
    %s2948 = scalar_lea.vmem %s11, 64
    %v2949 = vld [vmem:[%s2948] sm:$0xf]
    %v2950 = vld [vmem:[%s2948 + $0x4] sm:$0xf]
    %v2951 = vld [vmem:[%s2948 + $0x8] sm:$0xf]
    %v2952 = vld [vmem:[%s2948 + $0xc] sm:$0xf]
    %v2953 = vld [vmem:[%s2948 + $0x10] sm:$0xf]
    %v2954 = vld [vmem:[%s2948 + $0x14] sm:$0xf]
    %v2955 = vld [vmem:[%s2948 + $0x18] sm:$0xf]
    %v2956 = vld [vmem:[%s2948 + $0x1c] sm:$0xf]
    %v2957 = vld [vmem:[%s2948 + $0x20] sm:$0xf]
    %v2958 = vld [vmem:[%s2948 + $0x24] sm:$0xf]
    %v2959 = vld [vmem:[%s2948 + $0x28] sm:$0xf]
    %v2960 = vld [vmem:[%s2948 + $0x2c] sm:$0xf]
    %v2961 = vld [vmem:[%s2948 + $0x30] sm:$0xf]
    %v2962 = vld [vmem:[%s2948 + $0x34] sm:$0xf]
    %v2963 = vld [vmem:[%s2948 + $0x38] sm:$0xf]
    %v2964 = vld [vmem:[%s2948 + $0x3c] sm:$0xf]
    %v2965 = vlaneseq
    %v2966 = vshrl.u32 %v2965, 7
    %v2967 = vsub.s32 4, %v2966
    %v2968 = vrot.slane %v2681, %v2967
    %v2985 = vunpack.c.l.b16 %v2949
    %v2986 = vunpack.c.l.b16 %v2950
    %v2987 = vunpack.c.l.b16 %v2951
    %v2988 = vunpack.c.l.b16 %v2952
    %v2989 = vunpack.c.l.b16 %v2953
    %v2990 = vunpack.c.l.b16 %v2954
    %v2991 = vunpack.c.l.b16 %v2955
    %v2992 = vunpack.c.l.b16 %v2956
    %v2993 = vunpack.c.l.b16 %v2957
    %v2994 = vunpack.c.l.b16 %v2958
    %v2995 = vunpack.c.l.b16 %v2959
    %v2996 = vunpack.c.l.b16 %v2960
    %v2997 = vunpack.c.l.b16 %v2961
    %v2998 = vunpack.c.l.b16 %v2962
    %v2999 = vunpack.c.l.b16 %v2963
    %v3000 = vunpack.c.l.b16 %v2964
    %v3001 = vpack.c.b16 %v2986, %v2985
    %v3002 = vpack.c.b16 %v2988, %v2987
    %v3003 = vpack.c.b16 %v2990, %v2989
    %v3004 = vpack.c.b16 %v2992, %v2991
    %v3005 = vpack.c.b16 %v2994, %v2993
    %v3006 = vpack.c.b16 %v2996, %v2995
    %v3007 = vpack.c.b16 %v2998, %v2997
    %v3008 = vpack.c.b16 %v3000, %v2999
    %3017 = vmatprep.subr.bf16.mxu0 0
    %3018 = vmatpush1.bf16.msra.mxu0 %v3001
    %3019 = vmatprep.subr.bf16.mxu0 0
    %3020 = vmatpush1.bf16.msra.mxu0 %v3002
    %3021 = vmatprep.subr.bf16.mxu0 0
    %3022 = vmatpush1.bf16.msra.mxu0 %v3003
    %3023 = vmatprep.subr.bf16.mxu0 0
    %3024 = vmatpush1.bf16.msra.mxu0 %v3004
    %3025 = vmatprep.subr.bf16.mxu0 0
    %3026 = vmatpush1.bf16.msra.mxu0 %v3005
    %3027 = vmatprep.subr.bf16.mxu0 0
    %3028 = vmatpush1.bf16.msra.mxu0 %v3006
    %3029 = vmatprep.subr.bf16.mxu0 0
    %3030 = vmatpush1.bf16.msra.mxu0 %v3007
    %3031 = vmatprep.subr.bf16.mxu0 0
    %3032 = vmatpush1.bf16.msra.mxu0 %v3008
    %3033 = vmatprep.subr.bf16.mxu0 0
    %3034 = vmatpush1.bf16.msra.mxu0 0
    %3035 = vmatprep.subr.bf16.mxu0 0
    %3036 = vmatpush1.bf16.msra.mxu0 0
    %3037 = vmatprep.subr.bf16.mxu0 0
    %3038 = vmatpush1.bf16.msra.mxu0 0
    %3039 = vmatprep.subr.bf16.mxu0 0
    %3040 = vmatpush1.bf16.msra.mxu0 0
    %3041 = vmatprep.subr.bf16.mxu0 0
    %3042 = vmatpush1.bf16.msra.mxu0 0
    %3043 = vmatprep.subr.bf16.mxu0 0
    %3044 = vmatpush1.bf16.msra.mxu0 0
    %3045 = vmatprep.subr.bf16.mxu0 0
    %3046 = vmatpush1.bf16.msra.mxu0 0
    %3047 = vmatprep.subr.bf16.mxu0 0
    %3048 = vmatpush1.bf16.msra.mxu0 0
    %3049 = vmatprep.mubr.bf16.mxu0 0
    %3050 = vmatmul.mubr.bf16.gmra.mrb[0].mxu0 %v2946
    %v3051 = vpop.f32.mrb[0].mxu0
    %v3052 = vadd.f32 %v2968, %v3051
    %v3053 = vpop.f32.mrb[0].mxu0
    %v3054 = vpop.f32.mrb[0].mxu0
    %v3055 = vadd.f32 %v2968, %v3054
    %v3056 = vpop.f32.mrb[0].mxu0
    %3057 = vmatprep.mubr.bf16.mxu0 0
    %3058 = vmatmul.mubr.bf16.gmra.mrb[0].mxu0 %v2947
    %v3059 = vpop.f32.mrb[0].mxu0
    %v3060 = vadd.f32 %v2968, %v3059
    %v3061 = vpop.f32.mrb[0].mxu0
    %v3062 = vpop.f32.mrb[0].mxu0
    %v3063 = vadd.f32 %v2968, %v3062
    %v3064 = vpop.f32.mrb[0].mxu0
    %3065 = vdwg.mxu0
    %v3066 = vadd.f32 %v2844, %v3052
    %v3067 = vadd.f32 %v2845, %v3055
    %v3068 = vadd.f32 %v2846, %v3060
    %v3069 = vadd.f32 %v2847, %v3063
    %v3070 = vsel %vm328, %v3066, 0.0
    %3071 = vadd.xlane.f32.xlu0 %v3070
    %v3072 = vpop.xlane.xlu0 %3071
    %v3073 = vsel %vm328, %v3067, 0.0
    %3074 = vadd.xlane.f32.xlu0 %v3073
    %v3075 = vpop.xlane.xlu0 %3074
    %v3076 = vsel %vm328, %v3068, 0.0
    %3077 = vadd.xlane.f32.xlu0 %v3076
    %v3078 = vpop.xlane.xlu0 %3077
    %v3079 = vsel %vm328, %v3069, 0.0
    %3080 = vadd.xlane.f32.xlu0 %v3079
    %v3081 = vpop.xlane.xlu0 %3080
    %v3082 = vmul.f32 %v3072, %v1449
    %v3083 = vmul.f32 %v3075, %v1449
    %v3084 = vmul.f32 %v3078, %v1449
    %v3085 = vmul.f32 %v3081, %v1449
    %v3086 = vsub.f32 %v3066, %v3082
    %v3087 = vsub.f32 %v3067, %v3083
    %v3088 = vsub.f32 %v3068, %v3084
    %v3089 = vsub.f32 %v3069, %v3085
    %v3090 = vmul.f32 %v3086, %v3086
    %v3091 = vmul.f32 %v3087, %v3087
    %v3092 = vmul.f32 %v3088, %v3088
    %v3093 = vmul.f32 %v3089, %v3089
    %v3094 = vsel %vm328, %v3090, 0.0
    %3095 = vadd.xlane.f32.xlu0 %v3094
    %v3096 = vpop.xlane.xlu0 %3095
    %v3097 = vsel %vm328, %v3091, 0.0
    %3098 = vadd.xlane.f32.xlu0 %v3097
    %v3099 = vpop.xlane.xlu0 %3098
    %v3100 = vsel %vm328, %v3092, 0.0
    %3101 = vadd.xlane.f32.xlu0 %v3100
    %v3102 = vpop.xlane.xlu0 %3101
    %v3103 = vsel %vm328, %v3093, 0.0
    %3104 = vadd.xlane.f32.xlu0 %v3103
    %v3105 = vpop.xlane.xlu0 %3104
    %v3106 = vmul.f32 %v3096, %v1449
    %v3107 = vmul.f32 %v3099, %v1449
    %v3108 = vmul.f32 %v3102, %v1449
    %v3109 = vmul.f32 %v3105, %v1449
    %v3110 = vadd.f32 %v3106, 1e-05
    %v3111 = vadd.f32 %v3107, 1e-05
    %v3112 = vadd.f32 %v3108, 1e-05
    %v3113 = vadd.f32 %v3109, 1e-05
    %v3114 = vrsqrt.pop %v3110
    %v3115 = vrsqrt.pop %v3111
    %v3116 = vrsqrt.pop %v3112
    %v3117 = vrsqrt.pop %v3113
    %v3118 = vmul.f32 %v3086, %v3114
    %v3119 = vmul.f32 %v3087, %v3115
    %v3120 = vmul.f32 %v3088, %v3116
    %v3121 = vmul.f32 %v3089, %v3117
    %v3122 = vlaneseq
    %v3123 = vshrl.u32 %v3122, 7
    %v3124 = vsub.s32 5, %v3123
    %v3125 = vrot.slane %v2681, %v3124
    %v3126 = vmul.f32 %v3118, %v3125
    %v3127 = vmul.f32 %v3119, %v3125
    %v3128 = vmul.f32 %v3120, %v3125
    %v3129 = vmul.f32 %v3121, %v3125
    %v3130 = vlaneseq
    %v3131 = vshrl.u32 %v3130, 7
    %v3132 = vsub.s32 6, %v3131
    %v3133 = vrot.slane %v2681, %v3132
    %v3134 = vadd.f32 %v3126, %v3133
    %v3135 = vadd.f32 %v3127, %v3133
    %v3136 = vadd.f32 %v3128, %v3133
    %v3137 = vadd.f32 %v3129, %v3133
    %3138 = vst.msk [vmem:[#allocation2] sm:$0xff] %vm328, %v3134
    %3139 = vst.msk [vmem:[#allocation2 + $0x8] sm:$0xff] %vm328, %v3135
    %3140 = vst.msk [vmem:[#allocation2 + $0x10] sm:$0xff] %vm328, %v3136
    %3141 = vst.msk [vmem:[#allocation2 + $0x18] sm:$0xff] %vm328, %v3137
    // Predicated region
    $region54: #{tpu_custom_call.1} parent=1 // pred_check
      _
    $region55: #{tpu_custom_call.1} parent=1 // pred_check_branch
      %3143 = sbr.rel (0) target = $region57
    $region56: #{tpu_custom_call.1} parent=1 // pred_region
      %s3145 = ssub.s32 512, 512
      %3146 = vsyncadd [#allocation3], %s3145
      %s3147 = sshll.u32 [#allocation2], 4
      %s3148 = int_to_ptr.vmem [resolvable:$true] %s3147
      %3153 = dma.vmem_to_hbm [thread:$0]  %s3148, 512, %s13, [#allocation3], 128, 128, 8
    $region57: #{tpu_custom_call.1} parent=1 // pred_fallthru
      _
    // Predicated region
    $region58: #{tpu_custom_call.1} parent=1 // pred_check
      _
    $region59: #{tpu_custom_call.1} parent=1 // pred_check_branch
      %3155 = sbr.rel (0) target = $region61
    $region60: #{tpu_custom_call.1} parent=1 // pred_region
      %3156 = dma.done [#allocation3], 512
    $region61: #{tpu_custom_call.1} parent=1 // pred_fallthru
      _
    %3157 = vsyncpa [#allocation3], 1

</llo_original>
